<compile_context>
chip_gen: v7x
topology: tpu7x:2x2x1
jax: 0.10.0
libtpu: 0.0.40
codegen_flags: <defaults>
</compile_context>

<pallas_src>
import numpy as np
import jax
import jax.numpy as jnp
from jax import lax
from jax.experimental import pallas as pl
from jax.experimental.pallas import tpu as pltpu

# ----------------------------- config (small, synthetic) -----------------------------
B = 2                       # batch
S = 8                       # sequence length
H = 64                      # sentence_encoder.out_dim == LSTM output dim
HH = H // 2                 # per-direction LSTM hidden size  (bi_lstm hidden_size=H//2)
HSEL = 64                   # selection-layer internal hidden size
LABELS = ["NA", "rel_a", "rel_b", "rel_c", "rel_d"]
L = len(LABELS)             # num_labels
NA_ID = LABELS.index("NA")
VOCAB = 50
NFEAT = 7                   # entity-feature vocabulary for features[0]; 0 == "not entity"

G8 = 8 * HH                 # merged (fwd+bwd) gate width

# ---- packed LSTM weight row offsets (width 8*HH = 256) ----
_R_WIH0 = 0                          # [2*H,  8*HH]  layer-1 input proj (x | x_rev rows)
_R_WHH0 = _R_WIH0 + 2 * H            # [2*HH, 8*HH]  layer-1 recurrent block matrix
_R_WIH1 = _R_WHH0 + 2 * HH           # [4*HH, 8*HH]  layer-2 input proj (augmented rows)
_R_WHH1 = _R_WIH1 + 4 * HH           # [2*HH, 8*HH]  layer-2 recurrent block matrix
_R_B0 = _R_WHH1 + 2 * HH             # [1, 8*HH]
_R_B1 = _R_B0 + 1                    # [1, 8*HH]
_R_LSTM = ((_R_B1 + 1 + 7) // 8) * 8  # padded row count (392)

# ---- packed selection weight row offsets (width B*S*S = 128) ----
_RS_WC = 0                           # rows [0:2*HSEL): cols [0:2*HH)=W_comb^T, [2*HH:2*HH+S*B)=bias (pre-broadcast)
_RS_EI = _RS_WC + 2 * HSEL           # [S*B, B*S*S] pair-expansion matrix for the "i" token
_RS_EJ = _RS_EI + S * B              # [S*B, B*S*S] pair-expansion matrix for the "j" token
_RS_REL = _RS_EJ + S * B             # [8, *] rel weights (rows 0:L, cols 0:HSEL)
_RS_SEL = _RS_REL + 8


# ------------------------------ fused Pallas kernel -----------------------------------
def _fused_forward_kernel(xaug_ref,                 # [S*B, 2*H]   (x | x time-reversed), time-major rows t*B+b
                          wl_ref,                   # [_R_LSTM, 8*HH]  packed LSTM weights
                          ws_ref,                   # [_RS_SEL, B*S*S] packed selection weights
                          out_ref,                  # [L, B*S*S]   lane-dense logits
                          gates_ref,                # VMEM scratch [S*B, 8*HH]  (step-major gates, reused per layer)
                          x1aug_ref,                # VMEM scratch [S*B, 4*HH]  (layer-2 augmented input)
                          h2_ref):                  # VMEM scratch [S*B, 2*HH]  (layer-2 output, time-major)
    f32 = jnp.float32

    def run_layer(x_in, wih, bias, whh, store_fn):
        # Hoisted input projection for BOTH directions, already step-major (the bwd half
        # of the weights reads the time-reversed columns of x_in).  Staged in VMEM so the
        # recurrence loads [B, 8*HH] rows instead of slicing a live vreg value.
        gates_ref[...] = jnp.dot(x_in, wih, preferred_element_type=f32) + bias
        hcat = jnp.zeros((B, 2 * HH), f32)          # [hf | hb]
        ccat = jnp.zeros((B, 2 * HH), f32)          # [cf | cb]
        for t in range(S):                          # static unroll (S=8)
            tb = S - 1 - t
            # ONE merged recurrent matmul per step (block-structured W_hh).
            g = gates_ref[t * B:(t + 1) * B, :] + jnp.dot(hcat, whh,
                                                          preferred_element_type=f32)
            # role-grouped gate layout: [i_f,i_b | f_f,f_b | o_f,o_b | g_f,g_b]
            sig = jax.nn.sigmoid(g[:, 0:6 * HH])    # one sigmoid push (i,f,o for both dirs)
            gg = jnp.tanh(g[:, 6 * HH:8 * HH])      # one tanh push (g for both dirs)
            ccat = sig[:, 2 * HH:4 * HH] * ccat + sig[:, 0:2 * HH] * gg
            hcat = sig[:, 4 * HH:6 * HH] * jnp.tanh(ccat)
            store_fn(t, tb, hcat)

    # ---------------- layer 1 ----------------
    # x1aug columns per (time-major) row t:  [hf(t) | hb(S-1-t) | hb(t) | hf(S-1-t)]
    # -> two contiguous [B, 2*HH] stores per step, and layer 2 gets both the normal
    #    and the time-reversed input without any flip/concat.
    def store1(t, tb, hcat):
        x1aug_ref[t * B:(t + 1) * B, 0:2 * HH] = hcat
        x1aug_ref[tb * B:(tb + 1) * B, 2 * HH:4 * HH] = jnp.concatenate(
            [hcat[:, HH:2 * HH], hcat[:, 0:HH]], axis=1)

    run_layer(xaug_ref[...],
              wl_ref[_R_WIH0:_R_WIH0 + 2 * H, :],
              wl_ref[_R_B0:_R_B0 + 1, :],
              wl_ref[_R_WHH0:_R_WHH0 + 2 * HH, :],
              store1)

    # ---------------- layer 2 ----------------
    def store2(t, tb, hcat):
        h2_ref[t * B:(t + 1) * B, 0:HH] = hcat[:, 0:HH]             # hf(t)
        h2_ref[tb * B:(tb + 1) * B, HH:2 * HH] = hcat[:, HH:2 * HH]  # hb(S-1-t)

    run_layer(x1aug_ref[...],
              wl_ref[_R_WIH1:_R_WIH1 + 4 * HH, :],
              wl_ref[_R_B1:_R_B1 + 1, :],
              wl_ref[_R_WHH1:_R_WHH1 + 2 * HH, :],
              store2)

    # ---------------- multi-head selection (lane-dense) ----------------
    h2 = h2_ref[...]                                                 # [S*B, 2*HH], time-major tokens
    wc = ws_ref[_RS_WC:_RS_WC + 2 * HSEL, 0:2 * HH]                  # [2*HSEL, 2*HH]  (folded pre-relu linears)
    bc = ws_ref[_RS_WC:_RS_WC + 2 * HSEL, 2 * HH:2 * HH + S * B]     # [2*HSEL, S*B]   (bias, pre-broadcast)
    # uuvvT[:, tok] = W_comb @ h2[tok] + b_comb     (A @ B^T dot -> no explicit transpose)
    uuvvT = lax.dot_general(wc, h2, (((1,), (1,)), ((), ())),
                            preferred_element_type=f32) + bc         # [2*HSEL, S*B]
    ei = ws_ref[_RS_EI:_RS_EI + S * B, :]                            # [S*B, B*S*S]
    ej = ws_ref[_RS_EJ:_RS_EJ + S * B, :]
    uu_e = jnp.dot(uuvvT[0:HSEL, :], ei, preferred_element_type=f32)          # [HSEL, B*S*S]
    vv_e = jnp.dot(uuvvT[HSEL:2 * HSEL, :], ej, preferred_element_type=f32)   # [HSEL, B*S*S]
    uvt = jax.nn.relu(uu_e + vv_e)                                   # [64, 128] fully lane-dense relu
    rel = ws_ref[_RS_REL:_RS_REL + L, 0:HSEL]                        # [L, HSEL]
    out_ref[...] = jnp.dot(rel, uvt, preferred_element_type=f32)     # [L, B*S*S] lane-dense output


def fused_forward(x_aug, wpack_lstm, wpack_sel):
    vmem = lambda: pl.BlockSpec(memory_space=pltpu.MemorySpace.VMEM)
    return pl.pallas_call(
        _fused_forward_kernel,
        out_shape=jax.ShapeDtypeStruct((L, B * S * S), jnp.float32),
        in_specs=[vmem(), vmem(), vmem()],
        out_specs=vmem(),
        scratch_shapes=[pltpu.VMEM((S * B, 8 * HH), jnp.float32),   # step-major gates
                        pltpu.VMEM((S * B, 4 * HH), jnp.float32),   # layer-2 augmented input
                        pltpu.VMEM((S * B, 2 * HH), jnp.float32)],  # layer-2 output
    )(x_aug, wpack_lstm, wpack_sel)


# ----------------------------------- parameters ---------------------------------------
def init_params(key):
    keys = iter(jax.random.split(key, 32))

    def u(shape, scale):
        return jax.random.uniform(next(keys), shape, jnp.float32, -1.0, 1.0) * scale

    params = {
        "word_emb": u((VOCAB, H), 0.5),
        "feat_emb": u((NFEAT, H), 0.5),
    }
    lstm = []
    d_in = H
    for _layer in range(2):                         # num_layers=2, bidirectional
        layer_p = {}
        for d in ("fwd", "bwd"):
            layer_p[d] = (u((d_in, 4 * HH), 1.0 / np.sqrt(HH)),   # W_ih (transposed vs torch), cols (i,f,g,o)
                          u((HH, 4 * HH), 1.0 / np.sqrt(HH)),     # W_hh, cols (i,f,g,o)
                          u((1, 4 * HH), 1.0 / np.sqrt(HH)))      # b_ih + b_hh combined
        lstm.append(layer_p)
        d_in = 2 * HH
    params["lstm"] = lstm
    params["sel"] = {
        "wu": u((H, HSEL), 1.0 / np.sqrt(H)),
        "bu": u((1, HSEL), 0.1),
        "wv": u((H, HSEL), 1.0 / np.sqrt(H)),
        "bv": u((1, HSEL), 0.1),
        "wuv_u": u((HSEL, HSEL), 1.0 / np.sqrt(2 * HSEL)),
        "wuv_v": u((HSEL, HSEL), 1.0 / np.sqrt(2 * HSEL)),
        "buv": u((1, HSEL), 0.1),
        "rel": u((L, HSEL), 1.0 / np.sqrt(HSEL)),
    }
    return params


def pack_params(params):
    """One-time host-side repack of the logical (PyTorch-layout) params into the
    fused-kernel operand layout.  Logical params keep the torch (i,f,g,o) gate order."""
    l0, l1 = params["lstm"]
    sel = params["sel"]

    def strips(w):                       # [*, 4*HH] (i,f,g,o) -> 4 column strips
        return w[:, 0:HH], w[:, HH:2 * HH], w[:, 2 * HH:3 * HH], w[:, 3 * HH:4 * HH]

    def place(w, direction):             # -> [*, 8*HH] role-grouped merged layout
        i, f, g, o = strips(w)
        z = jnp.zeros_like(i)
        if direction == "fwd":
            return jnp.concatenate([i, z, f, z, o, z, g, z], axis=1)
        return jnp.concatenate([z, i, z, f, z, o, z, g], axis=1)

    # ---- layer 1 ----
    wih0_aug = jnp.concatenate([place(l0["fwd"][0], "fwd"),          # rows 0:H   multiply x
                                place(l0["bwd"][0], "bwd")], axis=0)  # rows H:2H  multiply x_rev
    whh0_blk = jnp.concatenate([place(l0["fwd"][1], "fwd"),
                                place(l0["bwd"][1], "bwd")], axis=0)
    b0 = place(l0["fwd"][2], "fwd") + place(l0["bwd"][2], "bwd")

    # ---- layer 2 (augmented-input row order: [hf(t) | hb(S-1-t) | hb(t) | hf(S-1-t)]) ----
    wf = place(l1["fwd"][0], "fwd")       # rows 0:HH multiply hf-input, HH:2HH multiply hb-input
    wb = place(l1["bwd"][0], "bwd")
    wih1_aug = jnp.concatenate([wf[0:HH], wb[HH:2 * HH], wf[HH:2 * HH], wb[0:HH]], axis=0)
    whh1_blk = jnp.concatenate([place(l1["fwd"][1], "fwd"),
                                place(l1["bwd"][1], "bwd")], axis=0)
    b1 = place(l1["fwd"][2], "fwd") + place(l1["bwd"][2], "bwd")

    pad = jnp.zeros((_R_LSTM - (_R_B1 + 1), 8 * HH), jnp.float32)
    wpack_lstm = jnp.concatenate([wih0_aug, whh0_blk, wih1_aug, whh1_blk, b0, b1, pad], axis=0)

    # ---- selection head: fold the two pre-relu linears into one map, transpose, pad ----
    w_in = jnp.concatenate([sel["wu"], sel["wv"]], axis=1)           # [H, 2*HSEL]
    b_in = jnp.concatenate([sel["bu"], sel["bv"]], axis=1)           # [1, 2*HSEL]
    zk = jnp.zeros((HSEL, HSEL), jnp.float32)
    w_blk = jnp.concatenate([jnp.concatenate([sel["wuv_u"], zk], axis=1),
                             jnp.concatenate([zk, sel["wuv_v"]], axis=1)], axis=0)   # [2*HSEL, 2*HSEL]
    b_blk = jnp.concatenate([sel["buv"], jnp.zeros((1, HSEL), jnp.float32)], axis=1)  # buv folded into uu half
    w_comb = (w_in @ w_blk).T                                         # [2*HSEL, H]
    b_comb = (b_in @ w_blk + b_blk).T                                 # [2*HSEL, 1]
    b_comb_bcast = jnp.tile(b_comb, (1, S * B))                       # pre-broadcast over tokens
    sel_rows = jnp.concatenate(
        [w_comb, b_comb_bcast,
         jnp.zeros((2 * HSEL, B * S * S - 2 * HH - S * B), jnp.float32)], axis=1)     # [128, 128]

    # pair-expansion matrices (constants): token index is TIME-major (t*B + b);
    # pair index n = b*S*S + i*S + j.
    ei = np.zeros((S * B, B * S * S), np.float32)
    ej = np.zeros((S * B, B * S * S), np.float32)
    for b in range(B):
        for i in range(S):
            for j in range(S):
                n = b * S * S + i * S + j
                ei[i * B + b, n] = 1.0
                ej[j * B + b, n] = 1.0

    rel_pad = jnp.zeros((8, B * S * S), jnp.float32).at[0:L, 0:HSEL].set(sel["rel"])
    wpack_sel = jnp.concatenate([sel_rows, jnp.asarray(ei), jnp.asarray(ej), rel_pad], axis=0)

    assert wpack_lstm.shape == (_R_LSTM, 8 * HH)
    assert wpack_sel.shape == (_RS_SEL, B * S * S)
    return {"lstm": wpack_lstm, "sel": wpack_sel}


# ------------------------------------- forward ----------------------------------------
def lstm_mhs_forward(params, packed, input_ids, features, attention_mask):
    # sentence_encoder (external black-box module) -> modeled as embedding lookups.
    # TODO(synk): the real sentence_encoder is not reproducible here; plain-JAX embedding glue.
    enc = params["word_emb"][input_ids] + params["feat_emb"][features[0]]      # [B, S, H]
    seq_lengths = jnp.sum(attention_mask, -1)                                  # parity with torch.sum(mask, -1)

    # time-major input, augmented with its time reversal for the hoisted bwd projection.
    # TODO(synk): pack_padded_sequence(seq_len) is not honored; the bi-LSTM runs the full
    # sequence, matching PyTorch only when attention_mask is all-ones (this synthetic setup).
    x_tm = jnp.transpose(enc, (1, 0, 2)).astype(jnp.float32)                   # [S, B, H]
    x_aug = jnp.concatenate([x_tm, x_tm[::-1]], axis=-1).reshape(S * B, 2 * H)  # [S*B, 2*H]

    out = fused_forward(x_aug, packed["lstm"], packed["sel"])                  # [L, B*S*S] lane-dense
    selection_logits = out.reshape(L, B, S, S).transpose(1, 2, 0, 3)           # [B, S, L, S]
    return selection_logits, seq_lengths


# ------------------------- pure-JAX reference (correctness check) ---------------------
def reference_forward(params, enc):
    def run_dir(x_tbd, w_ih, w_hh, bias):
        def step(carry, x_t):
            h, c = carry
            g = x_t @ w_ih + h @ w_hh + bias                       # (i, f, g, o)
            i = jax.nn.sigmoid(g[:, 0:HH])
            f = jax.nn.sigmoid(g[:, HH:2 * HH])
            gg = jnp.tanh(g[:, 2 * HH:3 * HH])
            o = jax.nn.sigmoid(g[:, 3 * HH:4 * HH])
            c = f * c + i * gg
            h = o * jnp.tanh(c)
            return (h, c), h
        init = (jnp.zeros((B, HH), jnp.float32), jnp.zeros((B, HH), jnp.float32))
        _, hs = lax.scan(step, init, x_tbd)
        return hs

    h = jnp.transpose(enc, (1, 0, 2))                               # [S, B, H]
    for lp in params["lstm"]:
        hf = run_dir(h, *lp["fwd"])
        hb = run_dir(h[::-1], *lp["bwd"])[::-1]
        h = jnp.concatenate([hf, hb], axis=-1)
    h = jnp.transpose(h, (1, 0, 2))                                 # [B, S, H]
    sel = params["sel"]
    u = h @ sel["wu"] + sel["bu"]
    v = h @ sel["wv"] + sel["bv"]
    uu = u @ sel["wuv_u"] + sel["buv"]
    vv = v @ sel["wuv_v"]
    uv = jax.nn.relu(uu[:, :, None, :] + vv[:, None, :, :])         # [B, S, S, HSEL]
    return jnp.einsum("bijh,lh->bilj", uv, sel["rel"])              # [B, S, L, S]


# --------------------------------- inference glue --------------------------------------
def inference_tags(selection_logits, ent_mask):
    # mask_entity=True path: mask = (features[0] != 0)
    m = ent_mask.astype(jnp.float32)
    pair = m[:, :, None] * m[:, None, :]                    # [B, S, S]
    sel_mask = pair[:, :, None, :]                          # [B, S, 1, S] broadcast over labels
    return (jax.nn.sigmoid(selection_logits) * sel_mask) > 0.5


def extract_triples(tags_np):
    # Host-side mirror of the module's Python loop over torch.nonzero (dynamic-length output).
    result = [[] for _ in range(tags_np.shape[0])]
    for b, s, p, o in np.argwhere(tags_np):
        if p == NA_ID:
            continue
        result[int(b)].append((int(s), int(p), int(o)))
    return result


# --------------------------------------- main -----------------------------------------
if __name__ == "__main__":
    key = jax.random.PRNGKey(0)
    kp, kid, kfeat = jax.random.split(key, 3)
    params = init_params(kp)
    packed = pack_params(params)

    input_ids = jax.random.randint(kid, (B, S), 1, VOCAB)        # [B, S]
    ent_feats = jax.random.randint(kfeat, (B, S), 0, NFEAT)      # features[0], 0 == non-entity
    features = (ent_feats,)
    attention_mask = jnp.ones((B, S), jnp.int32)

    forward = jax.jit(lstm_mhs_forward)
    logits, seq_lengths = forward(params, packed, input_ids, features, attention_mask)
    logits = jax.block_until_ready(logits)

    # lightweight numerical self-check against the plain-JAX reference of the same forward
    enc = params["word_emb"][input_ids] + params["feat_emb"][features[0]]
    with jax.default_matmul_precision("highest"):
        ref_logits = jax.jit(reference_forward)(params, enc.astype(jnp.float32))
    ref_logits = jax.block_until_ready(ref_logits)
    np.testing.assert_allclose(np.asarray(logits), np.asarray(ref_logits), rtol=0.1, atol=0.1)

    ent_mask = features[0] != 0                                  # self.mask_entity == True
    tags = jax.block_until_ready(inference_tags(logits, ent_mask))
    triples = extract_triples(np.asarray(tags))

    assert logits.shape == (B, S, L, S)
    assert tags.shape == (B, S, L, S)
    assert len(triples) == B
    print("KERNEL_OK")
</pallas_src>

<mosaic_0001>
module attributes {stable_mosaic.version = 11 : i64} {
  func.func @_fused_forward_kernel(%arg0: memref<16x128xf32, #tpu.memory_space<vmem>>, %arg1: memref<392x256xf32, #tpu.memory_space<vmem>>, %arg2: memref<168x128xf32, #tpu.memory_space<vmem>>, %arg3: memref<5x128xf32, #tpu.memory_space<vmem>>, %arg4: memref<16x256xf32, #tpu.memory_space<vmem>>, %arg5: memref<16x128xf32, #tpu.memory_space<vmem>>, %arg6: memref<16x64xf32, #tpu.memory_space<vmem>>) attributes {dimension_semantics = [], scalar_prefetch = 0 : i64, scratch_operands = 3 : i64, tpu.core_type = #tpu.core_type<tc>} {
    %c0 = arith.constant 0 : index
    %c0_0 = arith.constant 0 : index
    %0 = vector.load %arg0[%c0, %c0_0] : memref<16x128xf32, #tpu.memory_space<vmem>>, vector<16x128xf32>
    %c0_1 = arith.constant 0 : index
    %c0_2 = arith.constant 0 : index
    %1 = vector.load %arg1[%c0_1, %c0_2] : memref<392x256xf32, #tpu.memory_space<vmem>>, vector<128x256xf32>
    %c384 = arith.constant 384 : index
    %c0_3 = arith.constant 0 : index
    %2 = vector.load %arg1[%c384, %c0_3] : memref<392x256xf32, #tpu.memory_space<vmem>>, vector<1x256xf32>
    %c128 = arith.constant 128 : index
    %c0_4 = arith.constant 0 : index
    %3 = vector.load %arg1[%c128, %c0_4] : memref<392x256xf32, #tpu.memory_space<vmem>>, vector<64x256xf32>
    %cst = arith.constant dense<0.000000e+00> : vector<16x256xf32>
    %4 = tpu.matmul %0, %1, %cst {dimension_numbers = #tpu.dot_dimension_numbers<[1], [0], [0], [1], [0, 0, 1, 1], [], []>} : vector<16x128xf32>, vector<128x256xf32>, vector<16x256xf32> -> vector<16x256xf32>
    %5 = vector.broadcast %2 : vector<1x256xf32> to vector<16x256xf32>
    %6 = arith.addf %4, %5 : vector<16x256xf32>
    %c0_5 = arith.constant 0 : index
    %c0_6 = arith.constant 0 : index
    %7 = vector.load %arg4[%c0_5, %c0_6] : memref<16x256xf32, #tpu.memory_space<vmem>>, vector<16x256xf32>
    tpu.vector_store %arg4[%c0_5, %c0_6], %6 {strides = array<i32>} : memref<16x256xf32, #tpu.memory_space<vmem>>, vector<16x256xf32>,
    %cst_7 = arith.constant 0.000000e+00 : f32
    %8 = vector.broadcast %cst_7 : f32 to vector<2x64xf32>
    %cst_8 = arith.constant 0.000000e+00 : f32
    %9 = vector.broadcast %cst_8 : f32 to vector<2x64xf32>
    %c0_9 = arith.constant 0 : index
    %c0_10 = arith.constant 0 : index
    %10 = vector.load %arg4[%c0_9, %c0_10] : memref<16x256xf32, #tpu.memory_space<vmem>>, vector<2x256xf32>
    %cst_11 = arith.constant dense<0.000000e+00> : vector<2x256xf32>
    %11 = tpu.matmul %8, %3, %cst_11 {dimension_numbers = #tpu.dot_dimension_numbers<[1], [0], [0], [1], [0, 0, 1, 1], [], []>} : vector<2x64xf32>, vector<64x256xf32>, vector<2x256xf32> -> vector<2x256xf32>
    %12 = arith.addf %10, %11 : vector<2x256xf32>
    %13 = vector.extract_strided_slice %12 {offsets = [0, 0], sizes = [2, 192], strides = [1, 1]} : vector<2x256xf32> to vector<2x192xf32>
    %14 = arith.negf %13 : vector<2x192xf32>
    %15 = math.exp %14 : vector<2x192xf32>
    %cst_12 = arith.constant 1.000000e+00 : f32
    %16 = vector.broadcast %cst_12 : f32 to vector<2x192xf32>
    %17 = arith.addf %16, %15 : vector<2x192xf32>
    %18 = arith.divf %16, %17 : vector<2x192xf32>
    %19 = vector.extract_strided_slice %12 {offsets = [0, 192], sizes = [2, 64], strides = [1, 1]} : vector<2x256xf32> to vector<2x64xf32>
    %20 = math.tanh %19 : vector<2x64xf32>
    %21 = vector.extract_strided_slice %18 {offsets = [0, 64], sizes = [2, 64], strides = [1, 1]} : vector<2x192xf32> to vector<2x64xf32>
    %22 = arith.mulf %21, %9 : vector<2x64xf32>
    %23 = vector.extract_strided_slice %18 {offsets = [0, 0], sizes = [2, 64], strides = [1, 1]} : vector<2x192xf32> to vector<2x64xf32>
    %24 = arith.mulf %23, %20 : vector<2x64xf32>
    %25 = arith.addf %22, %24 : vector<2x64xf32>
    %26 = vector.extract_strided_slice %18 {offsets = [0, 128], sizes = [2, 64], strides = [1, 1]} : vector<2x192xf32> to vector<2x64xf32>
    %27 = math.tanh %25 : vector<2x64xf32>
    %28 = arith.mulf %26, %27 : vector<2x64xf32>
    %c0_13 = arith.constant 0 : index
    %c0_14 = arith.constant 0 : index
    %29 = vector.load %arg5[%c0_13, %c0_14] : memref<16x128xf32, #tpu.memory_space<vmem>>, vector<2x64xf32>
    tpu.vector_store %arg5[%c0_13, %c0_14], %28 {strides = array<i32>} : memref<16x128xf32, #tpu.memory_space<vmem>>, vector<2x64xf32>,
    %30 = vector.extract_strided_slice %28 {offsets = [0, 32], sizes = [2, 32], strides = [1, 1]} : vector<2x64xf32> to vector<2x32xf32>
    %31 = vector.extract_strided_slice %28 {offsets = [0, 0], sizes = [2, 32], strides = [1, 1]} : vector<2x64xf32> to vector<2x32xf32>
    %32 = tpu.concatenate %30, %31 in 1 : vector<2x32xf32>, vector<2x32xf32> -> vector<2x64xf32>
    %c14 = arith.constant 14 : index
    %c64 = arith.constant 64 : index
    %33 = vector.load %arg5[%c14, %c64] : memref<16x128xf32, #tpu.memory_space<vmem>>, vector<2x64xf32>
    tpu.vector_store %arg5[%c14, %c64], %32 {strides = array<i32>} : memref<16x128xf32, #tpu.memory_space<vmem>>, vector<2x64xf32>,
    %c2 = arith.constant 2 : index
    %c0_15 = arith.constant 0 : index
    %34 = vector.load %arg4[%c2, %c0_15] : memref<16x256xf32, #tpu.memory_space<vmem>>, vector<2x256xf32>
    %cst_16 = arith.constant dense<0.000000e+00> : vector<2x256xf32>
    %35 = tpu.matmul %28, %3, %cst_16 {dimension_numbers = #tpu.dot_dimension_numbers<[1], [0], [0], [1], [0, 0, 1, 1], [], []>} : vector<2x64xf32>, vector<64x256xf32>, vector<2x256xf32> -> vector<2x256xf32>
    %36 = arith.addf %34, %35 : vector<2x256xf32>
    %37 = vector.extract_strided_slice %36 {offsets = [0, 0], sizes = [2, 192], strides = [1, 1]} : vector<2x256xf32> to vector<2x192xf32>
    %38 = arith.negf %37 : vector<2x192xf32>
    %39 = math.exp %38 : vector<2x192xf32>
    %cst_17 = arith.constant 1.000000e+00 : f32
    %40 = vector.broadcast %cst_17 : f32 to vector<2x192xf32>
    %41 = arith.addf %40, %39 : vector<2x192xf32>
    %42 = arith.divf %40, %41 : vector<2x192xf32>
    %43 = vector.extract_strided_slice %36 {offsets = [0, 192], sizes = [2, 64], strides = [1, 1]} : vector<2x256xf32> to vector<2x64xf32>
    %44 = math.tanh %43 : vector<2x64xf32>
    %45 = vector.extract_strided_slice %42 {offsets = [0, 64], sizes = [2, 64], strides = [1, 1]} : vector<2x192xf32> to vector<2x64xf32>
    %46 = arith.mulf %45, %25 : vector<2x64xf32>
    %47 = vector.extract_strided_slice %42 {offsets = [0, 0], sizes = [2, 64], strides = [1, 1]} : vector<2x192xf32> to vector<2x64xf32>
    %48 = arith.mulf %47, %44 : vector<2x64xf32>
    %49 = arith.addf %46, %48 : vector<2x64xf32>
    %50 = vector.extract_strided_slice %42 {offsets = [0, 128], sizes = [2, 64], strides = [1, 1]} : vector<2x192xf32> to vector<2x64xf32>
    %51 = math.tanh %49 : vector<2x64xf32>
    %52 = arith.mulf %50, %51 : vector<2x64xf32>
    %c2_18 = arith.constant 2 : index
    %c0_19 = arith.constant 0 : index
    %53 = vector.load %arg5[%c2_18, %c0_19] : memref<16x128xf32, #tpu.memory_space<vmem>>, vector<2x64xf32>
    tpu.vector_store %arg5[%c2_18, %c0_19], %52 {strides = array<i32>} : memref<16x128xf32, #tpu.memory_space<vmem>>, vector<2x64xf32>,
    %54 = vector.extract_strided_slice %52 {offsets = [0, 32], sizes = [2, 32], strides = [1, 1]} : vector<2x64xf32> to vector<2x32xf32>
    %55 = vector.extract_strided_slice %52 {offsets = [0, 0], sizes = [2, 32], strides = [1, 1]} : vector<2x64xf32> to vector<2x32xf32>
    %56 = tpu.concatenate %54, %55 in 1 : vector<2x32xf32>, vector<2x32xf32> -> vector<2x64xf32>
    %c12 = arith.constant 12 : index
    %c64_20 = arith.constant 64 : index
    %57 = vector.load %arg5[%c12, %c64_20] : memref<16x128xf32, #tpu.memory_space<vmem>>, vector<2x64xf32>
    tpu.vector_store %arg5[%c12, %c64_20], %56 {strides = array<i32>} : memref<16x128xf32, #tpu.memory_space<vmem>>, vector<2x64xf32>,
    %c4 = arith.constant 4 : index
    %c0_21 = arith.constant 0 : index
    %58 = vector.load %arg4[%c4, %c0_21] : memref<16x256xf32, #tpu.memory_space<vmem>>, vector<2x256xf32>
    %cst_22 = arith.constant dense<0.000000e+00> : vector<2x256xf32>
    %59 = tpu.matmul %52, %3, %cst_22 {dimension_numbers = #tpu.dot_dimension_numbers<[1], [0], [0], [1], [0, 0, 1, 1], [], []>} : vector<2x64xf32>, vector<64x256xf32>, vector<2x256xf32> -> vector<2x256xf32>
    %60 = arith.addf %58, %59 : vector<2x256xf32>
    %61 = vector.extract_strided_slice %60 {offsets = [0, 0], sizes = [2, 192], strides = [1, 1]} : vector<2x256xf32> to vector<2x192xf32>
    %62 = arith.negf %61 : vector<2x192xf32>
    %63 = math.exp %62 : vector<2x192xf32>
    %cst_23 = arith.constant 1.000000e+00 : f32
    %64 = vector.broadcast %cst_23 : f32 to vector<2x192xf32>
    %65 = arith.addf %64, %63 : vector<2x192xf32>
    %66 = arith.divf %64, %65 : vector<2x192xf32>
    %67 = vector.extract_strided_slice %60 {offsets = [0, 192], sizes = [2, 64], strides = [1, 1]} : vector<2x256xf32> to vector<2x64xf32>
    %68 = math.tanh %67 : vector<2x64xf32>
    %69 = vector.extract_strided_slice %66 {offsets = [0, 64], sizes = [2, 64], strides = [1, 1]} : vector<2x192xf32> to vector<2x64xf32>
    %70 = arith.mulf %69, %49 : vector<2x64xf32>
    %71 = vector.extract_strided_slice %66 {offsets = [0, 0], sizes = [2, 64], strides = [1, 1]} : vector<2x192xf32> to vector<2x64xf32>
    %72 = arith.mulf %71, %68 : vector<2x64xf32>
    %73 = arith.addf %70, %72 : vector<2x64xf32>
    %74 = vector.extract_strided_slice %66 {offsets = [0, 128], sizes = [2, 64], strides = [1, 1]} : vector<2x192xf32> to vector<2x64xf32>
    %75 = math.tanh %73 : vector<2x64xf32>
    %76 = arith.mulf %74, %75 : vector<2x64xf32>
    %c4_24 = arith.constant 4 : index
    %c0_25 = arith.constant 0 : index
    %77 = vector.load %arg5[%c4_24, %c0_25] : memref<16x128xf32, #tpu.memory_space<vmem>>, vector<2x64xf32>
    tpu.vector_store %arg5[%c4_24, %c0_25], %76 {strides = array<i32>} : memref<16x128xf32, #tpu.memory_space<vmem>>, vector<2x64xf32>,
    %78 = vector.extract_strided_slice %76 {offsets = [0, 32], sizes = [2, 32], strides = [1, 1]} : vector<2x64xf32> to vector<2x32xf32>
    %79 = vector.extract_strided_slice %76 {offsets = [0, 0], sizes = [2, 32], strides = [1, 1]} : vector<2x64xf32> to vector<2x32xf32>
    %80 = tpu.concatenate %78, %79 in 1 : vector<2x32xf32>, vector<2x32xf32> -> vector<2x64xf32>
    %c10 = arith.constant 10 : index
    %c64_26 = arith.constant 64 : index
    %81 = vector.load %arg5[%c10, %c64_26] : memref<16x128xf32, #tpu.memory_space<vmem>>, vector<2x64xf32>
    tpu.vector_store %arg5[%c10, %c64_26], %80 {strides = array<i32>} : memref<16x128xf32, #tpu.memory_space<vmem>>, vector<2x64xf32>,
    %c6 = arith.constant 6 : index
    %c0_27 = arith.constant 0 : index
    %82 = vector.load %arg4[%c6, %c0_27] : memref<16x256xf32, #tpu.memory_space<vmem>>, vector<2x256xf32>
    %cst_28 = arith.constant dense<0.000000e+00> : vector<2x256xf32>
    %83 = tpu.matmul %76, %3, %cst_28 {dimension_numbers = #tpu.dot_dimension_numbers<[1], [0], [0], [1], [0, 0, 1, 1], [], []>} : vector<2x64xf32>, vector<64x256xf32>, vector<2x256xf32> -> vector<2x256xf32>
    %84 = arith.addf %82, %83 : vector<2x256xf32>
    %85 = vector.extract_strided_slice %84 {offsets = [0, 0], sizes = [2, 192], strides = [1, 1]} : vector<2x256xf32> to vector<2x192xf32>
    %86 = arith.negf %85 : vector<2x192xf32>
    %87 = math.exp %86 : vector<2x192xf32>
    %cst_29 = arith.constant 1.000000e+00 : f32
    %88 = vector.broadcast %cst_29 : f32 to vector<2x192xf32>
    %89 = arith.addf %88, %87 : vector<2x192xf32>
    %90 = arith.divf %88, %89 : vector<2x192xf32>
    %91 = vector.extract_strided_slice %84 {offsets = [0, 192], sizes = [2, 64], strides = [1, 1]} : vector<2x256xf32> to vector<2x64xf32>
    %92 = math.tanh %91 : vector<2x64xf32>
    %93 = vector.extract_strided_slice %90 {offsets = [0, 64], sizes = [2, 64], strides = [1, 1]} : vector<2x192xf32> to vector<2x64xf32>
    %94 = arith.mulf %93, %73 : vector<2x64xf32>
    %95 = vector.extract_strided_slice %90 {offsets = [0, 0], sizes = [2, 64], strides = [1, 1]} : vector<2x192xf32> to vector<2x64xf32>
    %96 = arith.mulf %95, %92 : vector<2x64xf32>
    %97 = arith.addf %94, %96 : vector<2x64xf32>
    %98 = vector.extract_strided_slice %90 {offsets = [0, 128], sizes = [2, 64], strides = [1, 1]} : vector<2x192xf32> to vector<2x64xf32>
    %99 = math.tanh %97 : vector<2x64xf32>
    %100 = arith.mulf %98, %99 : vector<2x64xf32>
    %c6_30 = arith.constant 6 : index
    %c0_31 = arith.constant 0 : index
    %101 = vector.load %arg5[%c6_30, %c0_31] : memref<16x128xf32, #tpu.memory_space<vmem>>, vector<2x64xf32>
    tpu.vector_store %arg5[%c6_30, %c0_31], %100 {strides = array<i32>} : memref<16x128xf32, #tpu.memory_space<vmem>>, vector<2x64xf32>,
    %102 = vector.extract_strided_slice %100 {offsets = [0, 32], sizes = [2, 32], strides = [1, 1]} : vector<2x64xf32> to vector<2x32xf32>
    %103 = vector.extract_strided_slice %100 {offsets = [0, 0], sizes = [2, 32], strides = [1, 1]} : vector<2x64xf32> to vector<2x32xf32>
    %104 = tpu.concatenate %102, %103 in 1 : vector<2x32xf32>, vector<2x32xf32> -> vector<2x64xf32>
    %c8 = arith.constant 8 : index
    %c64_32 = arith.constant 64 : index
    %105 = vector.load %arg5[%c8, %c64_32] : memref<16x128xf32, #tpu.memory_space<vmem>>, vector<2x64xf32>
    tpu.vector_store %arg5[%c8, %c64_32], %104 {strides = array<i32>} : memref<16x128xf32, #tpu.memory_space<vmem>>, vector<2x64xf32>,
    %c8_33 = arith.constant 8 : index
    %c0_34 = arith.constant 0 : index
    %106 = vector.load %arg4[%c8_33, %c0_34] : memref<16x256xf32, #tpu.memory_space<vmem>>, vector<2x256xf32>
    %cst_35 = arith.constant dense<0.000000e+00> : vector<2x256xf32>
    %107 = tpu.matmul %100, %3, %cst_35 {dimension_numbers = #tpu.dot_dimension_numbers<[1], [0], [0], [1], [0, 0, 1, 1], [], []>} : vector<2x64xf32>, vector<64x256xf32>, vector<2x256xf32> -> vector<2x256xf32>
    %108 = arith.addf %106, %107 : vector<2x256xf32>
    %109 = vector.extract_strided_slice %108 {offsets = [0, 0], sizes = [2, 192], strides = [1, 1]} : vector<2x256xf32> to vector<2x192xf32>
    %110 = arith.negf %109 : vector<2x192xf32>
    %111 = math.exp %110 : vector<2x192xf32>
    %cst_36 = arith.constant 1.000000e+00 : f32
    %112 = vector.broadcast %cst_36 : f32 to vector<2x192xf32>
    %113 = arith.addf %112, %111 : vector<2x192xf32>
    %114 = arith.divf %112, %113 : vector<2x192xf32>
    %115 = vector.extract_strided_slice %108 {offsets = [0, 192], sizes = [2, 64], strides = [1, 1]} : vector<2x256xf32> to vector<2x64xf32>
    %116 = math.tanh %115 : vector<2x64xf32>
    %117 = vector.extract_strided_slice %114 {offsets = [0, 64], sizes = [2, 64], strides = [1, 1]} : vector<2x192xf32> to vector<2x64xf32>
    %118 = arith.mulf %117, %97 : vector<2x64xf32>
    %119 = vector.extract_strided_slice %114 {offsets = [0, 0], sizes = [2, 64], strides = [1, 1]} : vector<2x192xf32> to vector<2x64xf32>
    %120 = arith.mulf %119, %116 : vector<2x64xf32>
    %121 = arith.addf %118, %120 : vector<2x64xf32>
    %122 = vector.extract_strided_slice %114 {offsets = [0, 128], sizes = [2, 64], strides = [1, 1]} : vector<2x192xf32> to vector<2x64xf32>
    %123 = math.tanh %121 : vector<2x64xf32>
    %124 = arith.mulf %122, %123 : vector<2x64xf32>
    %c8_37 = arith.constant 8 : index
    %c0_38 = arith.constant 0 : index
    %125 = vector.load %arg5[%c8_37, %c0_38] : memref<16x128xf32, #tpu.memory_space<vmem>>, vector<2x64xf32>
    tpu.vector_store %arg5[%c8_37, %c0_38], %124 {strides = array<i32>} : memref<16x128xf32, #tpu.memory_space<vmem>>, vector<2x64xf32>,
    %126 = vector.extract_strided_slice %124 {offsets = [0, 32], sizes = [2, 32], strides = [1, 1]} : vector<2x64xf32> to vector<2x32xf32>
    %127 = vector.extract_strided_slice %124 {offsets = [0, 0], sizes = [2, 32], strides = [1, 1]} : vector<2x64xf32> to vector<2x32xf32>
    %128 = tpu.concatenate %126, %127 in 1 : vector<2x32xf32>, vector<2x32xf32> -> vector<2x64xf32>
    %c6_39 = arith.constant 6 : index
    %c64_40 = arith.constant 64 : index
    %129 = vector.load %arg5[%c6_39, %c64_40] : memref<16x128xf32, #tpu.memory_space<vmem>>, vector<2x64xf32>
    tpu.vector_store %arg5[%c6_39, %c64_40], %128 {strides = array<i32>} : memref<16x128xf32, #tpu.memory_space<vmem>>, vector<2x64xf32>,
    %c10_41 = arith.constant 10 : index
    %c0_42 = arith.constant 0 : index
    %130 = vector.load %arg4[%c10_41, %c0_42] : memref<16x256xf32, #tpu.memory_space<vmem>>, vector<2x256xf32>
    %cst_43 = arith.constant dense<0.000000e+00> : vector<2x256xf32>
    %131 = tpu.matmul %124, %3, %cst_43 {dimension_numbers = #tpu.dot_dimension_numbers<[1], [0], [0], [1], [0, 0, 1, 1], [], []>} : vector<2x64xf32>, vector<64x256xf32>, vector<2x256xf32> -> vector<2x256xf32>
    %132 = arith.addf %130, %131 : vector<2x256xf32>
    %133 = vector.extract_strided_slice %132 {offsets = [0, 0], sizes = [2, 192], strides = [1, 1]} : vector<2x256xf32> to vector<2x192xf32>
    %134 = arith.negf %133 : vector<2x192xf32>
    %135 = math.exp %134 : vector<2x192xf32>
    %cst_44 = arith.constant 1.000000e+00 : f32
    %136 = vector.broadcast %cst_44 : f32 to vector<2x192xf32>
    %137 = arith.addf %136, %135 : vector<2x192xf32>
    %138 = arith.divf %136, %137 : vector<2x192xf32>
    %139 = vector.extract_strided_slice %132 {offsets = [0, 192], sizes = [2, 64], strides = [1, 1]} : vector<2x256xf32> to vector<2x64xf32>
    %140 = math.tanh %139 : vector<2x64xf32>
    %141 = vector.extract_strided_slice %138 {offsets = [0, 64], sizes = [2, 64], strides = [1, 1]} : vector<2x192xf32> to vector<2x64xf32>
    %142 = arith.mulf %141, %121 : vector<2x64xf32>
    %143 = vector.extract_strided_slice %138 {offsets = [0, 0], sizes = [2, 64], strides = [1, 1]} : vector<2x192xf32> to vector<2x64xf32>
    %144 = arith.mulf %143, %140 : vector<2x64xf32>
    %145 = arith.addf %142, %144 : vector<2x64xf32>
    %146 = vector.extract_strided_slice %138 {offsets = [0, 128], sizes = [2, 64], strides = [1, 1]} : vector<2x192xf32> to vector<2x64xf32>
    %147 = math.tanh %145 : vector<2x64xf32>
    %148 = arith.mulf %146, %147 : vector<2x64xf32>
    %c10_45 = arith.constant 10 : index
    %c0_46 = arith.constant 0 : index
    %149 = vector.load %arg5[%c10_45, %c0_46] : memref<16x128xf32, #tpu.memory_space<vmem>>, vector<2x64xf32>
    tpu.vector_store %arg5[%c10_45, %c0_46], %148 {strides = array<i32>} : memref<16x128xf32, #tpu.memory_space<vmem>>, vector<2x64xf32>,
    %150 = vector.extract_strided_slice %148 {offsets = [0, 32], sizes = [2, 32], strides = [1, 1]} : vector<2x64xf32> to vector<2x32xf32>
    %151 = vector.extract_strided_slice %148 {offsets = [0, 0], sizes = [2, 32], strides = [1, 1]} : vector<2x64xf32> to vector<2x32xf32>
    %152 = tpu.concatenate %150, %151 in 1 : vector<2x32xf32>, vector<2x32xf32> -> vector<2x64xf32>
    %c4_47 = arith.constant 4 : index
    %c64_48 = arith.constant 64 : index
    %153 = vector.load %arg5[%c4_47, %c64_48] : memref<16x128xf32, #tpu.memory_space<vmem>>, vector<2x64xf32>
    tpu.vector_store %arg5[%c4_47, %c64_48], %152 {strides = array<i32>} : memref<16x128xf32, #tpu.memory_space<vmem>>, vector<2x64xf32>,
    %c12_49 = arith.constant 12 : index
    %c0_50 = arith.constant 0 : index
    %154 = vector.load %arg4[%c12_49, %c0_50] : memref<16x256xf32, #tpu.memory_space<vmem>>, vector<2x256xf32>
    %cst_51 = arith.constant dense<0.000000e+00> : vector<2x256xf32>
    %155 = tpu.matmul %148, %3, %cst_51 {dimension_numbers = #tpu.dot_dimension_numbers<[1], [0], [0], [1], [0, 0, 1, 1], [], []>} : vector<2x64xf32>, vector<64x256xf32>, vector<2x256xf32> -> vector<2x256xf32>
    %156 = arith.addf %154, %155 : vector<2x256xf32>
    %157 = vector.extract_strided_slice %156 {offsets = [0, 0], sizes = [2, 192], strides = [1, 1]} : vector<2x256xf32> to vector<2x192xf32>
    %158 = arith.negf %157 : vector<2x192xf32>
    %159 = math.exp %158 : vector<2x192xf32>
    %cst_52 = arith.constant 1.000000e+00 : f32
    %160 = vector.broadcast %cst_52 : f32 to vector<2x192xf32>
    %161 = arith.addf %160, %159 : vector<2x192xf32>
    %162 = arith.divf %160, %161 : vector<2x192xf32>
    %163 = vector.extract_strided_slice %156 {offsets = [0, 192], sizes = [2, 64], strides = [1, 1]} : vector<2x256xf32> to vector<2x64xf32>
    %164 = math.tanh %163 : vector<2x64xf32>
    %165 = vector.extract_strided_slice %162 {offsets = [0, 64], sizes = [2, 64], strides = [1, 1]} : vector<2x192xf32> to vector<2x64xf32>
    %166 = arith.mulf %165, %145 : vector<2x64xf32>
    %167 = vector.extract_strided_slice %162 {offsets = [0, 0], sizes = [2, 64], strides = [1, 1]} : vector<2x192xf32> to vector<2x64xf32>
    %168 = arith.mulf %167, %164 : vector<2x64xf32>
    %169 = arith.addf %166, %168 : vector<2x64xf32>
    %170 = vector.extract_strided_slice %162 {offsets = [0, 128], sizes = [2, 64], strides = [1, 1]} : vector<2x192xf32> to vector<2x64xf32>
    %171 = math.tanh %169 : vector<2x64xf32>
    %172 = arith.mulf %170, %171 : vector<2x64xf32>
    %c12_53 = arith.constant 12 : index
    %c0_54 = arith.constant 0 : index
    %173 = vector.load %arg5[%c12_53, %c0_54] : memref<16x128xf32, #tpu.memory_space<vmem>>, vector<2x64xf32>
    tpu.vector_store %arg5[%c12_53, %c0_54], %172 {strides = array<i32>} : memref<16x128xf32, #tpu.memory_space<vmem>>, vector<2x64xf32>,
    %174 = vector.extract_strided_slice %172 {offsets = [0, 32], sizes = [2, 32], strides = [1, 1]} : vector<2x64xf32> to vector<2x32xf32>
    %175 = vector.extract_strided_slice %172 {offsets = [0, 0], sizes = [2, 32], strides = [1, 1]} : vector<2x64xf32> to vector<2x32xf32>
    %176 = tpu.concatenate %174, %175 in 1 : vector<2x32xf32>, vector<2x32xf32> -> vector<2x64xf32>
    %c2_55 = arith.constant 2 : index
    %c64_56 = arith.constant 64 : index
    %177 = vector.load %arg5[%c2_55, %c64_56] : memref<16x128xf32, #tpu.memory_space<vmem>>, vector<2x64xf32>
    tpu.vector_store %arg5[%c2_55, %c64_56], %176 {strides = array<i32>} : memref<16x128xf32, #tpu.memory_space<vmem>>, vector<2x64xf32>,
    %c14_57 = arith.constant 14 : index
    %c0_58 = arith.constant 0 : index
    %178 = vector.load %arg4[%c14_57, %c0_58] : memref<16x256xf32, #tpu.memory_space<vmem>>, vector<2x256xf32>
    %cst_59 = arith.constant dense<0.000000e+00> : vector<2x256xf32>
    %179 = tpu.matmul %172, %3, %cst_59 {dimension_numbers = #tpu.dot_dimension_numbers<[1], [0], [0], [1], [0, 0, 1, 1], [], []>} : vector<2x64xf32>, vector<64x256xf32>, vector<2x256xf32> -> vector<2x256xf32>
    %180 = arith.addf %178, %179 : vector<2x256xf32>
    %181 = vector.extract_strided_slice %180 {offsets = [0, 0], sizes = [2, 192], strides = [1, 1]} : vector<2x256xf32> to vector<2x192xf32>
    %182 = arith.negf %181 : vector<2x192xf32>
    %183 = math.exp %182 : vector<2x192xf32>
    %cst_60 = arith.constant 1.000000e+00 : f32
    %184 = vector.broadcast %cst_60 : f32 to vector<2x192xf32>
    %185 = arith.addf %184, %183 : vector<2x192xf32>
    %186 = arith.divf %184, %185 : vector<2x192xf32>
    %187 = vector.extract_strided_slice %180 {offsets = [0, 192], sizes = [2, 64], strides = [1, 1]} : vector<2x256xf32> to vector<2x64xf32>
    %188 = math.tanh %187 : vector<2x64xf32>
    %189 = vector.extract_strided_slice %186 {offsets = [0, 64], sizes = [2, 64], strides = [1, 1]} : vector<2x192xf32> to vector<2x64xf32>
    %190 = arith.mulf %189, %169 : vector<2x64xf32>
    %191 = vector.extract_strided_slice %186 {offsets = [0, 0], sizes = [2, 64], strides = [1, 1]} : vector<2x192xf32> to vector<2x64xf32>
    %192 = arith.mulf %191, %188 : vector<2x64xf32>
    %193 = arith.addf %190, %192 : vector<2x64xf32>
    %194 = vector.extract_strided_slice %186 {offsets = [0, 128], sizes = [2, 64], strides = [1, 1]} : vector<2x192xf32> to vector<2x64xf32>
    %195 = math.tanh %193 : vector<2x64xf32>
    %196 = arith.mulf %194, %195 : vector<2x64xf32>
    %c14_61 = arith.constant 14 : index
    %c0_62 = arith.constant 0 : index
    %197 = vector.load %arg5[%c14_61, %c0_62] : memref<16x128xf32, #tpu.memory_space<vmem>>, vector<2x64xf32>
    tpu.vector_store %arg5[%c14_61, %c0_62], %196 {strides = array<i32>} : memref<16x128xf32, #tpu.memory_space<vmem>>, vector<2x64xf32>,
    %198 = vector.extract_strided_slice %196 {offsets = [0, 32], sizes = [2, 32], strides = [1, 1]} : vector<2x64xf32> to vector<2x32xf32>
    %199 = vector.extract_strided_slice %196 {offsets = [0, 0], sizes = [2, 32], strides = [1, 1]} : vector<2x64xf32> to vector<2x32xf32>
    %200 = tpu.concatenate %198, %199 in 1 : vector<2x32xf32>, vector<2x32xf32> -> vector<2x64xf32>
    %c0_63 = arith.constant 0 : index
    %c64_64 = arith.constant 64 : index
    %201 = vector.load %arg5[%c0_63, %c64_64] : memref<16x128xf32, #tpu.memory_space<vmem>>, vector<2x64xf32>
    tpu.vector_store %arg5[%c0_63, %c64_64], %200 {strides = array<i32>} : memref<16x128xf32, #tpu.memory_space<vmem>>, vector<2x64xf32>,
    %c0_65 = arith.constant 0 : index
    %c0_66 = arith.constant 0 : index
    %202 = vector.load %arg5[%c0_65, %c0_66] : memref<16x128xf32, #tpu.memory_space<vmem>>, vector<16x128xf32>
    %c192 = arith.constant 192 : index
    %c0_67 = arith.constant 0 : index
    %203 = vector.load %arg1[%c192, %c0_67] : memref<392x256xf32, #tpu.memory_space<vmem>>, vector<128x256xf32>
    %c385 = arith.constant 385 : index
    %c0_68 = arith.constant 0 : index
    %204 = vector.load %arg1[%c385, %c0_68] : memref<392x256xf32, #tpu.memory_space<vmem>>, vector<1x256xf32>
    %c320 = arith.constant 320 : index
    %c0_69 = arith.constant 0 : index
    %205 = vector.load %arg1[%c320, %c0_69] : memref<392x256xf32, #tpu.memory_space<vmem>>, vector<64x256xf32>
    %cst_70 = arith.constant dense<0.000000e+00> : vector<16x256xf32>
    %206 = tpu.matmul %202, %203, %cst_70 {dimension_numbers = #tpu.dot_dimension_numbers<[1], [0], [0], [1], [0, 0, 1, 1], [], []>} : vector<16x128xf32>, vector<128x256xf32>, vector<16x256xf32> -> vector<16x256xf32>
    %207 = vector.broadcast %204 : vector<1x256xf32> to vector<16x256xf32>
    %208 = arith.addf %206, %207 : vector<16x256xf32>
    %c0_71 = arith.constant 0 : index
    %c0_72 = arith.constant 0 : index
    %209 = vector.load %arg4[%c0_71, %c0_72] : memref<16x256xf32, #tpu.memory_space<vmem>>, vector<16x256xf32>
    tpu.vector_store %arg4[%c0_71, %c0_72], %208 {strides = array<i32>} : memref<16x256xf32, #tpu.memory_space<vmem>>, vector<16x256xf32>,
    %cst_73 = arith.constant 0.000000e+00 : f32
    %210 = vector.broadcast %cst_73 : f32 to vector<2x64xf32>
    %cst_74 = arith.constant 0.000000e+00 : f32
    %211 = vector.broadcast %cst_74 : f32 to vector<2x64xf32>
    %c0_75 = arith.constant 0 : index
    %c0_76 = arith.constant 0 : index
    %212 = vector.load %arg4[%c0_75, %c0_76] : memref<16x256xf32, #tpu.memory_space<vmem>>, vector<2x256xf32>
    %cst_77 = arith.constant dense<0.000000e+00> : vector<2x256xf32>
    %213 = tpu.matmul %210, %205, %cst_77 {dimension_numbers = #tpu.dot_dimension_numbers<[1], [0], [0], [1], [0, 0, 1, 1], [], []>} : vector<2x64xf32>, vector<64x256xf32>, vector<2x256xf32> -> vector<2x256xf32>
    %214 = arith.addf %212, %213 : vector<2x256xf32>
    %215 = vector.extract_strided_slice %214 {offsets = [0, 0], sizes = [2, 192], strides = [1, 1]} : vector<2x256xf32> to vector<2x192xf32>
    %216 = arith.negf %215 : vector<2x192xf32>
    %217 = math.exp %216 : vector<2x192xf32>
    %cst_78 = arith.constant 1.000000e+00 : f32
    %218 = vector.broadcast %cst_78 : f32 to vector<2x192xf32>
    %219 = arith.addf %218, %217 : vector<2x192xf32>
    %220 = arith.divf %218, %219 : vector<2x192xf32>
    %221 = vector.extract_strided_slice %214 {offsets = [0, 192], sizes = [2, 64], strides = [1, 1]} : vector<2x256xf32> to vector<2x64xf32>
    %222 = math.tanh %221 : vector<2x64xf32>
    %223 = vector.extract_strided_slice %220 {offsets = [0, 64], sizes = [2, 64], strides = [1, 1]} : vector<2x192xf32> to vector<2x64xf32>
    %224 = arith.mulf %223, %211 : vector<2x64xf32>
    %225 = vector.extract_strided_slice %220 {offsets = [0, 0], sizes = [2, 64], strides = [1, 1]} : vector<2x192xf32> to vector<2x64xf32>
    %226 = arith.mulf %225, %222 : vector<2x64xf32>
    %227 = arith.addf %224, %226 : vector<2x64xf32>
    %228 = vector.extract_strided_slice %220 {offsets = [0, 128], sizes = [2, 64], strides = [1, 1]} : vector<2x192xf32> to vector<2x64xf32>
    %229 = math.tanh %227 : vector<2x64xf32>
    %230 = arith.mulf %228, %229 : vector<2x64xf32>
    %231 = vector.extract_strided_slice %230 {offsets = [0, 0], sizes = [2, 32], strides = [1, 1]} : vector<2x64xf32> to vector<2x32xf32>
    %c0_79 = arith.constant 0 : index
    %c0_80 = arith.constant 0 : index
    %232 = vector.load %arg6[%c0_79, %c0_80] : memref<16x64xf32, #tpu.memory_space<vmem>>, vector<2x32xf32>
    tpu.vector_store %arg6[%c0_79, %c0_80], %231 {strides = array<i32>} : memref<16x64xf32, #tpu.memory_space<vmem>>, vector<2x32xf32>,
    %233 = vector.extract_strided_slice %230 {offsets = [0, 32], sizes = [2, 32], strides = [1, 1]} : vector<2x64xf32> to vector<2x32xf32>
    %c14_81 = arith.constant 14 : index
    %c32 = arith.constant 32 : index
    %234 = vector.load %arg6[%c14_81, %c32] : memref<16x64xf32, #tpu.memory_space<vmem>>, vector<2x32xf32>
    tpu.vector_store %arg6[%c14_81, %c32], %233 {strides = array<i32>} : memref<16x64xf32, #tpu.memory_space<vmem>>, vector<2x32xf32>,
    %c2_82 = arith.constant 2 : index
    %c0_83 = arith.constant 0 : index
    %235 = vector.load %arg4[%c2_82, %c0_83] : memref<16x256xf32, #tpu.memory_space<vmem>>, vector<2x256xf32>
    %cst_84 = arith.constant dense<0.000000e+00> : vector<2x256xf32>
    %236 = tpu.matmul %230, %205, %cst_84 {dimension_numbers = #tpu.dot_dimension_numbers<[1], [0], [0], [1], [0, 0, 1, 1], [], []>} : vector<2x64xf32>, vector<64x256xf32>, vector<2x256xf32> -> vector<2x256xf32>
    %237 = arith.addf %235, %236 : vector<2x256xf32>
    %238 = vector.extract_strided_slice %237 {offsets = [0, 0], sizes = [2, 192], strides = [1, 1]} : vector<2x256xf32> to vector<2x192xf32>
    %239 = arith.negf %238 : vector<2x192xf32>
    %240 = math.exp %239 : vector<2x192xf32>
    %cst_85 = arith.constant 1.000000e+00 : f32
    %241 = vector.broadcast %cst_85 : f32 to vector<2x192xf32>
    %242 = arith.addf %241, %240 : vector<2x192xf32>
    %243 = arith.divf %241, %242 : vector<2x192xf32>
    %244 = vector.extract_strided_slice %237 {offsets = [0, 192], sizes = [2, 64], strides = [1, 1]} : vector<2x256xf32> to vector<2x64xf32>
    %245 = math.tanh %244 : vector<2x64xf32>
    %246 = vector.extract_strided_slice %243 {offsets = [0, 64], sizes = [2, 64], strides = [1, 1]} : vector<2x192xf32> to vector<2x64xf32>
    %247 = arith.mulf %246, %227 : vector<2x64xf32>
    %248 = vector.extract_strided_slice %243 {offsets = [0, 0], sizes = [2, 64], strides = [1, 1]} : vector<2x192xf32> to vector<2x64xf32>
    %249 = arith.mulf %248, %245 : vector<2x64xf32>
    %250 = arith.addf %247, %249 : vector<2x64xf32>
    %251 = vector.extract_strided_slice %243 {offsets = [0, 128], sizes = [2, 64], strides = [1, 1]} : vector<2x192xf32> to vector<2x64xf32>
    %252 = math.tanh %250 : vector<2x64xf32>
    %253 = arith.mulf %251, %252 : vector<2x64xf32>
    %254 = vector.extract_strided_slice %253 {offsets = [0, 0], sizes = [2, 32], strides = [1, 1]} : vector<2x64xf32> to vector<2x32xf32>
    %c2_86 = arith.constant 2 : index
    %c0_87 = arith.constant 0 : index
    %255 = vector.load %arg6[%c2_86, %c0_87] : memref<16x64xf32, #tpu.memory_space<vmem>>, vector<2x32xf32>
    tpu.vector_store %arg6[%c2_86, %c0_87], %254 {strides = array<i32>} : memref<16x64xf32, #tpu.memory_space<vmem>>, vector<2x32xf32>,
    %256 = vector.extract_strided_slice %253 {offsets = [0, 32], sizes = [2, 32], strides = [1, 1]} : vector<2x64xf32> to vector<2x32xf32>
    %c12_88 = arith.constant 12 : index
    %c32_89 = arith.constant 32 : index
    %257 = vector.load %arg6[%c12_88, %c32_89] : memref<16x64xf32, #tpu.memory_space<vmem>>, vector<2x32xf32>
    tpu.vector_store %arg6[%c12_88, %c32_89], %256 {strides = array<i32>} : memref<16x64xf32, #tpu.memory_space<vmem>>, vector<2x32xf32>,
    %c4_90 = arith.constant 4 : index
    %c0_91 = arith.constant 0 : index
    %258 = vector.load %arg4[%c4_90, %c0_91] : memref<16x256xf32, #tpu.memory_space<vmem>>, vector<2x256xf32>
    %cst_92 = arith.constant dense<0.000000e+00> : vector<2x256xf32>
    %259 = tpu.matmul %253, %205, %cst_92 {dimension_numbers = #tpu.dot_dimension_numbers<[1], [0], [0], [1], [0, 0, 1, 1], [], []>} : vector<2x64xf32>, vector<64x256xf32>, vector<2x256xf32> -> vector<2x256xf32>
    %260 = arith.addf %258, %259 : vector<2x256xf32>
    %261 = vector.extract_strided_slice %260 {offsets = [0, 0], sizes = [2, 192], strides = [1, 1]} : vector<2x256xf32> to vector<2x192xf32>
    %262 = arith.negf %261 : vector<2x192xf32>
    %263 = math.exp %262 : vector<2x192xf32>
    %cst_93 = arith.constant 1.000000e+00 : f32
    %264 = vector.broadcast %cst_93 : f32 to vector<2x192xf32>
    %265 = arith.addf %264, %263 : vector<2x192xf32>
    %266 = arith.divf %264, %265 : vector<2x192xf32>
    %267 = vector.extract_strided_slice %260 {offsets = [0, 192], sizes = [2, 64], strides = [1, 1]} : vector<2x256xf32> to vector<2x64xf32>
    %268 = math.tanh %267 : vector<2x64xf32>
    %269 = vector.extract_strided_slice %266 {offsets = [0, 64], sizes = [2, 64], strides = [1, 1]} : vector<2x192xf32> to vector<2x64xf32>
    %270 = arith.mulf %269, %250 : vector<2x64xf32>
    %271 = vector.extract_strided_slice %266 {offsets = [0, 0], sizes = [2, 64], strides = [1, 1]} : vector<2x192xf32> to vector<2x64xf32>
    %272 = arith.mulf %271, %268 : vector<2x64xf32>
    %273 = arith.addf %270, %272 : vector<2x64xf32>
    %274 = vector.extract_strided_slice %266 {offsets = [0, 128], sizes = [2, 64], strides = [1, 1]} : vector<2x192xf32> to vector<2x64xf32>
    %275 = math.tanh %273 : vector<2x64xf32>
    %276 = arith.mulf %274, %275 : vector<2x64xf32>
    %277 = vector.extract_strided_slice %276 {offsets = [0, 0], sizes = [2, 32], strides = [1, 1]} : vector<2x64xf32> to vector<2x32xf32>
    %c4_94 = arith.constant 4 : index
    %c0_95 = arith.constant 0 : index
    %278 = vector.load %arg6[%c4_94, %c0_95] : memref<16x64xf32, #tpu.memory_space<vmem>>, vector<2x32xf32>
    tpu.vector_store %arg6[%c4_94, %c0_95], %277 {strides = array<i32>} : memref<16x64xf32, #tpu.memory_space<vmem>>, vector<2x32xf32>,
    %279 = vector.extract_strided_slice %276 {offsets = [0, 32], sizes = [2, 32], strides = [1, 1]} : vector<2x64xf32> to vector<2x32xf32>
    %c10_96 = arith.constant 10 : index
    %c32_97 = arith.constant 32 : index
    %280 = vector.load %arg6[%c10_96, %c32_97] : memref<16x64xf32, #tpu.memory_space<vmem>>, vector<2x32xf32>
    tpu.vector_store %arg6[%c10_96, %c32_97], %279 {strides = array<i32>} : memref<16x64xf32, #tpu.memory_space<vmem>>, vector<2x32xf32>,
    %c6_98 = arith.constant 6 : index
    %c0_99 = arith.constant 0 : index
    %281 = vector.load %arg4[%c6_98, %c0_99] : memref<16x256xf32, #tpu.memory_space<vmem>>, vector<2x256xf32>
    %cst_100 = arith.constant dense<0.000000e+00> : vector<2x256xf32>
    %282 = tpu.matmul %276, %205, %cst_100 {dimension_numbers = #tpu.dot_dimension_numbers<[1], [0], [0], [1], [0, 0, 1, 1], [], []>} : vector<2x64xf32>, vector<64x256xf32>, vector<2x256xf32> -> vector<2x256xf32>
    %283 = arith.addf %281, %282 : vector<2x256xf32>
    %284 = vector.extract_strided_slice %283 {offsets = [0, 0], sizes = [2, 192], strides = [1, 1]} : vector<2x256xf32> to vector<2x192xf32>
    %285 = arith.negf %284 : vector<2x192xf32>
    %286 = math.exp %285 : vector<2x192xf32>
    %cst_101 = arith.constant 1.000000e+00 : f32
    %287 = vector.broadcast %cst_101 : f32 to vector<2x192xf32>
    %288 = arith.addf %287, %286 : vector<2x192xf32>
    %289 = arith.divf %287, %288 : vector<2x192xf32>
    %290 = vector.extract_strided_slice %283 {offsets = [0, 192], sizes = [2, 64], strides = [1, 1]} : vector<2x256xf32> to vector<2x64xf32>
    %291 = math.tanh %290 : vector<2x64xf32>
    %292 = vector.extract_strided_slice %289 {offsets = [0, 64], sizes = [2, 64], strides = [1, 1]} : vector<2x192xf32> to vector<2x64xf32>
    %293 = arith.mulf %292, %273 : vector<2x64xf32>
    %294 = vector.extract_strided_slice %289 {offsets = [0, 0], sizes = [2, 64], strides = [1, 1]} : vector<2x192xf32> to vector<2x64xf32>
    %295 = arith.mulf %294, %291 : vector<2x64xf32>
    %296 = arith.addf %293, %295 : vector<2x64xf32>
    %297 = vector.extract_strided_slice %289 {offsets = [0, 128], sizes = [2, 64], strides = [1, 1]} : vector<2x192xf32> to vector<2x64xf32>
    %298 = math.tanh %296 : vector<2x64xf32>
    %299 = arith.mulf %297, %298 : vector<2x64xf32>
    %300 = vector.extract_strided_slice %299 {offsets = [0, 0], sizes = [2, 32], strides = [1, 1]} : vector<2x64xf32> to vector<2x32xf32>
    %c6_102 = arith.constant 6 : index
    %c0_103 = arith.constant 0 : index
    %301 = vector.load %arg6[%c6_102, %c0_103] : memref<16x64xf32, #tpu.memory_space<vmem>>, vector<2x32xf32>
    tpu.vector_store %arg6[%c6_102, %c0_103], %300 {strides = array<i32>} : memref<16x64xf32, #tpu.memory_space<vmem>>, vector<2x32xf32>,
    %302 = vector.extract_strided_slice %299 {offsets = [0, 32], sizes = [2, 32], strides = [1, 1]} : vector<2x64xf32> to vector<2x32xf32>
    %c8_104 = arith.constant 8 : index
    %c32_105 = arith.constant 32 : index
    %303 = vector.load %arg6[%c8_104, %c32_105] : memref<16x64xf32, #tpu.memory_space<vmem>>, vector<2x32xf32>
    tpu.vector_store %arg6[%c8_104, %c32_105], %302 {strides = array<i32>} : memref<16x64xf32, #tpu.memory_space<vmem>>, vector<2x32xf32>,
    %c8_106 = arith.constant 8 : index
    %c0_107 = arith.constant 0 : index
    %304 = vector.load %arg4[%c8_106, %c0_107] : memref<16x256xf32, #tpu.memory_space<vmem>>, vector<2x256xf32>
    %cst_108 = arith.constant dense<0.000000e+00> : vector<2x256xf32>
    %305 = tpu.matmul %299, %205, %cst_108 {dimension_numbers = #tpu.dot_dimension_numbers<[1], [0], [0], [1], [0, 0, 1, 1], [], []>} : vector<2x64xf32>, vector<64x256xf32>, vector<2x256xf32> -> vector<2x256xf32>
    %306 = arith.addf %304, %305 : vector<2x256xf32>
    %307 = vector.extract_strided_slice %306 {offsets = [0, 0], sizes = [2, 192], strides = [1, 1]} : vector<2x256xf32> to vector<2x192xf32>
    %308 = arith.negf %307 : vector<2x192xf32>
    %309 = math.exp %308 : vector<2x192xf32>
    %cst_109 = arith.constant 1.000000e+00 : f32
    %310 = vector.broadcast %cst_109 : f32 to vector<2x192xf32>
    %311 = arith.addf %310, %309 : vector<2x192xf32>
    %312 = arith.divf %310, %311 : vector<2x192xf32>
    %313 = vector.extract_strided_slice %306 {offsets = [0, 192], sizes = [2, 64], strides = [1, 1]} : vector<2x256xf32> to vector<2x64xf32>
    %314 = math.tanh %313 : vector<2x64xf32>
    %315 = vector.extract_strided_slice %312 {offsets = [0, 64], sizes = [2, 64], strides = [1, 1]} : vector<2x192xf32> to vector<2x64xf32>
    %316 = arith.mulf %315, %296 : vector<2x64xf32>
    %317 = vector.extract_strided_slice %312 {offsets = [0, 0], sizes = [2, 64], strides = [1, 1]} : vector<2x192xf32> to vector<2x64xf32>
    %318 = arith.mulf %317, %314 : vector<2x64xf32>
    %319 = arith.addf %316, %318 : vector<2x64xf32>
    %320 = vector.extract_strided_slice %312 {offsets = [0, 128], sizes = [2, 64], strides = [1, 1]} : vector<2x192xf32> to vector<2x64xf32>
    %321 = math.tanh %319 : vector<2x64xf32>
    %322 = arith.mulf %320, %321 : vector<2x64xf32>
    %323 = vector.extract_strided_slice %322 {offsets = [0, 0], sizes = [2, 32], strides = [1, 1]} : vector<2x64xf32> to vector<2x32xf32>
    %c8_110 = arith.constant 8 : index
    %c0_111 = arith.constant 0 : index
    %324 = vector.load %arg6[%c8_110, %c0_111] : memref<16x64xf32, #tpu.memory_space<vmem>>, vector<2x32xf32>
    tpu.vector_store %arg6[%c8_110, %c0_111], %323 {strides = array<i32>} : memref<16x64xf32, #tpu.memory_space<vmem>>, vector<2x32xf32>,
    %325 = vector.extract_strided_slice %322 {offsets = [0, 32], sizes = [2, 32], strides = [1, 1]} : vector<2x64xf32> to vector<2x32xf32>
    %c6_112 = arith.constant 6 : index
    %c32_113 = arith.constant 32 : index
    %326 = vector.load %arg6[%c6_112, %c32_113] : memref<16x64xf32, #tpu.memory_space<vmem>>, vector<2x32xf32>
    tpu.vector_store %arg6[%c6_112, %c32_113], %325 {strides = array<i32>} : memref<16x64xf32, #tpu.memory_space<vmem>>, vector<2x32xf32>,
    %c10_114 = arith.constant 10 : index
    %c0_115 = arith.constant 0 : index
    %327 = vector.load %arg4[%c10_114, %c0_115] : memref<16x256xf32, #tpu.memory_space<vmem>>, vector<2x256xf32>
    %cst_116 = arith.constant dense<0.000000e+00> : vector<2x256xf32>
    %328 = tpu.matmul %322, %205, %cst_116 {dimension_numbers = #tpu.dot_dimension_numbers<[1], [0], [0], [1], [0, 0, 1, 1], [], []>} : vector<2x64xf32>, vector<64x256xf32>, vector<2x256xf32> -> vector<2x256xf32>
    %329 = arith.addf %327, %328 : vector<2x256xf32>
    %330 = vector.extract_strided_slice %329 {offsets = [0, 0], sizes = [2, 192], strides = [1, 1]} : vector<2x256xf32> to vector<2x192xf32>
    %331 = arith.negf %330 : vector<2x192xf32>
    %332 = math.exp %331 : vector<2x192xf32>
    %cst_117 = arith.constant 1.000000e+00 : f32
    %333 = vector.broadcast %cst_117 : f32 to vector<2x192xf32>
    %334 = arith.addf %333, %332 : vector<2x192xf32>
    %335 = arith.divf %333, %334 : vector<2x192xf32>
    %336 = vector.extract_strided_slice %329 {offsets = [0, 192], sizes = [2, 64], strides = [1, 1]} : vector<2x256xf32> to vector<2x64xf32>
    %337 = math.tanh %336 : vector<2x64xf32>
    %338 = vector.extract_strided_slice %335 {offsets = [0, 64], sizes = [2, 64], strides = [1, 1]} : vector<2x192xf32> to vector<2x64xf32>
    %339 = arith.mulf %338, %319 : vector<2x64xf32>
    %340 = vector.extract_strided_slice %335 {offsets = [0, 0], sizes = [2, 64], strides = [1, 1]} : vector<2x192xf32> to vector<2x64xf32>
    %341 = arith.mulf %340, %337 : vector<2x64xf32>
    %342 = arith.addf %339, %341 : vector<2x64xf32>
    %343 = vector.extract_strided_slice %335 {offsets = [0, 128], sizes = [2, 64], strides = [1, 1]} : vector<2x192xf32> to vector<2x64xf32>
    %344 = math.tanh %342 : vector<2x64xf32>
    %345 = arith.mulf %343, %344 : vector<2x64xf32>
    %346 = vector.extract_strided_slice %345 {offsets = [0, 0], sizes = [2, 32], strides = [1, 1]} : vector<2x64xf32> to vector<2x32xf32>
    %c10_118 = arith.constant 10 : index
    %c0_119 = arith.constant 0 : index
    %347 = vector.load %arg6[%c10_118, %c0_119] : memref<16x64xf32, #tpu.memory_space<vmem>>, vector<2x32xf32>
    tpu.vector_store %arg6[%c10_118, %c0_119], %346 {strides = array<i32>} : memref<16x64xf32, #tpu.memory_space<vmem>>, vector<2x32xf32>,
    %348 = vector.extract_strided_slice %345 {offsets = [0, 32], sizes = [2, 32], strides = [1, 1]} : vector<2x64xf32> to vector<2x32xf32>
    %c4_120 = arith.constant 4 : index
    %c32_121 = arith.constant 32 : index
    %349 = vector.load %arg6[%c4_120, %c32_121] : memref<16x64xf32, #tpu.memory_space<vmem>>, vector<2x32xf32>
    tpu.vector_store %arg6[%c4_120, %c32_121], %348 {strides = array<i32>} : memref<16x64xf32, #tpu.memory_space<vmem>>, vector<2x32xf32>,
    %c12_122 = arith.constant 12 : index
    %c0_123 = arith.constant 0 : index
    %350 = vector.load %arg4[%c12_122, %c0_123] : memref<16x256xf32, #tpu.memory_space<vmem>>, vector<2x256xf32>
    %cst_124 = arith.constant dense<0.000000e+00> : vector<2x256xf32>
    %351 = tpu.matmul %345, %205, %cst_124 {dimension_numbers = #tpu.dot_dimension_numbers<[1], [0], [0], [1], [0, 0, 1, 1], [], []>} : vector<2x64xf32>, vector<64x256xf32>, vector<2x256xf32> -> vector<2x256xf32>
    %352 = arith.addf %350, %351 : vector<2x256xf32>
    %353 = vector.extract_strided_slice %352 {offsets = [0, 0], sizes = [2, 192], strides = [1, 1]} : vector<2x256xf32> to vector<2x192xf32>
    %354 = arith.negf %353 : vector<2x192xf32>
    %355 = math.exp %354 : vector<2x192xf32>
    %cst_125 = arith.constant 1.000000e+00 : f32
    %356 = vector.broadcast %cst_125 : f32 to vector<2x192xf32>
    %357 = arith.addf %356, %355 : vector<2x192xf32>
    %358 = arith.divf %356, %357 : vector<2x192xf32>
    %359 = vector.extract_strided_slice %352 {offsets = [0, 192], sizes = [2, 64], strides = [1, 1]} : vector<2x256xf32> to vector<2x64xf32>
    %360 = math.tanh %359 : vector<2x64xf32>
    %361 = vector.extract_strided_slice %358 {offsets = [0, 64], sizes = [2, 64], strides = [1, 1]} : vector<2x192xf32> to vector<2x64xf32>
    %362 = arith.mulf %361, %342 : vector<2x64xf32>
    %363 = vector.extract_strided_slice %358 {offsets = [0, 0], sizes = [2, 64], strides = [1, 1]} : vector<2x192xf32> to vector<2x64xf32>
    %364 = arith.mulf %363, %360 : vector<2x64xf32>
    %365 = arith.addf %362, %364 : vector<2x64xf32>
    %366 = vector.extract_strided_slice %358 {offsets = [0, 128], sizes = [2, 64], strides = [1, 1]} : vector<2x192xf32> to vector<2x64xf32>
    %367 = math.tanh %365 : vector<2x64xf32>
    %368 = arith.mulf %366, %367 : vector<2x64xf32>
    %369 = vector.extract_strided_slice %368 {offsets = [0, 0], sizes = [2, 32], strides = [1, 1]} : vector<2x64xf32> to vector<2x32xf32>
    %c12_126 = arith.constant 12 : index
    %c0_127 = arith.constant 0 : index
    %370 = vector.load %arg6[%c12_126, %c0_127] : memref<16x64xf32, #tpu.memory_space<vmem>>, vector<2x32xf32>
    tpu.vector_store %arg6[%c12_126, %c0_127], %369 {strides = array<i32>} : memref<16x64xf32, #tpu.memory_space<vmem>>, vector<2x32xf32>,
    %371 = vector.extract_strided_slice %368 {offsets = [0, 32], sizes = [2, 32], strides = [1, 1]} : vector<2x64xf32> to vector<2x32xf32>
    %c2_128 = arith.constant 2 : index
    %c32_129 = arith.constant 32 : index
    %372 = vector.load %arg6[%c2_128, %c32_129] : memref<16x64xf32, #tpu.memory_space<vmem>>, vector<2x32xf32>
    tpu.vector_store %arg6[%c2_128, %c32_129], %371 {strides = array<i32>} : memref<16x64xf32, #tpu.memory_space<vmem>>, vector<2x32xf32>,
    %c14_130 = arith.constant 14 : index
    %c0_131 = arith.constant 0 : index
    %373 = vector.load %arg4[%c14_130, %c0_131] : memref<16x256xf32, #tpu.memory_space<vmem>>, vector<2x256xf32>
    %cst_132 = arith.constant dense<0.000000e+00> : vector<2x256xf32>
    %374 = tpu.matmul %368, %205, %cst_132 {dimension_numbers = #tpu.dot_dimension_numbers<[1], [0], [0], [1], [0, 0, 1, 1], [], []>} : vector<2x64xf32>, vector<64x256xf32>, vector<2x256xf32> -> vector<2x256xf32>
    %375 = arith.addf %373, %374 : vector<2x256xf32>
    %376 = vector.extract_strided_slice %375 {offsets = [0, 0], sizes = [2, 192], strides = [1, 1]} : vector<2x256xf32> to vector<2x192xf32>
    %377 = arith.negf %376 : vector<2x192xf32>
    %378 = math.exp %377 : vector<2x192xf32>
    %cst_133 = arith.constant 1.000000e+00 : f32
    %379 = vector.broadcast %cst_133 : f32 to vector<2x192xf32>
    %380 = arith.addf %379, %378 : vector<2x192xf32>
    %381 = arith.divf %379, %380 : vector<2x192xf32>
    %382 = vector.extract_strided_slice %375 {offsets = [0, 192], sizes = [2, 64], strides = [1, 1]} : vector<2x256xf32> to vector<2x64xf32>
    %383 = math.tanh %382 : vector<2x64xf32>
    %384 = vector.extract_strided_slice %381 {offsets = [0, 64], sizes = [2, 64], strides = [1, 1]} : vector<2x192xf32> to vector<2x64xf32>
    %385 = arith.mulf %384, %365 : vector<2x64xf32>
    %386 = vector.extract_strided_slice %381 {offsets = [0, 0], sizes = [2, 64], strides = [1, 1]} : vector<2x192xf32> to vector<2x64xf32>
    %387 = arith.mulf %386, %383 : vector<2x64xf32>
    %388 = arith.addf %385, %387 : vector<2x64xf32>
    %389 = vector.extract_strided_slice %381 {offsets = [0, 128], sizes = [2, 64], strides = [1, 1]} : vector<2x192xf32> to vector<2x64xf32>
    %390 = math.tanh %388 : vector<2x64xf32>
    %391 = arith.mulf %389, %390 : vector<2x64xf32>
    %392 = vector.extract_strided_slice %391 {offsets = [0, 0], sizes = [2, 32], strides = [1, 1]} : vector<2x64xf32> to vector<2x32xf32>
    %c14_134 = arith.constant 14 : index
    %c0_135 = arith.constant 0 : index
    %393 = vector.load %arg6[%c14_134, %c0_135] : memref<16x64xf32, #tpu.memory_space<vmem>>, vector<2x32xf32>
    tpu.vector_store %arg6[%c14_134, %c0_135], %392 {strides = array<i32>} : memref<16x64xf32, #tpu.memory_space<vmem>>, vector<2x32xf32>,
    %394 = vector.extract_strided_slice %391 {offsets = [0, 32], sizes = [2, 32], strides = [1, 1]} : vector<2x64xf32> to vector<2x32xf32>
    %c0_136 = arith.constant 0 : index
    %c32_137 = arith.constant 32 : index
    %395 = vector.load %arg6[%c0_136, %c32_137] : memref<16x64xf32, #tpu.memory_space<vmem>>, vector<2x32xf32>
    tpu.vector_store %arg6[%c0_136, %c32_137], %394 {strides = array<i32>} : memref<16x64xf32, #tpu.memory_space<vmem>>, vector<2x32xf32>,
    %c0_138 = arith.constant 0 : index
    %c0_139 = arith.constant 0 : index
    %396 = vector.load %arg6[%c0_138, %c0_139] : memref<16x64xf32, #tpu.memory_space<vmem>>, vector<16x64xf32>
    %c0_140 = arith.constant 0 : index
    %c0_141 = arith.constant 0 : index
    %397 = vector.load %arg2[%c0_140, %c0_141] : memref<168x128xf32, #tpu.memory_space<vmem>>, vector<128x64xf32>
    %c0_142 = arith.constant 0 : index
    %c64_143 = arith.constant 64 : index
    %398 = vector.load %arg2[%c0_142, %c64_143] : memref<168x128xf32, #tpu.memory_space<vmem>>, vector<128x16xf32>
    %cst_144 = arith.constant dense<0.000000e+00> : vector<128x16xf32>
    %399 = tpu.matmul %397, %396, %cst_144 {dimension_numbers = #tpu.dot_dimension_numbers<[1], [1], [0], [0], [0, 0, 1, 0], [], []>} : vector<128x64xf32>, vector<16x64xf32>, vector<128x16xf32> -> vector<128x16xf32>
    %400 = arith.addf %399, %398 : vector<128x16xf32>
    %c128_145 = arith.constant 128 : index
    %c0_146 = arith.constant 0 : index
    %401 = vector.load %arg2[%c128_145, %c0_146] : memref<168x128xf32, #tpu.memory_space<vmem>>, vector<16x128xf32>
    %c144 = arith.constant 144 : index
    %c0_147 = arith.constant 0 : index
    %402 = vector.load %arg2[%c144, %c0_147] : memref<168x128xf32, #tpu.memory_space<vmem>>, vector<16x128xf32>
    %403 = vector.extract_strided_slice %400 {offsets = [0, 0], sizes = [64, 16], strides = [1, 1]} : vector<128x16xf32> to vector<64x16xf32>
    %cst_148 = arith.constant dense<0.000000e+00> : vector<64x128xf32>
    %404 = tpu.matmul %403, %401, %cst_148 {dimension_numbers = #tpu.dot_dimension_numbers<[1], [0], [0], [1], [0, 0, 1, 1], [], []>} : vector<64x16xf32>, vector<16x128xf32>, vector<64x128xf32> -> vector<64x128xf32>
    %405 = vector.extract_strided_slice %400 {offsets = [64, 0], sizes = [64, 16], strides = [1, 1]} : vector<128x16xf32> to vector<64x16xf32>
    %cst_149 = arith.constant dense<0.000000e+00> : vector<64x128xf32>
    %406 = tpu.matmul %405, %402, %cst_149 {dimension_numbers = #tpu.dot_dimension_numbers<[1], [0], [0], [1], [0, 0, 1, 1], [], []>} : vector<64x16xf32>, vector<16x128xf32>, vector<64x128xf32> -> vector<64x128xf32>
    %407 = arith.addf %404, %406 : vector<64x128xf32>
    %cst_150 = arith.constant 0.000000e+00 : f32
    %408 = vector.broadcast %cst_150 : f32 to vector<64x128xf32>
    %409 = arith.maximumf %407, %408 : vector<64x128xf32>
    %c160 = arith.constant 160 : index
    %c0_151 = arith.constant 0 : index
    %410 = vector.load %arg2[%c160, %c0_151] : memref<168x128xf32, #tpu.memory_space<vmem>>, vector<5x64xf32>
    %cst_152 = arith.constant dense<0.000000e+00> : vector<5x128xf32>
    %411 = tpu.matmul %410, %409, %cst_152 {dimension_numbers = #tpu.dot_dimension_numbers<[1], [0], [0], [1], [0, 0, 1, 1], [], []>} : vector<5x64xf32>, vector<64x128xf32>, vector<5x128xf32> -> vector<5x128xf32>
    %c0_153 = arith.constant 0 : index
    %c0_154 = arith.constant 0 : index
    %412 = vector.load %arg3[%c0_153, %c0_154] : memref<5x128xf32, #tpu.memory_space<vmem>>, vector<5x128xf32>
    tpu.vector_store %arg3[%c0_153, %c0_154], %411 {strides = array<i32>} : memref<5x128xf32, #tpu.memory_space<vmem>>, vector<5x128xf32>,
    return
  }
}

</mosaic_0001>

<llo_original>
// kernel: lstm_mhs_forward.1
$region0: #{lstm_mhs_forward.1}
  #allocation0 [shape = 'u32[]', space=smem, size = 0x4, offset = 0x4, fixed_abs, tag = 'smem constant byte address 0x4 - core index']
  #allocation1 [shape = 'u32[144,128]{1,0:T(1,128)}', space=vmem, size = 0x12000, scoped, tag = 'internal scratch']
  #allocation2 [shape = 'f32[16,256]{1,0:T(8,128)}', space=vmem, size = 0x4000, scoped, tag = 'scratch operand']
  #allocation3 [shape = 'f32[16,128]{1,0:T(8,128)}', space=vmem, size = 0x2000, scoped, tag = 'scratch operand']
  #allocation4 [shape = 'f32[16,64]{1,0:T(8,128)}', space=vmem, size = 0x2000, scoped, tag = 'scratch operand']
  %s0 = inlined_call_operand.vmem [shape: f32[16,128], index: 0, kind: input, shape index: {}]
  %s1 = inlined_call_operand.hbm [shape: f32[392,256], index: 1, kind: input, shape index: {}]
  %s2 = inlined_call_operand.vmem [shape: f32[168,128], index: 2, kind: input, shape index: {}]
  %s3 = inlined_call_operand.vmem [shape: f32[5,128], index: 3, kind: output, shape index: {}]
  %s4 = sld [smem:[#allocation0]]
  $region26: #{lstm_mhs_forward.1} parent=0
    _
  %s6 = ssub.s32 1, %s4
  %s7 = scalar_select 0, %s6, %s4
  $region1: #{lstm_mhs_forward.1} parent=0
    #allocation5 [shape = 'u8[401408]{0}', space=vmem, size = 0x62000, scoped, tag = 'input window, operand 1, single buffered']
    #allocation6 [shape = 's32[1]{0}', space=sflag, size = 0x4, scoped, tag = 'scoped memory for lstm_mhs_forward.1']
    %8 = vsyncpa [#allocation6], 0
    // Predicated region
    $region2: #{lstm_mhs_forward.1} parent=1 // pred_check
      _
    $region3: #{lstm_mhs_forward.1} parent=1 // pred_check_branch
      %10 = sbr.rel (0) target = $region5
    $region4: #{lstm_mhs_forward.1} parent=1 // pred_region
      _
    $region5: #{lstm_mhs_forward.1} parent=1 // pred_fallthru
      _
    // Predicated region
    $region6: #{lstm_mhs_forward.1} parent=1 // pred_check
      _
    $region7: #{lstm_mhs_forward.1} parent=1 // pred_check_branch
      %12 = sbr.rel (0) target = $region9
    $region8: #{lstm_mhs_forward.1} parent=1 // pred_region
      %s14 = ssub.s32 12544, 12544
      %15 = vsyncadd [#allocation6], %s14
      %s16 = sshll.u32 [#allocation5], 4
      %s17 = int_to_ptr.vmem [resolvable:$true] %s16
      %22 = dma.hbm_to_vmem [thread:$0]  %s1, 12544, %s17, [#allocation6], 256, 256, 16
    $region9: #{lstm_mhs_forward.1} parent=1 // pred_fallthru
      _
    // Predicated region
    $region10: #{lstm_mhs_forward.1} parent=1 // pred_check
      _
    $region11: #{lstm_mhs_forward.1} parent=1 // pred_check_branch
      %24 = sbr.rel (0) target = $region13
    $region12: #{lstm_mhs_forward.1} parent=1 // pred_region
      _
    $region13: #{lstm_mhs_forward.1} parent=1 // pred_fallthru
      _
    // Predicated region
    $region14: #{lstm_mhs_forward.1} parent=1 // pred_check
      _
    $region15: #{lstm_mhs_forward.1} parent=1 // pred_check_branch
      %26 = sbr.rel (0) target = $region17
    $region16: #{lstm_mhs_forward.1} parent=1 // pred_region
      %27 = dma.done [#allocation6], 12544
    $region17: #{lstm_mhs_forward.1} parent=1 // pred_fallthru
      _
    %v28 = vld [vmem:[%s0] sm:$0xff]
    %v29 = vld [vmem:[%s0 + $0x8] sm:$0xff]
    %v30 = vld [vmem:[#allocation5] sm:$0xff]
    %v31 = vld [vmem:[#allocation5 + $0x8] sm:$0xff]
    %v32 = vld [vmem:[#allocation5 + $0x10] sm:$0xff]
    %v33 = vld [vmem:[#allocation5 + $0x18] sm:$0xff]
    %v34 = vld [vmem:[#allocation5 + $0x20] sm:$0xff]
    %v35 = vld [vmem:[#allocation5 + $0x28] sm:$0xff]
    %v36 = vld [vmem:[#allocation5 + $0x30] sm:$0xff]
    %v37 = vld [vmem:[#allocation5 + $0x38] sm:$0xff]
    %v38 = vld [vmem:[#allocation5 + $0x40] sm:$0xff]
    %v39 = vld [vmem:[#allocation5 + $0x48] sm:$0xff]
    %v40 = vld [vmem:[#allocation5 + $0x50] sm:$0xff]
    %v41 = vld [vmem:[#allocation5 + $0x58] sm:$0xff]
    %v42 = vld [vmem:[#allocation5 + $0x60] sm:$0xff]
    %v43 = vld [vmem:[#allocation5 + $0x68] sm:$0xff]
    %v44 = vld [vmem:[#allocation5 + $0x70] sm:$0xff]
    %v45 = vld [vmem:[#allocation5 + $0x78] sm:$0xff]
    %v46 = vld [vmem:[#allocation5 + $0x80] sm:$0xff]
    %v47 = vld [vmem:[#allocation5 + $0x88] sm:$0xff]
    %v48 = vld [vmem:[#allocation5 + $0x90] sm:$0xff]
    %v49 = vld [vmem:[#allocation5 + $0x98] sm:$0xff]
    %v50 = vld [vmem:[#allocation5 + $0xa0] sm:$0xff]
    %v51 = vld [vmem:[#allocation5 + $0xa8] sm:$0xff]
    %v52 = vld [vmem:[#allocation5 + $0xb0] sm:$0xff]
    %v53 = vld [vmem:[#allocation5 + $0xb8] sm:$0xff]
    %v54 = vld [vmem:[#allocation5 + $0xc0] sm:$0xff]
    %v55 = vld [vmem:[#allocation5 + $0xc8] sm:$0xff]
    %v56 = vld [vmem:[#allocation5 + $0xd0] sm:$0xff]
    %v57 = vld [vmem:[#allocation5 + $0xd8] sm:$0xff]
    %v58 = vld [vmem:[#allocation5 + $0xe0] sm:$0xff]
    %v59 = vld [vmem:[#allocation5 + $0xe8] sm:$0xff]
    %v60 = vld [vmem:[#allocation5 + $0xf0] sm:$0xff]
    %v61 = vld [vmem:[#allocation5 + $0xf8] sm:$0xff]
    %s62 = scalar_lea.vmem [#allocation5], 768
    %v63 = vld [vmem:[%s62] ss:$8 sm:$0x3]
    %v64 = vld [vmem:[#allocation5 + $0x100] sm:$0xff]
    %v65 = vld [vmem:[#allocation5 + $0x108] sm:$0xff]
    %v66 = vld [vmem:[#allocation5 + $0x110] sm:$0xff]
    %v67 = vld [vmem:[#allocation5 + $0x118] sm:$0xff]
    %v68 = vld [vmem:[#allocation5 + $0x120] sm:$0xff]
    %v69 = vld [vmem:[#allocation5 + $0x128] sm:$0xff]
    %v70 = vld [vmem:[#allocation5 + $0x130] sm:$0xff]
    %v71 = vld [vmem:[#allocation5 + $0x138] sm:$0xff]
    %v72 = vld [vmem:[#allocation5 + $0x140] sm:$0xff]
    %v73 = vld [vmem:[#allocation5 + $0x148] sm:$0xff]
    %v74 = vld [vmem:[#allocation5 + $0x150] sm:$0xff]
    %v75 = vld [vmem:[#allocation5 + $0x158] sm:$0xff]
    %v76 = vld [vmem:[#allocation5 + $0x160] sm:$0xff]
    %v77 = vld [vmem:[#allocation5 + $0x168] sm:$0xff]
    %v78 = vld [vmem:[#allocation5 + $0x170] sm:$0xff]
    %v79 = vld [vmem:[#allocation5 + $0x178] sm:$0xff]
    %v81 = vlaneseq
    %v82 = vshrl.u32 %v81, 7
    %v83 = vsub.s32 0, %v82
    %v84 = vrot.slane %v63, %v83
    %v85 = vlaneseq
    %v86 = vshrl.u32 %v85, 7
    %v87 = vsub.s32 1, %v86
    %v88 = vrot.slane %v63, %v87
    %91 = vmatprep.subr.mxu0 %v31
    %92 = vmatpush1.msra.mxu0 %v30
    %93 = vmatprep.subr.mxu0 %v33
    %94 = vmatpush1.msra.mxu0 %v32
    %95 = vmatprep.subr.mxu0 %v35
    %96 = vmatpush1.msra.mxu0 %v34
    %97 = vmatprep.subr.mxu0 %v37
    %98 = vmatpush1.msra.mxu0 %v36
    %99 = vmatprep.subr.mxu0 %v39
    %100 = vmatpush1.msra.mxu0 %v38
    %101 = vmatprep.subr.mxu0 %v41
    %102 = vmatpush1.msra.mxu0 %v40
    %103 = vmatprep.subr.mxu0 %v43
    %104 = vmatpush1.msra.mxu0 %v42
    %105 = vmatprep.subr.mxu0 %v45
    %106 = vmatpush1.msra.mxu0 %v44
    %107 = vmatprep.subr.mxu0 %v47
    %108 = vmatpush1.msra.mxu0 %v46
    %109 = vmatprep.subr.mxu0 %v49
    %110 = vmatpush1.msra.mxu0 %v48
    %111 = vmatprep.subr.mxu0 %v51
    %112 = vmatpush1.msra.mxu0 %v50
    %113 = vmatprep.subr.mxu0 %v53
    %114 = vmatpush1.msra.mxu0 %v52
    %115 = vmatprep.subr.mxu0 %v55
    %116 = vmatpush1.msra.mxu0 %v54
    %117 = vmatprep.subr.mxu0 %v57
    %118 = vmatpush1.msra.mxu0 %v56
    %119 = vmatprep.subr.mxu0 %v59
    %120 = vmatpush1.msra.mxu0 %v58
    %121 = vmatprep.subr.mxu0 %v61
    %122 = vmatpush1.msra.mxu0 %v60
    %123 = vmatprep.subr.mxu0 0.0
    %124 = vmatpush1.msra.mxu0 0.0
    %125 = vmatprep.subr.mxu0 0.0
    %126 = vmatpush1.msra.mxu0 0.0
    %127 = vmatprep.subr.mxu0 0.0
    %128 = vmatpush1.msra.mxu0 0.0
    %129 = vmatprep.subr.mxu0 0.0
    %130 = vmatpush1.msra.mxu0 0.0
    %131 = vmatprep.subr.mxu0 0.0
    %132 = vmatpush1.msra.mxu0 0.0
    %133 = vmatprep.subr.mxu0 0.0
    %134 = vmatpush1.msra.mxu0 0.0
    %135 = vmatprep.subr.mxu0 0.0
    %136 = vmatpush1.msra.mxu0 0.0
    %137 = vmatprep.subr.mxu0 0.0
    %138 = vmatpush1.msra.mxu0 0.0
    %139 = vmatprep.subr.mxu0 0.0
    %140 = vmatpush1.msra.mxu0 0.0
    %141 = vmatprep.subr.mxu0 0.0
    %142 = vmatpush1.msra.mxu0 0.0
    %143 = vmatprep.subr.mxu0 0.0
    %144 = vmatpush1.msra.mxu0 0.0
    %145 = vmatprep.subr.mxu0 0.0
    %146 = vmatpush1.msra.mxu0 0.0
    %147 = vmatprep.subr.mxu0 0.0
    %148 = vmatpush1.msra.mxu0 0.0
    %149 = vmatprep.subr.mxu0 0.0
    %150 = vmatpush1.msra.mxu0 0.0
    %151 = vmatprep.subr.mxu0 0.0
    %152 = vmatpush1.msra.mxu0 0.0
    %153 = vmatprep.subr.mxu0 0.0
    %154 = vmatpush1.msra.mxu0 0.0
    %155 = vmatprep.mubr.f32.mxu0 0.0
    %156 = vmatmul.mubr.f32.gmra.mrb[0].mxu0 %v28
    %v157 = vpop.f32.mrb[0].mxu0
    %v158 = vadd.f32 %v84, %v157
    %v159 = vpop.f32.mrb[0].mxu0
    %v160 = vadd.f32 %v88, %v159
    %161 = vmatprep.mubr.f32.mxu0 0.0
    %162 = vmatmul.mubr.f32.gmra.mrb[0].mxu0 %v29
    %v163 = vpop.f32.mrb[0].mxu0
    %v164 = vadd.f32 %v84, %v163
    %v165 = vpop.f32.mrb[0].mxu0
    %v166 = vadd.f32 %v88, %v165
    %167 = vdwg.mxu0
    %168 = vst [vmem:[#allocation2] sm:$0xff] %v158
    %169 = vst [vmem:[#allocation2 + $0x8] sm:$0xff] %v160
    %170 = vst [vmem:[#allocation2 + $0x10] sm:$0xff] %v164
    %171 = vst [vmem:[#allocation2 + $0x18] sm:$0xff] %v166
    %v172 = vld [vmem:[#allocation2] sm:$0x3]
    %v173 = vld [vmem:[#allocation2 + $0x8] sm:$0x3]
    %vm174 = vcmask 523264
    %v176 = vsel %vm174, 0.0, 0
    %178 = vmatprep.subr.mxu0 %v65
    %179 = vmatpush1.msra.mxu0 %v64
    %180 = vmatprep.subr.mxu0 %v67
    %181 = vmatpush1.msra.mxu0 %v66
    %182 = vmatprep.subr.mxu0 %v69
    %183 = vmatpush1.msra.mxu0 %v68
    %184 = vmatprep.subr.mxu0 %v71
    %185 = vmatpush1.msra.mxu0 %v70
    %186 = vmatprep.subr.mxu0 %v73
    %187 = vmatpush1.msra.mxu0 %v72
    %188 = vmatprep.subr.mxu0 %v75
    %189 = vmatpush1.msra.mxu0 %v74
    %190 = vmatprep.subr.mxu0 %v77
    %191 = vmatpush1.msra.mxu0 %v76
    %192 = vmatprep.subr.mxu0 %v79
    %193 = vmatpush1.msra.mxu0 %v78
    %194 = vmatprep.subr.mxu0 0.0
    %195 = vmatpush1.msra.mxu0 0.0
    %196 = vmatprep.subr.mxu0 0.0
    %197 = vmatpush1.msra.mxu0 0.0
    %198 = vmatprep.subr.mxu0 0.0
    %199 = vmatpush1.msra.mxu0 0.0
    %200 = vmatprep.subr.mxu0 0.0
    %201 = vmatpush1.msra.mxu0 0.0
    %202 = vmatprep.subr.mxu0 0.0
    %203 = vmatpush1.msra.mxu0 0.0
    %204 = vmatprep.subr.mxu0 0.0
    %205 = vmatpush1.msra.mxu0 0.0
    %206 = vmatprep.subr.mxu0 0.0
    %207 = vmatpush1.msra.mxu0 0.0
    %208 = vmatprep.subr.mxu0 0.0
    %209 = vmatpush1.msra.mxu0 0.0
    %210 = vmatprep.subr.mxu0 0.0
    %211 = vmatpush1.msra.mxu0 0.0
    %212 = vmatprep.subr.mxu0 0.0
    %213 = vmatpush1.msra.mxu0 0.0
    %214 = vmatprep.subr.mxu0 0.0
    %215 = vmatpush1.msra.mxu0 0.0
    %216 = vmatprep.subr.mxu0 0.0
    %217 = vmatpush1.msra.mxu0 0.0
    %218 = vmatprep.subr.mxu0 0.0
    %219 = vmatpush1.msra.mxu0 0.0
    %220 = vmatprep.subr.mxu0 0.0
    %221 = vmatpush1.msra.mxu0 0.0
    %222 = vmatprep.subr.mxu0 0.0
    %223 = vmatpush1.msra.mxu0 0.0
    %224 = vmatprep.subr.mxu0 0.0
    %225 = vmatpush1.msra.mxu0 0.0
    %226 = vmatprep.subr.mxu0 0.0
    %227 = vmatpush1.msra.mxu0 0.0
    %228 = vmatprep.subr.mxu0 0.0
    %229 = vmatpush1.msra.mxu0 0.0
    %230 = vmatprep.subr.mxu0 0.0
    %231 = vmatpush1.msra.mxu0 0.0
    %232 = vmatprep.subr.mxu0 0.0
    %233 = vmatpush1.msra.mxu0 0.0
    %234 = vmatprep.subr.mxu0 0.0
    %235 = vmatpush1.msra.mxu0 0.0
    %236 = vmatprep.subr.mxu0 0.0
    %237 = vmatpush1.msra.mxu0 0.0
    %238 = vmatprep.subr.mxu0 0.0
    %239 = vmatpush1.msra.mxu0 0.0
    %240 = vmatprep.subr.mxu0 0.0
    %241 = vmatpush1.msra.mxu0 0.0
    %242 = vmatprep.mubr.f32.mxu0 0.0
    %243 = vmatmul.mubr.f32.gmra.mrb[0].mxu0 %v176
    %v244 = vpop.f32.mrb[0].mxu0
    %v245 = vadd.f32 0.0, %v244
    %v246 = vpop.f32.mrb[0].mxu0
    %v247 = vadd.f32 0.0, %v246
    %248 = vdwg.mxu0
    %v249 = vadd.f32 %v172, %v245
    %v250 = vadd.f32 %v173, %v247
    %v251 = vxor.u32 %v249, 2147483648
    %v252 = vxor.u32 %v250, 2147483648
    %v253 = vmul.f32 %v251, 1.442695
    %v254 = vpow.pop %v253
    %v255 = vmul.f32 %v252, 1.442695
    %v256 = vpow.pop %v255
    %v257 = vadd.f32 %v254, 1.0
    %v258 = vadd.f32 %v256, 1.0
    %v259 = vrcp.pop %v257
    %v260 = vmul.f32 1.0, %v259
    %v261 = vrcp.pop %v258
    %v262 = vmul.f32 1.0, %v261
    %v263 = vtanh.pop %v250
    %v264 = vmul.f32 %v260, 0.0
    %266 = vrot.lane.b32.xlu0 %v263, 64
    %v267 = vpop.permute.xlu0 %266
    %v269 = vmul.f32 %v260, %v267
    %271 = vrot.lane.b32.xlu0 %v269, 64
    %v272 = vpop.permute.xlu0 %271
    %v274 = vadd.f32 %v264, %v272
    %v275 = vtanh.pop %v274
    %277 = vrot.lane.b32.xlu0 %v275, 64
    %v278 = vpop.permute.xlu0 %277
    %v280 = vmul.f32 %v262, %v278
    %vm281 = vcmask 517120
    %282 = vst.msk [vmem:[#allocation3] sm:$0x3] %vm281, %v280
    %284 = vrot.lane.b32.xlu0 %v280, 96
    %v285 = vpop.permute.xlu0 %284
    %287 = vrot.lane.b32.xlu0 %v280, 32
    %v288 = vpop.permute.xlu0 %287
    %vm290 = vcmask 261120
    %v291 = vsel %vm290, %v285, %v288
    %293 = vrot.lane.b32.xlu0 %v291, 64
    %v294 = vpop.permute.xlu0 %293
    %vm296 = vcmask 1041920
    %297 = vst.msk [vmem:[#allocation3 + $0xe] sm:$0x3] %vm296, %v294
    %v298 = vld [vmem:[#allocation2] sm:$0xc]
    %v299 = vld [vmem:[#allocation2 + $0x8] sm:$0xc]
    %v300 = vsel %vm174, %v280, 0
    %302 = vmatprep.subr.mxu0 %v65
    %303 = vmatpush1.msra.mxu0 %v64
    %304 = vmatprep.subr.mxu0 %v67
    %305 = vmatpush1.msra.mxu0 %v66
    %306 = vmatprep.subr.mxu0 %v69
    %307 = vmatpush1.msra.mxu0 %v68
    %308 = vmatprep.subr.mxu0 %v71
    %309 = vmatpush1.msra.mxu0 %v70
    %310 = vmatprep.subr.mxu0 %v73
    %311 = vmatpush1.msra.mxu0 %v72
    %312 = vmatprep.subr.mxu0 %v75
    %313 = vmatpush1.msra.mxu0 %v74
    %314 = vmatprep.subr.mxu0 %v77
    %315 = vmatpush1.msra.mxu0 %v76
    %316 = vmatprep.subr.mxu0 %v79
    %317 = vmatpush1.msra.mxu0 %v78
    %318 = vmatprep.subr.mxu0 0.0
    %319 = vmatpush1.msra.mxu0 0.0
    %320 = vmatprep.subr.mxu0 0.0
    %321 = vmatpush1.msra.mxu0 0.0
    %322 = vmatprep.subr.mxu0 0.0
    %323 = vmatpush1.msra.mxu0 0.0
    %324 = vmatprep.subr.mxu0 0.0
    %325 = vmatpush1.msra.mxu0 0.0
    %326 = vmatprep.subr.mxu0 0.0
    %327 = vmatpush1.msra.mxu0 0.0
    %328 = vmatprep.subr.mxu0 0.0
    %329 = vmatpush1.msra.mxu0 0.0
    %330 = vmatprep.subr.mxu0 0.0
    %331 = vmatpush1.msra.mxu0 0.0
    %332 = vmatprep.subr.mxu0 0.0
    %333 = vmatpush1.msra.mxu0 0.0
    %334 = vmatprep.subr.mxu0 0.0
    %335 = vmatpush1.msra.mxu0 0.0
    %336 = vmatprep.subr.mxu0 0.0
    %337 = vmatpush1.msra.mxu0 0.0
    %338 = vmatprep.subr.mxu0 0.0
    %339 = vmatpush1.msra.mxu0 0.0
    %340 = vmatprep.subr.mxu0 0.0
    %341 = vmatpush1.msra.mxu0 0.0
    %342 = vmatprep.subr.mxu0 0.0
    %343 = vmatpush1.msra.mxu0 0.0
    %344 = vmatprep.subr.mxu0 0.0
    %345 = vmatpush1.msra.mxu0 0.0
    %346 = vmatprep.subr.mxu0 0.0
    %347 = vmatpush1.msra.mxu0 0.0
    %348 = vmatprep.subr.mxu0 0.0
    %349 = vmatpush1.msra.mxu0 0.0
    %350 = vmatprep.subr.mxu0 0.0
    %351 = vmatpush1.msra.mxu0 0.0
    %352 = vmatprep.subr.mxu0 0.0
    %353 = vmatpush1.msra.mxu0 0.0
    %354 = vmatprep.subr.mxu0 0.0
    %355 = vmatpush1.msra.mxu0 0.0
    %356 = vmatprep.subr.mxu0 0.0
    %357 = vmatpush1.msra.mxu0 0.0
    %358 = vmatprep.subr.mxu0 0.0
    %359 = vmatpush1.msra.mxu0 0.0
    %360 = vmatprep.subr.mxu0 0.0
    %361 = vmatpush1.msra.mxu0 0.0
    %362 = vmatprep.subr.mxu0 0.0
    %363 = vmatpush1.msra.mxu0 0.0
    %364 = vmatprep.subr.mxu0 0.0
    %365 = vmatpush1.msra.mxu0 0.0
    %366 = vmatprep.mubr.f32.mxu0 0.0
    %367 = vmatmul.mubr.f32.gmra.mrb[0].mxu0 %v300
    %v368 = vpop.f32.mrb[0].mxu0
    %v369 = vadd.f32 0.0, %v368
    %v370 = vpop.f32.mrb[0].mxu0
    %v371 = vadd.f32 0.0, %v370
    %372 = vdwg.mxu0
    %v375 = vrot.slane %v369, 6
    %v376 = vrot.slane %v371, 6
    %v379 = vadd.f32 %v298, %v375
    %v380 = vadd.f32 %v299, %v376
    %v381 = vxor.u32 %v379, 2147483648
    %v382 = vxor.u32 %v380, 2147483648
    %v383 = vmul.f32 %v381, 1.442695
    %v384 = vpow.pop %v383
    %v385 = vmul.f32 %v382, 1.442695
    %v386 = vpow.pop %v385
    %v387 = vadd.f32 %v384, 1.0
    %v388 = vadd.f32 %v386, 1.0
    %v389 = vrcp.pop %v387
    %v390 = vmul.f32 1.0, %v389
    %v391 = vrcp.pop %v388
    %v392 = vmul.f32 1.0, %v391
    %v393 = vtanh.pop %v380
    %v395 = vrot.slane %v274, 6
    %v397 = vmul.f32 %v390, %v395
    %399 = vrot.lane.b32.xlu0 %v393, 64
    %v400 = vpop.permute.xlu0 %399
    %v402 = vmul.f32 %v390, %v400
    %404 = vrot.lane.b32.xlu0 %v402, 64
    %v405 = vpop.permute.xlu0 %404
    %v407 = vadd.f32 %v397, %v405
    %v408 = vtanh.pop %v407
    %410 = vrot.lane.b32.xlu0 %v408, 64
    %v411 = vpop.permute.xlu0 %410
    %v413 = vmul.f32 %v392, %v411
    %vm414 = vcmask 519170
    %415 = vst.msk [vmem:[#allocation3] sm:$0xc] %vm414, %v413
    %417 = vrot.lane.b32.xlu0 %v413, 96
    %v418 = vpop.permute.xlu0 %417
    %420 = vrot.lane.b32.xlu0 %v413, 32
    %v421 = vpop.permute.xlu0 %420
    %v423 = vsel %vm290, %v418, %v421
    %425 = vrot.lane.b32.xlu0 %v423, 64
    %v426 = vpop.permute.xlu0 %425
    %vm428 = vcmask 1043970
    %429 = vst.msk [vmem:[#allocation3 + $0xa] sm:$0xc] %vm428, %v426
    %v430 = vld [vmem:[#allocation2] sm:$0x30]
    %v431 = vld [vmem:[#allocation2 + $0x8] sm:$0x30]
    %v432 = vrot.slane %v413, 2
    %v433 = vsel %vm174, %v432, 0
    %435 = vmatprep.subr.mxu0 %v65
    %436 = vmatpush1.msra.mxu0 %v64
    %437 = vmatprep.subr.mxu0 %v67
    %438 = vmatpush1.msra.mxu0 %v66
    %439 = vmatprep.subr.mxu0 %v69
    %440 = vmatpush1.msra.mxu0 %v68
    %441 = vmatprep.subr.mxu0 %v71
    %442 = vmatpush1.msra.mxu0 %v70
    %443 = vmatprep.subr.mxu0 %v73
    %444 = vmatpush1.msra.mxu0 %v72
    %445 = vmatprep.subr.mxu0 %v75
    %446 = vmatpush1.msra.mxu0 %v74
    %447 = vmatprep.subr.mxu0 %v77
    %448 = vmatpush1.msra.mxu0 %v76
    %449 = vmatprep.subr.mxu0 %v79
    %450 = vmatpush1.msra.mxu0 %v78
    %451 = vmatprep.subr.mxu0 0.0
    %452 = vmatpush1.msra.mxu0 0.0
    %453 = vmatprep.subr.mxu0 0.0
    %454 = vmatpush1.msra.mxu0 0.0
    %455 = vmatprep.subr.mxu0 0.0
    %456 = vmatpush1.msra.mxu0 0.0
    %457 = vmatprep.subr.mxu0 0.0
    %458 = vmatpush1.msra.mxu0 0.0
    %459 = vmatprep.subr.mxu0 0.0
    %460 = vmatpush1.msra.mxu0 0.0
    %461 = vmatprep.subr.mxu0 0.0
    %462 = vmatpush1.msra.mxu0 0.0
    %463 = vmatprep.subr.mxu0 0.0
    %464 = vmatpush1.msra.mxu0 0.0
    %465 = vmatprep.subr.mxu0 0.0
    %466 = vmatpush1.msra.mxu0 0.0
    %467 = vmatprep.subr.mxu0 0.0
    %468 = vmatpush1.msra.mxu0 0.0
    %469 = vmatprep.subr.mxu0 0.0
    %470 = vmatpush1.msra.mxu0 0.0
    %471 = vmatprep.subr.mxu0 0.0
    %472 = vmatpush1.msra.mxu0 0.0
    %473 = vmatprep.subr.mxu0 0.0
    %474 = vmatpush1.msra.mxu0 0.0
    %475 = vmatprep.subr.mxu0 0.0
    %476 = vmatpush1.msra.mxu0 0.0
    %477 = vmatprep.subr.mxu0 0.0
    %478 = vmatpush1.msra.mxu0 0.0
    %479 = vmatprep.subr.mxu0 0.0
    %480 = vmatpush1.msra.mxu0 0.0
    %481 = vmatprep.subr.mxu0 0.0
    %482 = vmatpush1.msra.mxu0 0.0
    %483 = vmatprep.subr.mxu0 0.0
    %484 = vmatpush1.msra.mxu0 0.0
    %485 = vmatprep.subr.mxu0 0.0
    %486 = vmatpush1.msra.mxu0 0.0
    %487 = vmatprep.subr.mxu0 0.0
    %488 = vmatpush1.msra.mxu0 0.0
    %489 = vmatprep.subr.mxu0 0.0
    %490 = vmatpush1.msra.mxu0 0.0
    %491 = vmatprep.subr.mxu0 0.0
    %492 = vmatpush1.msra.mxu0 0.0
    %493 = vmatprep.subr.mxu0 0.0
    %494 = vmatpush1.msra.mxu0 0.0
    %495 = vmatprep.subr.mxu0 0.0
    %496 = vmatpush1.msra.mxu0 0.0
    %497 = vmatprep.subr.mxu0 0.0
    %498 = vmatpush1.msra.mxu0 0.0
    %499 = vmatprep.mubr.f32.mxu0 0.0
    %500 = vmatmul.mubr.f32.gmra.mrb[0].mxu0 %v433
    %v501 = vpop.f32.mrb[0].mxu0
    %v502 = vadd.f32 0.0, %v501
    %v503 = vpop.f32.mrb[0].mxu0
    %v504 = vadd.f32 0.0, %v503
    %505 = vdwg.mxu0
    %v508 = vrot.slane %v502, 4
    %v509 = vrot.slane %v504, 4
    %v512 = vadd.f32 %v430, %v508
    %v513 = vadd.f32 %v431, %v509
    %v514 = vxor.u32 %v512, 2147483648
    %v515 = vxor.u32 %v513, 2147483648
    %v516 = vmul.f32 %v514, 1.442695
    %v517 = vpow.pop %v516
    %v518 = vmul.f32 %v515, 1.442695
    %v519 = vpow.pop %v518
    %v520 = vadd.f32 %v517, 1.0
    %v521 = vadd.f32 %v519, 1.0
    %v522 = vrcp.pop %v520
    %v523 = vmul.f32 1.0, %v522
    %v524 = vrcp.pop %v521
    %v525 = vmul.f32 1.0, %v524
    %v526 = vtanh.pop %v513
    %v528 = vrot.slane %v407, 6
    %v530 = vmul.f32 %v523, %v528
    %532 = vrot.lane.b32.xlu0 %v526, 64
    %v533 = vpop.permute.xlu0 %532
    %v535 = vmul.f32 %v523, %v533
    %537 = vrot.lane.b32.xlu0 %v535, 64
    %v538 = vpop.permute.xlu0 %537
    %v540 = vadd.f32 %v530, %v538
    %v541 = vtanh.pop %v540
    %543 = vrot.lane.b32.xlu0 %v541, 64
    %v544 = vpop.permute.xlu0 %543
    %v546 = vmul.f32 %v525, %v544
    %vm547 = vcmask 521220
    %548 = vst.msk [vmem:[#allocation3] sm:$0x30] %vm547, %v546
    %550 = vrot.lane.b32.xlu0 %v546, 96
    %v551 = vpop.permute.xlu0 %550
    %553 = vrot.lane.b32.xlu0 %v546, 32
    %v554 = vpop.permute.xlu0 %553
    %v556 = vsel %vm290, %v551, %v554
    %558 = vrot.lane.b32.xlu0 %v556, 64
    %v559 = vpop.permute.xlu0 %558
    %vm561 = vcmask 1046020
    %562 = vst.msk [vmem:[#allocation3 + $0x6] sm:$0x30] %vm561, %v559
    %v563 = vld [vmem:[#allocation2] sm:$0xc0]
    %v564 = vld [vmem:[#allocation2 + $0x8] sm:$0xc0]
    %v565 = vrot.slane %v546, 4
    %v566 = vsel %vm174, %v565, 0
    %568 = vmatprep.subr.mxu0 %v65
    %569 = vmatpush1.msra.mxu0 %v64
    %570 = vmatprep.subr.mxu0 %v67
    %571 = vmatpush1.msra.mxu0 %v66
    %572 = vmatprep.subr.mxu0 %v69
    %573 = vmatpush1.msra.mxu0 %v68
    %574 = vmatprep.subr.mxu0 %v71
    %575 = vmatpush1.msra.mxu0 %v70
    %576 = vmatprep.subr.mxu0 %v73
    %577 = vmatpush1.msra.mxu0 %v72
    %578 = vmatprep.subr.mxu0 %v75
    %579 = vmatpush1.msra.mxu0 %v74
    %580 = vmatprep.subr.mxu0 %v77
    %581 = vmatpush1.msra.mxu0 %v76
    %582 = vmatprep.subr.mxu0 %v79
    %583 = vmatpush1.msra.mxu0 %v78
    %584 = vmatprep.subr.mxu0 0.0
    %585 = vmatpush1.msra.mxu0 0.0
    %586 = vmatprep.subr.mxu0 0.0
    %587 = vmatpush1.msra.mxu0 0.0
    %588 = vmatprep.subr.mxu0 0.0
    %589 = vmatpush1.msra.mxu0 0.0
    %590 = vmatprep.subr.mxu0 0.0
    %591 = vmatpush1.msra.mxu0 0.0
    %592 = vmatprep.subr.mxu0 0.0
    %593 = vmatpush1.msra.mxu0 0.0
    %594 = vmatprep.subr.mxu0 0.0
    %595 = vmatpush1.msra.mxu0 0.0
    %596 = vmatprep.subr.mxu0 0.0
    %597 = vmatpush1.msra.mxu0 0.0
    %598 = vmatprep.subr.mxu0 0.0
    %599 = vmatpush1.msra.mxu0 0.0
    %600 = vmatprep.subr.mxu0 0.0
    %601 = vmatpush1.msra.mxu0 0.0
    %602 = vmatprep.subr.mxu0 0.0
    %603 = vmatpush1.msra.mxu0 0.0
    %604 = vmatprep.subr.mxu0 0.0
    %605 = vmatpush1.msra.mxu0 0.0
    %606 = vmatprep.subr.mxu0 0.0
    %607 = vmatpush1.msra.mxu0 0.0
    %608 = vmatprep.subr.mxu0 0.0
    %609 = vmatpush1.msra.mxu0 0.0
    %610 = vmatprep.subr.mxu0 0.0
    %611 = vmatpush1.msra.mxu0 0.0
    %612 = vmatprep.subr.mxu0 0.0
    %613 = vmatpush1.msra.mxu0 0.0
    %614 = vmatprep.subr.mxu0 0.0
    %615 = vmatpush1.msra.mxu0 0.0
    %616 = vmatprep.subr.mxu0 0.0
    %617 = vmatpush1.msra.mxu0 0.0
    %618 = vmatprep.subr.mxu0 0.0
    %619 = vmatpush1.msra.mxu0 0.0
    %620 = vmatprep.subr.mxu0 0.0
    %621 = vmatpush1.msra.mxu0 0.0
    %622 = vmatprep.subr.mxu0 0.0
    %623 = vmatpush1.msra.mxu0 0.0
    %624 = vmatprep.subr.mxu0 0.0
    %625 = vmatpush1.msra.mxu0 0.0
    %626 = vmatprep.subr.mxu0 0.0
    %627 = vmatpush1.msra.mxu0 0.0
    %628 = vmatprep.subr.mxu0 0.0
    %629 = vmatpush1.msra.mxu0 0.0
    %630 = vmatprep.subr.mxu0 0.0
    %631 = vmatpush1.msra.mxu0 0.0
    %632 = vmatprep.mubr.f32.mxu0 0.0
    %633 = vmatmul.mubr.f32.gmra.mrb[0].mxu0 %v566
    %v634 = vpop.f32.mrb[0].mxu0
    %v635 = vadd.f32 0.0, %v634
    %v636 = vpop.f32.mrb[0].mxu0
    %v637 = vadd.f32 0.0, %v636
    %638 = vdwg.mxu0
    %v641 = vrot.slane %v635, 2
    %v642 = vrot.slane %v637, 2
    %v645 = vadd.f32 %v563, %v641
    %v646 = vadd.f32 %v564, %v642
    %v647 = vxor.u32 %v645, 2147483648
    %v648 = vxor.u32 %v646, 2147483648
    %v649 = vmul.f32 %v647, 1.442695
    %v650 = vpow.pop %v649
    %v651 = vmul.f32 %v648, 1.442695
    %v652 = vpow.pop %v651
    %v653 = vadd.f32 %v650, 1.0
    %v654 = vadd.f32 %v652, 1.0
    %v655 = vrcp.pop %v653
    %v656 = vmul.f32 1.0, %v655
    %v657 = vrcp.pop %v654
    %v658 = vmul.f32 1.0, %v657
    %v659 = vtanh.pop %v646
    %v661 = vrot.slane %v540, 6
    %v663 = vmul.f32 %v656, %v661
    %665 = vrot.lane.b32.xlu0 %v659, 64
    %v666 = vpop.permute.xlu0 %665
    %v668 = vmul.f32 %v656, %v666
    %670 = vrot.lane.b32.xlu0 %v668, 64
    %v671 = vpop.permute.xlu0 %670
    %v673 = vadd.f32 %v663, %v671
    %v674 = vtanh.pop %v673
    %676 = vrot.lane.b32.xlu0 %v674, 64
    %v677 = vpop.permute.xlu0 %676
    %v679 = vmul.f32 %v658, %v677
    %vm680 = vcmask 523270
    %681 = vst.msk [vmem:[#allocation3] sm:$0xc0] %vm680, %v679
    %683 = vrot.lane.b32.xlu0 %v679, 96
    %v684 = vpop.permute.xlu0 %683
    %686 = vrot.lane.b32.xlu0 %v679, 32
    %v687 = vpop.permute.xlu0 %686
    %v689 = vsel %vm290, %v684, %v687
    %691 = vrot.lane.b32.xlu0 %v689, 64
    %v692 = vpop.permute.xlu0 %691
    %vm694 = vcmask 1048070
    %695 = vst.msk [vmem:[#allocation3 + $0x2] sm:$0xc0] %vm694, %v692
    %v696 = vld [vmem:[#allocation2 + $0x10] sm:$0x3]
    %v697 = vld [vmem:[#allocation2 + $0x18] sm:$0x3]
    %v698 = vrot.slane %v679, 6
    %v699 = vsel %vm174, %v698, 0
    %701 = vmatprep.subr.mxu0 %v65
    %702 = vmatpush1.msra.mxu0 %v64
    %703 = vmatprep.subr.mxu0 %v67
    %704 = vmatpush1.msra.mxu0 %v66
    %705 = vmatprep.subr.mxu0 %v69
    %706 = vmatpush1.msra.mxu0 %v68
    %707 = vmatprep.subr.mxu0 %v71
    %708 = vmatpush1.msra.mxu0 %v70
    %709 = vmatprep.subr.mxu0 %v73
    %710 = vmatpush1.msra.mxu0 %v72
    %711 = vmatprep.subr.mxu0 %v75
    %712 = vmatpush1.msra.mxu0 %v74
    %713 = vmatprep.subr.mxu0 %v77
    %714 = vmatpush1.msra.mxu0 %v76
    %715 = vmatprep.subr.mxu0 %v79
    %716 = vmatpush1.msra.mxu0 %v78
    %717 = vmatprep.subr.mxu0 0.0
    %718 = vmatpush1.msra.mxu0 0.0
    %719 = vmatprep.subr.mxu0 0.0
    %720 = vmatpush1.msra.mxu0 0.0
    %721 = vmatprep.subr.mxu0 0.0
    %722 = vmatpush1.msra.mxu0 0.0
    %723 = vmatprep.subr.mxu0 0.0
    %724 = vmatpush1.msra.mxu0 0.0
    %725 = vmatprep.subr.mxu0 0.0
    %726 = vmatpush1.msra.mxu0 0.0
    %727 = vmatprep.subr.mxu0 0.0
    %728 = vmatpush1.msra.mxu0 0.0
    %729 = vmatprep.subr.mxu0 0.0
    %730 = vmatpush1.msra.mxu0 0.0
    %731 = vmatprep.subr.mxu0 0.0
    %732 = vmatpush1.msra.mxu0 0.0
    %733 = vmatprep.subr.mxu0 0.0
    %734 = vmatpush1.msra.mxu0 0.0
    %735 = vmatprep.subr.mxu0 0.0
    %736 = vmatpush1.msra.mxu0 0.0
    %737 = vmatprep.subr.mxu0 0.0
    %738 = vmatpush1.msra.mxu0 0.0
    %739 = vmatprep.subr.mxu0 0.0
    %740 = vmatpush1.msra.mxu0 0.0
    %741 = vmatprep.subr.mxu0 0.0
    %742 = vmatpush1.msra.mxu0 0.0
    %743 = vmatprep.subr.mxu0 0.0
    %744 = vmatpush1.msra.mxu0 0.0
    %745 = vmatprep.subr.mxu0 0.0
    %746 = vmatpush1.msra.mxu0 0.0
    %747 = vmatprep.subr.mxu0 0.0
    %748 = vmatpush1.msra.mxu0 0.0
    %749 = vmatprep.subr.mxu0 0.0
    %750 = vmatpush1.msra.mxu0 0.0
    %751 = vmatprep.subr.mxu0 0.0
    %752 = vmatpush1.msra.mxu0 0.0
    %753 = vmatprep.subr.mxu0 0.0
    %754 = vmatpush1.msra.mxu0 0.0
    %755 = vmatprep.subr.mxu0 0.0
    %756 = vmatpush1.msra.mxu0 0.0
    %757 = vmatprep.subr.mxu0 0.0
    %758 = vmatpush1.msra.mxu0 0.0
    %759 = vmatprep.subr.mxu0 0.0
    %760 = vmatpush1.msra.mxu0 0.0
    %761 = vmatprep.subr.mxu0 0.0
    %762 = vmatpush1.msra.mxu0 0.0
    %763 = vmatprep.subr.mxu0 0.0
    %764 = vmatpush1.msra.mxu0 0.0
    %765 = vmatprep.mubr.f32.mxu0 0.0
    %766 = vmatmul.mubr.f32.gmra.mrb[0].mxu0 %v699
    %v767 = vpop.f32.mrb[0].mxu0
    %v768 = vadd.f32 0.0, %v767
    %v769 = vpop.f32.mrb[0].mxu0
    %v770 = vadd.f32 0.0, %v769
    %771 = vdwg.mxu0
    %v772 = vadd.f32 %v696, %v768
    %v773 = vadd.f32 %v697, %v770
    %v774 = vxor.u32 %v772, 2147483648
    %v775 = vxor.u32 %v773, 2147483648
    %v776 = vmul.f32 %v774, 1.442695
    %v777 = vpow.pop %v776
    %v778 = vmul.f32 %v775, 1.442695
    %v779 = vpow.pop %v778
    %v780 = vadd.f32 %v777, 1.0
    %v781 = vadd.f32 %v779, 1.0
    %v782 = vrcp.pop %v780
    %v783 = vmul.f32 1.0, %v782
    %v784 = vrcp.pop %v781
    %v785 = vmul.f32 1.0, %v784
    %v786 = vtanh.pop %v773
    %v788 = vrot.slane %v673, 6
    %v790 = vmul.f32 %v783, %v788
    %792 = vrot.lane.b32.xlu0 %v786, 64
    %v793 = vpop.permute.xlu0 %792
    %v795 = vmul.f32 %v783, %v793
    %797 = vrot.lane.b32.xlu0 %v795, 64
    %v798 = vpop.permute.xlu0 %797
    %v800 = vadd.f32 %v790, %v798
    %v801 = vtanh.pop %v800
    %803 = vrot.lane.b32.xlu0 %v801, 64
    %v804 = vpop.permute.xlu0 %803
    %v806 = vmul.f32 %v785, %v804
    %807 = vst.msk [vmem:[#allocation3 + $0x8] sm:$0x3] %vm281, %v806
    %809 = vrot.lane.b32.xlu0 %v806, 96
    %v810 = vpop.permute.xlu0 %809
    %812 = vrot.lane.b32.xlu0 %v806, 32
    %v813 = vpop.permute.xlu0 %812
    %v815 = vsel %vm290, %v810, %v813
    %817 = vrot.lane.b32.xlu0 %v815, 64
    %v818 = vpop.permute.xlu0 %817
    %820 = vst.msk [vmem:[#allocation3 + $0x6] sm:$0x3] %vm296, %v818
    %v821 = vld [vmem:[#allocation2 + $0x10] sm:$0xc]
    %v822 = vld [vmem:[#allocation2 + $0x18] sm:$0xc]
    %v823 = vsel %vm174, %v806, 0
    %825 = vmatprep.subr.mxu0 %v65
    %826 = vmatpush1.msra.mxu0 %v64
    %827 = vmatprep.subr.mxu0 %v67
    %828 = vmatpush1.msra.mxu0 %v66
    %829 = vmatprep.subr.mxu0 %v69
    %830 = vmatpush1.msra.mxu0 %v68
    %831 = vmatprep.subr.mxu0 %v71
    %832 = vmatpush1.msra.mxu0 %v70
    %833 = vmatprep.subr.mxu0 %v73
    %834 = vmatpush1.msra.mxu0 %v72
    %835 = vmatprep.subr.mxu0 %v75
    %836 = vmatpush1.msra.mxu0 %v74
    %837 = vmatprep.subr.mxu0 %v77
    %838 = vmatpush1.msra.mxu0 %v76
    %839 = vmatprep.subr.mxu0 %v79
    %840 = vmatpush1.msra.mxu0 %v78
    %841 = vmatprep.subr.mxu0 0.0
    %842 = vmatpush1.msra.mxu0 0.0
    %843 = vmatprep.subr.mxu0 0.0
    %844 = vmatpush1.msra.mxu0 0.0
    %845 = vmatprep.subr.mxu0 0.0
    %846 = vmatpush1.msra.mxu0 0.0
    %847 = vmatprep.subr.mxu0 0.0
    %848 = vmatpush1.msra.mxu0 0.0
    %849 = vmatprep.subr.mxu0 0.0
    %850 = vmatpush1.msra.mxu0 0.0
    %851 = vmatprep.subr.mxu0 0.0
    %852 = vmatpush1.msra.mxu0 0.0
    %853 = vmatprep.subr.mxu0 0.0
    %854 = vmatpush1.msra.mxu0 0.0
    %855 = vmatprep.subr.mxu0 0.0
    %856 = vmatpush1.msra.mxu0 0.0
    %857 = vmatprep.subr.mxu0 0.0
    %858 = vmatpush1.msra.mxu0 0.0
    %859 = vmatprep.subr.mxu0 0.0
    %860 = vmatpush1.msra.mxu0 0.0
    %861 = vmatprep.subr.mxu0 0.0
    %862 = vmatpush1.msra.mxu0 0.0
    %863 = vmatprep.subr.mxu0 0.0
    %864 = vmatpush1.msra.mxu0 0.0
    %865 = vmatprep.subr.mxu0 0.0
    %866 = vmatpush1.msra.mxu0 0.0
    %867 = vmatprep.subr.mxu0 0.0
    %868 = vmatpush1.msra.mxu0 0.0
    %869 = vmatprep.subr.mxu0 0.0
    %870 = vmatpush1.msra.mxu0 0.0
    %871 = vmatprep.subr.mxu0 0.0
    %872 = vmatpush1.msra.mxu0 0.0
    %873 = vmatprep.subr.mxu0 0.0
    %874 = vmatpush1.msra.mxu0 0.0
    %875 = vmatprep.subr.mxu0 0.0
    %876 = vmatpush1.msra.mxu0 0.0
    %877 = vmatprep.subr.mxu0 0.0
    %878 = vmatpush1.msra.mxu0 0.0
    %879 = vmatprep.subr.mxu0 0.0
    %880 = vmatpush1.msra.mxu0 0.0
    %881 = vmatprep.subr.mxu0 0.0
    %882 = vmatpush1.msra.mxu0 0.0
    %883 = vmatprep.subr.mxu0 0.0
    %884 = vmatpush1.msra.mxu0 0.0
    %885 = vmatprep.subr.mxu0 0.0
    %886 = vmatpush1.msra.mxu0 0.0
    %887 = vmatprep.subr.mxu0 0.0
    %888 = vmatpush1.msra.mxu0 0.0
    %889 = vmatprep.mubr.f32.mxu0 0.0
    %890 = vmatmul.mubr.f32.gmra.mrb[0].mxu0 %v823
    %v891 = vpop.f32.mrb[0].mxu0
    %v892 = vadd.f32 0.0, %v891
    %v893 = vpop.f32.mrb[0].mxu0
    %v894 = vadd.f32 0.0, %v893
    %895 = vdwg.mxu0
    %v898 = vrot.slane %v892, 6
    %v899 = vrot.slane %v894, 6
    %v902 = vadd.f32 %v821, %v898
    %v903 = vadd.f32 %v822, %v899
    %v904 = vxor.u32 %v902, 2147483648
    %v905 = vxor.u32 %v903, 2147483648
    %v906 = vmul.f32 %v904, 1.442695
    %v907 = vpow.pop %v906
    %v908 = vmul.f32 %v905, 1.442695
    %v909 = vpow.pop %v908
    %v910 = vadd.f32 %v907, 1.0
    %v911 = vadd.f32 %v909, 1.0
    %v912 = vrcp.pop %v910
    %v913 = vmul.f32 1.0, %v912
    %v914 = vrcp.pop %v911
    %v915 = vmul.f32 1.0, %v914
    %v916 = vtanh.pop %v903
    %v918 = vrot.slane %v800, 6
    %v920 = vmul.f32 %v913, %v918
    %922 = vrot.lane.b32.xlu0 %v916, 64
    %v923 = vpop.permute.xlu0 %922
    %v925 = vmul.f32 %v913, %v923
    %927 = vrot.lane.b32.xlu0 %v925, 64
    %v928 = vpop.permute.xlu0 %927
    %v930 = vadd.f32 %v920, %v928
    %v931 = vtanh.pop %v930
    %933 = vrot.lane.b32.xlu0 %v931, 64
    %v934 = vpop.permute.xlu0 %933
    %v936 = vmul.f32 %v915, %v934
    %937 = vst.msk [vmem:[#allocation3 + $0x8] sm:$0xc] %vm414, %v936
    %939 = vrot.lane.b32.xlu0 %v936, 96
    %v940 = vpop.permute.xlu0 %939
    %942 = vrot.lane.b32.xlu0 %v936, 32
    %v943 = vpop.permute.xlu0 %942
    %v945 = vsel %vm290, %v940, %v943
    %947 = vrot.lane.b32.xlu0 %v945, 64
    %v948 = vpop.permute.xlu0 %947
    %950 = vst.msk [vmem:[#allocation3 + $0x2] sm:$0xc] %vm428, %v948
    %v951 = vld [vmem:[#allocation2 + $0x10] sm:$0x30]
    %v952 = vld [vmem:[#allocation2 + $0x18] sm:$0x30]
    %v953 = vrot.slane %v936, 2
    %v954 = vsel %vm174, %v953, 0
    %956 = vmatprep.subr.mxu0 %v65
    %957 = vmatpush1.msra.mxu0 %v64
    %958 = vmatprep.subr.mxu0 %v67
    %959 = vmatpush1.msra.mxu0 %v66
    %960 = vmatprep.subr.mxu0 %v69
    %961 = vmatpush1.msra.mxu0 %v68
    %962 = vmatprep.subr.mxu0 %v71
    %963 = vmatpush1.msra.mxu0 %v70
    %964 = vmatprep.subr.mxu0 %v73
    %965 = vmatpush1.msra.mxu0 %v72
    %966 = vmatprep.subr.mxu0 %v75
    %967 = vmatpush1.msra.mxu0 %v74
    %968 = vmatprep.subr.mxu0 %v77
    %969 = vmatpush1.msra.mxu0 %v76
    %970 = vmatprep.subr.mxu0 %v79
    %971 = vmatpush1.msra.mxu0 %v78
    %972 = vmatprep.subr.mxu0 0.0
    %973 = vmatpush1.msra.mxu0 0.0
    %974 = vmatprep.subr.mxu0 0.0
    %975 = vmatpush1.msra.mxu0 0.0
    %976 = vmatprep.subr.mxu0 0.0
    %977 = vmatpush1.msra.mxu0 0.0
    %978 = vmatprep.subr.mxu0 0.0
    %979 = vmatpush1.msra.mxu0 0.0
    %980 = vmatprep.subr.mxu0 0.0
    %981 = vmatpush1.msra.mxu0 0.0
    %982 = vmatprep.subr.mxu0 0.0
    %983 = vmatpush1.msra.mxu0 0.0
    %984 = vmatprep.subr.mxu0 0.0
    %985 = vmatpush1.msra.mxu0 0.0
    %986 = vmatprep.subr.mxu0 0.0
    %987 = vmatpush1.msra.mxu0 0.0
    %988 = vmatprep.subr.mxu0 0.0
    %989 = vmatpush1.msra.mxu0 0.0
    %990 = vmatprep.subr.mxu0 0.0
    %991 = vmatpush1.msra.mxu0 0.0
    %992 = vmatprep.subr.mxu0 0.0
    %993 = vmatpush1.msra.mxu0 0.0
    %994 = vmatprep.subr.mxu0 0.0
    %995 = vmatpush1.msra.mxu0 0.0
    %996 = vmatprep.subr.mxu0 0.0
    %997 = vmatpush1.msra.mxu0 0.0
    %998 = vmatprep.subr.mxu0 0.0
    %999 = vmatpush1.msra.mxu0 0.0
    %1000 = vmatprep.subr.mxu0 0.0
    %1001 = vmatpush1.msra.mxu0 0.0
    %1002 = vmatprep.subr.mxu0 0.0
    %1003 = vmatpush1.msra.mxu0 0.0
    %1004 = vmatprep.subr.mxu0 0.0
    %1005 = vmatpush1.msra.mxu0 0.0
    %1006 = vmatprep.subr.mxu0 0.0
    %1007 = vmatpush1.msra.mxu0 0.0
    %1008 = vmatprep.subr.mxu0 0.0
    %1009 = vmatpush1.msra.mxu0 0.0
    %1010 = vmatprep.subr.mxu0 0.0
    %1011 = vmatpush1.msra.mxu0 0.0
    %1012 = vmatprep.subr.mxu0 0.0
    %1013 = vmatpush1.msra.mxu0 0.0
    %1014 = vmatprep.subr.mxu0 0.0
    %1015 = vmatpush1.msra.mxu0 0.0
    %1016 = vmatprep.subr.mxu0 0.0
    %1017 = vmatpush1.msra.mxu0 0.0
    %1018 = vmatprep.subr.mxu0 0.0
    %1019 = vmatpush1.msra.mxu0 0.0
    %1020 = vmatprep.mubr.f32.mxu0 0.0
    %1021 = vmatmul.mubr.f32.gmra.mrb[0].mxu0 %v954
    %v1022 = vpop.f32.mrb[0].mxu0
    %v1023 = vadd.f32 0.0, %v1022
    %v1024 = vpop.f32.mrb[0].mxu0
    %v1025 = vadd.f32 0.0, %v1024
    %1026 = vdwg.mxu0
    %v1029 = vrot.slane %v1023, 4
    %v1030 = vrot.slane %v1025, 4
    %v1033 = vadd.f32 %v951, %v1029
    %v1034 = vadd.f32 %v952, %v1030
    %v1035 = vxor.u32 %v1033, 2147483648
    %v1036 = vxor.u32 %v1034, 2147483648
    %v1037 = vmul.f32 %v1035, 1.442695
    %v1038 = vpow.pop %v1037
    %v1039 = vmul.f32 %v1036, 1.442695
    %v1040 = vpow.pop %v1039
    %v1041 = vadd.f32 %v1038, 1.0
    %v1042 = vadd.f32 %v1040, 1.0
    %v1043 = vrcp.pop %v1041
    %v1044 = vmul.f32 1.0, %v1043
    %v1045 = vrcp.pop %v1042
    %v1046 = vmul.f32 1.0, %v1045
    %v1047 = vtanh.pop %v1034
    %v1049 = vrot.slane %v930, 6
    %v1051 = vmul.f32 %v1044, %v1049
    %1053 = vrot.lane.b32.xlu0 %v1047, 64
    %v1054 = vpop.permute.xlu0 %1053
    %v1056 = vmul.f32 %v1044, %v1054
    %1058 = vrot.lane.b32.xlu0 %v1056, 64
    %v1059 = vpop.permute.xlu0 %1058
    %v1061 = vadd.f32 %v1051, %v1059
    %v1062 = vtanh.pop %v1061
    %1064 = vrot.lane.b32.xlu0 %v1062, 64
    %v1065 = vpop.permute.xlu0 %1064
    %v1067 = vmul.f32 %v1046, %v1065
    %1068 = vst.msk [vmem:[#allocation3 + $0x8] sm:$0x30] %vm547, %v1067
    %1070 = vrot.lane.b32.xlu0 %v1067, 96
    %v1071 = vpop.permute.xlu0 %1070
    %1073 = vrot.lane.b32.xlu0 %v1067, 32
    %v1074 = vpop.permute.xlu0 %1073
    %v1076 = vsel %vm290, %v1071, %v1074
    %1078 = vrot.lane.b32.xlu0 %v1076, 64
    %v1079 = vpop.permute.xlu0 %1078
    %1081 = vst.msk [vmem:[#allocation3 - $0x2] sm:$0x30] %vm561, %v1079
    %v1082 = vld [vmem:[#allocation2 + $0x10] sm:$0xc0]
    %v1083 = vld [vmem:[#allocation2 + $0x18] sm:$0xc0]
    %v1084 = vrot.slane %v1067, 4
    %v1085 = vsel %vm174, %v1084, 0
    %1087 = vmatprep.subr.mxu0 %v65
    %1088 = vmatpush1.msra.mxu0 %v64
    %1089 = vmatprep.subr.mxu0 %v67
    %1090 = vmatpush1.msra.mxu0 %v66
    %1091 = vmatprep.subr.mxu0 %v69
    %1092 = vmatpush1.msra.mxu0 %v68
    %1093 = vmatprep.subr.mxu0 %v71
    %1094 = vmatpush1.msra.mxu0 %v70
    %1095 = vmatprep.subr.mxu0 %v73
    %1096 = vmatpush1.msra.mxu0 %v72
    %1097 = vmatprep.subr.mxu0 %v75
    %1098 = vmatpush1.msra.mxu0 %v74
    %1099 = vmatprep.subr.mxu0 %v77
    %1100 = vmatpush1.msra.mxu0 %v76
    %1101 = vmatprep.subr.mxu0 %v79
    %1102 = vmatpush1.msra.mxu0 %v78
    %1103 = vmatprep.subr.mxu0 0.0
    %1104 = vmatpush1.msra.mxu0 0.0
    %1105 = vmatprep.subr.mxu0 0.0
    %1106 = vmatpush1.msra.mxu0 0.0
    %1107 = vmatprep.subr.mxu0 0.0
    %1108 = vmatpush1.msra.mxu0 0.0
    %1109 = vmatprep.subr.mxu0 0.0
    %1110 = vmatpush1.msra.mxu0 0.0
    %1111 = vmatprep.subr.mxu0 0.0
    %1112 = vmatpush1.msra.mxu0 0.0
    %1113 = vmatprep.subr.mxu0 0.0
    %1114 = vmatpush1.msra.mxu0 0.0
    %1115 = vmatprep.subr.mxu0 0.0
    %1116 = vmatpush1.msra.mxu0 0.0
    %1117 = vmatprep.subr.mxu0 0.0
    %1118 = vmatpush1.msra.mxu0 0.0
    %1119 = vmatprep.subr.mxu0 0.0
    %1120 = vmatpush1.msra.mxu0 0.0
    %1121 = vmatprep.subr.mxu0 0.0
    %1122 = vmatpush1.msra.mxu0 0.0
    %1123 = vmatprep.subr.mxu0 0.0
    %1124 = vmatpush1.msra.mxu0 0.0
    %1125 = vmatprep.subr.mxu0 0.0
    %1126 = vmatpush1.msra.mxu0 0.0
    %1127 = vmatprep.subr.mxu0 0.0
    %1128 = vmatpush1.msra.mxu0 0.0
    %1129 = vmatprep.subr.mxu0 0.0
    %1130 = vmatpush1.msra.mxu0 0.0
    %1131 = vmatprep.subr.mxu0 0.0
    %1132 = vmatpush1.msra.mxu0 0.0
    %1133 = vmatprep.subr.mxu0 0.0
    %1134 = vmatpush1.msra.mxu0 0.0
    %1135 = vmatprep.subr.mxu0 0.0
    %1136 = vmatpush1.msra.mxu0 0.0
    %1137 = vmatprep.subr.mxu0 0.0
    %1138 = vmatpush1.msra.mxu0 0.0
    %1139 = vmatprep.subr.mxu0 0.0
    %1140 = vmatpush1.msra.mxu0 0.0
    %1141 = vmatprep.subr.mxu0 0.0
    %1142 = vmatpush1.msra.mxu0 0.0
    %1143 = vmatprep.subr.mxu0 0.0
    %1144 = vmatpush1.msra.mxu0 0.0
    %1145 = vmatprep.subr.mxu0 0.0
    %1146 = vmatpush1.msra.mxu0 0.0
    %1147 = vmatprep.subr.mxu0 0.0
    %1148 = vmatpush1.msra.mxu0 0.0
    %1149 = vmatprep.subr.mxu0 0.0
    %1150 = vmatpush1.msra.mxu0 0.0
    %1151 = vmatprep.mubr.f32.mxu0 0.0
    %1152 = vmatmul.mubr.f32.gmra.mrb[0].mxu0 %v1085
    %v1153 = vpop.f32.mrb[0].mxu0
    %v1154 = vadd.f32 0.0, %v1153
    %v1155 = vpop.f32.mrb[0].mxu0
    %v1156 = vadd.f32 0.0, %v1155
    %1157 = vdwg.mxu0
    %v1160 = vrot.slane %v1154, 2
    %v1161 = vrot.slane %v1156, 2
    %v1164 = vadd.f32 %v1082, %v1160
    %v1165 = vadd.f32 %v1083, %v1161
    %v1166 = vxor.u32 %v1164, 2147483648
    %v1167 = vxor.u32 %v1165, 2147483648
    %v1168 = vmul.f32 %v1166, 1.442695
    %v1169 = vpow.pop %v1168
    %v1170 = vmul.f32 %v1167, 1.442695
    %v1171 = vpow.pop %v1170
    %v1172 = vadd.f32 %v1169, 1.0
    %v1173 = vadd.f32 %v1171, 1.0
    %v1174 = vrcp.pop %v1172
    %v1175 = vmul.f32 1.0, %v1174
    %v1176 = vrcp.pop %v1173
    %v1177 = vmul.f32 1.0, %v1176
    %v1178 = vtanh.pop %v1165
    %v1180 = vrot.slane %v1061, 6
    %v1182 = vmul.f32 %v1175, %v1180
    %1184 = vrot.lane.b32.xlu0 %v1178, 64
    %v1185 = vpop.permute.xlu0 %1184
    %v1187 = vmul.f32 %v1175, %v1185
    %1189 = vrot.lane.b32.xlu0 %v1187, 64
    %v1190 = vpop.permute.xlu0 %1189
    %v1192 = vadd.f32 %v1182, %v1190
    %v1193 = vtanh.pop %v1192
    %1195 = vrot.lane.b32.xlu0 %v1193, 64
    %v1196 = vpop.permute.xlu0 %1195
    %v1198 = vmul.f32 %v1177, %v1196
    %1199 = vst.msk [vmem:[#allocation3 + $0x8] sm:$0xc0] %vm680, %v1198
    %1201 = vrot.lane.b32.xlu0 %v1198, 96
    %v1202 = vpop.permute.xlu0 %1201
    %1204 = vrot.lane.b32.xlu0 %v1198, 32
    %v1205 = vpop.permute.xlu0 %1204
    %v1207 = vsel %vm290, %v1202, %v1205
    %1209 = vrot.lane.b32.xlu0 %v1207, 64
    %v1210 = vpop.permute.xlu0 %1209
    %1212 = vst.msk [vmem:[#allocation3 - $0x6] sm:$0xc0] %vm694, %v1210
    %v1213 = vld [vmem:[#allocation3] sm:$0xff]
    %v1214 = vld [vmem:[#allocation3 + $0x8] sm:$0xff]
    %v1215 = vld [vmem:[#allocation5 + $0x180] sm:$0xff]
    %v1216 = vld [vmem:[#allocation5 + $0x188] sm:$0xff]
    %v1217 = vld [vmem:[#allocation5 + $0x190] sm:$0xff]
    %v1218 = vld [vmem:[#allocation5 + $0x198] sm:$0xff]
    %v1219 = vld [vmem:[#allocation5 + $0x1a0] sm:$0xff]
    %v1220 = vld [vmem:[#allocation5 + $0x1a8] sm:$0xff]
    %v1221 = vld [vmem:[#allocation5 + $0x1b0] sm:$0xff]
    %v1222 = vld [vmem:[#allocation5 + $0x1b8] sm:$0xff]
    %v1223 = vld [vmem:[#allocation5 + $0x1c0] sm:$0xff]
    %v1224 = vld [vmem:[#allocation5 + $0x1c8] sm:$0xff]
    %v1225 = vld [vmem:[#allocation5 + $0x1d0] sm:$0xff]
    %v1226 = vld [vmem:[#allocation5 + $0x1d8] sm:$0xff]
    %v1227 = vld [vmem:[#allocation5 + $0x1e0] sm:$0xff]
    %v1228 = vld [vmem:[#allocation5 + $0x1e8] sm:$0xff]
    %v1229 = vld [vmem:[#allocation5 + $0x1f0] sm:$0xff]
    %v1230 = vld [vmem:[#allocation5 + $0x1f8] sm:$0xff]
    %v1231 = vld [vmem:[#allocation5 + $0x200] sm:$0xff]
    %v1232 = vld [vmem:[#allocation5 + $0x208] sm:$0xff]
    %v1233 = vld [vmem:[#allocation5 + $0x210] sm:$0xff]
    %v1234 = vld [vmem:[#allocation5 + $0x218] sm:$0xff]
    %v1235 = vld [vmem:[#allocation5 + $0x220] sm:$0xff]
    %v1236 = vld [vmem:[#allocation5 + $0x228] sm:$0xff]
    %v1237 = vld [vmem:[#allocation5 + $0x230] sm:$0xff]
    %v1238 = vld [vmem:[#allocation5 + $0x238] sm:$0xff]
    %v1239 = vld [vmem:[#allocation5 + $0x240] sm:$0xff]
    %v1240 = vld [vmem:[#allocation5 + $0x248] sm:$0xff]
    %v1241 = vld [vmem:[#allocation5 + $0x250] sm:$0xff]
    %v1242 = vld [vmem:[#allocation5 + $0x258] sm:$0xff]
    %v1243 = vld [vmem:[#allocation5 + $0x260] sm:$0xff]
    %v1244 = vld [vmem:[#allocation5 + $0x268] sm:$0xff]
    %v1245 = vld [vmem:[#allocation5 + $0x270] sm:$0xff]
    %v1246 = vld [vmem:[#allocation5 + $0x278] sm:$0xff]
    %s1247 = scalar_lea.vmem [#allocation5], 769
    %v1248 = vld [vmem:[%s1247] ss:$8 sm:$0x3]
    %v1249 = vld [vmem:[#allocation5 + $0x280] sm:$0xff]
    %v1250 = vld [vmem:[#allocation5 + $0x288] sm:$0xff]
    %v1251 = vld [vmem:[#allocation5 + $0x290] sm:$0xff]
    %v1252 = vld [vmem:[#allocation5 + $0x298] sm:$0xff]
    %v1253 = vld [vmem:[#allocation5 + $0x2a0] sm:$0xff]
    %v1254 = vld [vmem:[#allocation5 + $0x2a8] sm:$0xff]
    %v1255 = vld [vmem:[#allocation5 + $0x2b0] sm:$0xff]
    %v1256 = vld [vmem:[#allocation5 + $0x2b8] sm:$0xff]
    %v1257 = vld [vmem:[#allocation5 + $0x2c0] sm:$0xff]
    %v1258 = vld [vmem:[#allocation5 + $0x2c8] sm:$0xff]
    %v1259 = vld [vmem:[#allocation5 + $0x2d0] sm:$0xff]
    %v1260 = vld [vmem:[#allocation5 + $0x2d8] sm:$0xff]
    %v1261 = vld [vmem:[#allocation5 + $0x2e0] sm:$0xff]
    %v1262 = vld [vmem:[#allocation5 + $0x2e8] sm:$0xff]
    %v1263 = vld [vmem:[#allocation5 + $0x2f0] sm:$0xff]
    %v1264 = vld [vmem:[#allocation5 + $0x2f8] sm:$0xff]
    %v1266 = vlaneseq
    %v1267 = vshrl.u32 %v1266, 7
    %v1268 = vsub.s32 0, %v1267
    %v1269 = vrot.slane %v1248, %v1268
    %v1270 = vlaneseq
    %v1271 = vshrl.u32 %v1270, 7
    %v1272 = vsub.s32 1, %v1271
    %v1273 = vrot.slane %v1248, %v1272
    %1276 = vmatprep.subr.mxu0 %v1216
    %1277 = vmatpush1.msra.mxu0 %v1215
    %1278 = vmatprep.subr.mxu0 %v1218
    %1279 = vmatpush1.msra.mxu0 %v1217
    %1280 = vmatprep.subr.mxu0 %v1220
    %1281 = vmatpush1.msra.mxu0 %v1219
    %1282 = vmatprep.subr.mxu0 %v1222
    %1283 = vmatpush1.msra.mxu0 %v1221
    %1284 = vmatprep.subr.mxu0 %v1224
    %1285 = vmatpush1.msra.mxu0 %v1223
    %1286 = vmatprep.subr.mxu0 %v1226
    %1287 = vmatpush1.msra.mxu0 %v1225
    %1288 = vmatprep.subr.mxu0 %v1228
    %1289 = vmatpush1.msra.mxu0 %v1227
    %1290 = vmatprep.subr.mxu0 %v1230
    %1291 = vmatpush1.msra.mxu0 %v1229
    %1292 = vmatprep.subr.mxu0 %v1232
    %1293 = vmatpush1.msra.mxu0 %v1231
    %1294 = vmatprep.subr.mxu0 %v1234
    %1295 = vmatpush1.msra.mxu0 %v1233
    %1296 = vmatprep.subr.mxu0 %v1236
    %1297 = vmatpush1.msra.mxu0 %v1235
    %1298 = vmatprep.subr.mxu0 %v1238
    %1299 = vmatpush1.msra.mxu0 %v1237
    %1300 = vmatprep.subr.mxu0 %v1240
    %1301 = vmatpush1.msra.mxu0 %v1239
    %1302 = vmatprep.subr.mxu0 %v1242
    %1303 = vmatpush1.msra.mxu0 %v1241
    %1304 = vmatprep.subr.mxu0 %v1244
    %1305 = vmatpush1.msra.mxu0 %v1243
    %1306 = vmatprep.subr.mxu0 %v1246
    %1307 = vmatpush1.msra.mxu0 %v1245
    %1308 = vmatprep.subr.mxu0 0.0
    %1309 = vmatpush1.msra.mxu0 0.0
    %1310 = vmatprep.subr.mxu0 0.0
    %1311 = vmatpush1.msra.mxu0 0.0
    %1312 = vmatprep.subr.mxu0 0.0
    %1313 = vmatpush1.msra.mxu0 0.0
    %1314 = vmatprep.subr.mxu0 0.0
    %1315 = vmatpush1.msra.mxu0 0.0
    %1316 = vmatprep.subr.mxu0 0.0
    %1317 = vmatpush1.msra.mxu0 0.0
    %1318 = vmatprep.subr.mxu0 0.0
    %1319 = vmatpush1.msra.mxu0 0.0
    %1320 = vmatprep.subr.mxu0 0.0
    %1321 = vmatpush1.msra.mxu0 0.0
    %1322 = vmatprep.subr.mxu0 0.0
    %1323 = vmatpush1.msra.mxu0 0.0
    %1324 = vmatprep.subr.mxu0 0.0
    %1325 = vmatpush1.msra.mxu0 0.0
    %1326 = vmatprep.subr.mxu0 0.0
    %1327 = vmatpush1.msra.mxu0 0.0
    %1328 = vmatprep.subr.mxu0 0.0
    %1329 = vmatpush1.msra.mxu0 0.0
    %1330 = vmatprep.subr.mxu0 0.0
    %1331 = vmatpush1.msra.mxu0 0.0
    %1332 = vmatprep.subr.mxu0 0.0
    %1333 = vmatpush1.msra.mxu0 0.0
    %1334 = vmatprep.subr.mxu0 0.0
    %1335 = vmatpush1.msra.mxu0 0.0
    %1336 = vmatprep.subr.mxu0 0.0
    %1337 = vmatpush1.msra.mxu0 0.0
    %1338 = vmatprep.subr.mxu0 0.0
    %1339 = vmatpush1.msra.mxu0 0.0
    %1340 = vmatprep.mubr.f32.mxu0 0.0
    %1341 = vmatmul.mubr.f32.gmra.mrb[0].mxu0 %v1213
    %v1342 = vpop.f32.mrb[0].mxu0
    %v1343 = vadd.f32 %v1269, %v1342
    %v1344 = vpop.f32.mrb[0].mxu0
    %v1345 = vadd.f32 %v1273, %v1344
    %1346 = vmatprep.mubr.f32.mxu0 0.0
    %1347 = vmatmul.mubr.f32.gmra.mrb[0].mxu0 %v1214
    %v1348 = vpop.f32.mrb[0].mxu0
    %v1349 = vadd.f32 %v1269, %v1348
    %v1350 = vpop.f32.mrb[0].mxu0
    %v1351 = vadd.f32 %v1273, %v1350
    %1352 = vdwg.mxu0
    %1353 = vst [vmem:[#allocation2] sm:$0xff] %v1343
    %1354 = vst [vmem:[#allocation2 + $0x8] sm:$0xff] %v1345
    %1355 = vst [vmem:[#allocation2 + $0x10] sm:$0xff] %v1349
    %1356 = vst [vmem:[#allocation2 + $0x18] sm:$0xff] %v1351
    %v1357 = vld [vmem:[#allocation2] sm:$0x3]
    %v1358 = vld [vmem:[#allocation2 + $0x8] sm:$0x3]
    %1359 = vmatprep.subr.mxu0 %v1250
    %1360 = vmatpush1.msra.mxu0 %v1249
    %1361 = vmatprep.subr.mxu0 %v1252
    %1362 = vmatpush1.msra.mxu0 %v1251
    %1363 = vmatprep.subr.mxu0 %v1254
    %1364 = vmatpush1.msra.mxu0 %v1253
    %1365 = vmatprep.subr.mxu0 %v1256
    %1366 = vmatpush1.msra.mxu0 %v1255
    %1367 = vmatprep.subr.mxu0 %v1258
    %1368 = vmatpush1.msra.mxu0 %v1257
    %1369 = vmatprep.subr.mxu0 %v1260
    %1370 = vmatpush1.msra.mxu0 %v1259
    %1371 = vmatprep.subr.mxu0 %v1262
    %1372 = vmatpush1.msra.mxu0 %v1261
    %1373 = vmatprep.subr.mxu0 %v1264
    %1374 = vmatpush1.msra.mxu0 %v1263
    %1375 = vmatprep.subr.mxu0 0.0
    %1376 = vmatpush1.msra.mxu0 0.0
    %1377 = vmatprep.subr.mxu0 0.0
    %1378 = vmatpush1.msra.mxu0 0.0
    %1379 = vmatprep.subr.mxu0 0.0
    %1380 = vmatpush1.msra.mxu0 0.0
    %1381 = vmatprep.subr.mxu0 0.0
    %1382 = vmatpush1.msra.mxu0 0.0
    %1383 = vmatprep.subr.mxu0 0.0
    %1384 = vmatpush1.msra.mxu0 0.0
    %1385 = vmatprep.subr.mxu0 0.0
    %1386 = vmatpush1.msra.mxu0 0.0
    %1387 = vmatprep.subr.mxu0 0.0
    %1388 = vmatpush1.msra.mxu0 0.0
    %1389 = vmatprep.subr.mxu0 0.0
    %1390 = vmatpush1.msra.mxu0 0.0
    %1391 = vmatprep.subr.mxu0 0.0
    %1392 = vmatpush1.msra.mxu0 0.0
    %1393 = vmatprep.subr.mxu0 0.0
    %1394 = vmatpush1.msra.mxu0 0.0
    %1395 = vmatprep.subr.mxu0 0.0
    %1396 = vmatpush1.msra.mxu0 0.0
    %1397 = vmatprep.subr.mxu0 0.0
    %1398 = vmatpush1.msra.mxu0 0.0
    %1399 = vmatprep.subr.mxu0 0.0
    %1400 = vmatpush1.msra.mxu0 0.0
    %1401 = vmatprep.subr.mxu0 0.0
    %1402 = vmatpush1.msra.mxu0 0.0
    %1403 = vmatprep.subr.mxu0 0.0
    %1404 = vmatpush1.msra.mxu0 0.0
    %1405 = vmatprep.subr.mxu0 0.0
    %1406 = vmatpush1.msra.mxu0 0.0
    %1407 = vmatprep.subr.mxu0 0.0
    %1408 = vmatpush1.msra.mxu0 0.0
    %1409 = vmatprep.subr.mxu0 0.0
    %1410 = vmatpush1.msra.mxu0 0.0
    %1411 = vmatprep.subr.mxu0 0.0
    %1412 = vmatpush1.msra.mxu0 0.0
    %1413 = vmatprep.subr.mxu0 0.0
    %1414 = vmatpush1.msra.mxu0 0.0
    %1415 = vmatprep.subr.mxu0 0.0
    %1416 = vmatpush1.msra.mxu0 0.0
    %1417 = vmatprep.subr.mxu0 0.0
    %1418 = vmatpush1.msra.mxu0 0.0
    %1419 = vmatprep.subr.mxu0 0.0
    %1420 = vmatpush1.msra.mxu0 0.0
    %1421 = vmatprep.subr.mxu0 0.0
    %1422 = vmatpush1.msra.mxu0 0.0
    %1423 = vmatprep.mubr.f32.mxu0 0.0
    %1424 = vmatmul.mubr.f32.gmra.mrb[0].mxu0 %v176
    %v1425 = vpop.f32.mrb[0].mxu0
    %v1426 = vadd.f32 0.0, %v1425
    %v1427 = vpop.f32.mrb[0].mxu0
    %v1428 = vadd.f32 0.0, %v1427
    %1429 = vdwg.mxu0
    %v1430 = vadd.f32 %v1357, %v1426
    %v1431 = vadd.f32 %v1358, %v1428
    %v1432 = vxor.u32 %v1430, 2147483648
    %v1433 = vxor.u32 %v1431, 2147483648
    %v1434 = vmul.f32 %v1432, 1.442695
    %v1435 = vpow.pop %v1434
    %v1436 = vmul.f32 %v1433, 1.442695
    %v1437 = vpow.pop %v1436
    %v1438 = vadd.f32 %v1435, 1.0
    %v1439 = vadd.f32 %v1437, 1.0
    %v1440 = vrcp.pop %v1438
    %v1441 = vmul.f32 1.0, %v1440
    %v1442 = vrcp.pop %v1439
    %v1443 = vmul.f32 1.0, %v1442
    %v1444 = vtanh.pop %v1431
    %v1445 = vmul.f32 %v1441, 0.0
    %1447 = vrot.lane.b32.xlu0 %v1444, 64
    %v1448 = vpop.permute.xlu0 %1447
    %v1450 = vmul.f32 %v1441, %v1448
    %1452 = vrot.lane.b32.xlu0 %v1450, 64
    %v1453 = vpop.permute.xlu0 %1452
    %v1455 = vadd.f32 %v1445, %v1453
    %v1456 = vtanh.pop %v1455
    %1458 = vrot.lane.b32.xlu0 %v1456, 64
    %v1459 = vpop.permute.xlu0 %1458
    %v1461 = vmul.f32 %v1443, %v1459
    %vm1462 = vcmask 254976
    %1463 = vst.msk [vmem:[#allocation4] sm:$0x3] %vm1462, %v1461
    %vm1464 = vcmask 517376
    %1465 = vst.msk [vmem:[#allocation4 + $0xe] sm:$0x3] %vm1464, %v1461
    %v1466 = vld [vmem:[#allocation2] sm:$0xc]
    %v1467 = vld [vmem:[#allocation2 + $0x8] sm:$0xc]
    %v1469 = vsel %vm174, %v1461, 0
    %1471 = vmatprep.subr.mxu0 %v1250
    %1472 = vmatpush1.msra.mxu0 %v1249
    %1473 = vmatprep.subr.mxu0 %v1252
    %1474 = vmatpush1.msra.mxu0 %v1251
    %1475 = vmatprep.subr.mxu0 %v1254
    %1476 = vmatpush1.msra.mxu0 %v1253
    %1477 = vmatprep.subr.mxu0 %v1256
    %1478 = vmatpush1.msra.mxu0 %v1255
    %1479 = vmatprep.subr.mxu0 %v1258
    %1480 = vmatpush1.msra.mxu0 %v1257
    %1481 = vmatprep.subr.mxu0 %v1260
    %1482 = vmatpush1.msra.mxu0 %v1259
    %1483 = vmatprep.subr.mxu0 %v1262
    %1484 = vmatpush1.msra.mxu0 %v1261
    %1485 = vmatprep.subr.mxu0 %v1264
    %1486 = vmatpush1.msra.mxu0 %v1263
    %1487 = vmatprep.subr.mxu0 0.0
    %1488 = vmatpush1.msra.mxu0 0.0
    %1489 = vmatprep.subr.mxu0 0.0
    %1490 = vmatpush1.msra.mxu0 0.0
    %1491 = vmatprep.subr.mxu0 0.0
    %1492 = vmatpush1.msra.mxu0 0.0
    %1493 = vmatprep.subr.mxu0 0.0
    %1494 = vmatpush1.msra.mxu0 0.0
    %1495 = vmatprep.subr.mxu0 0.0
    %1496 = vmatpush1.msra.mxu0 0.0
    %1497 = vmatprep.subr.mxu0 0.0
    %1498 = vmatpush1.msra.mxu0 0.0
    %1499 = vmatprep.subr.mxu0 0.0
    %1500 = vmatpush1.msra.mxu0 0.0
    %1501 = vmatprep.subr.mxu0 0.0
    %1502 = vmatpush1.msra.mxu0 0.0
    %1503 = vmatprep.subr.mxu0 0.0
    %1504 = vmatpush1.msra.mxu0 0.0
    %1505 = vmatprep.subr.mxu0 0.0
    %1506 = vmatpush1.msra.mxu0 0.0
    %1507 = vmatprep.subr.mxu0 0.0
    %1508 = vmatpush1.msra.mxu0 0.0
    %1509 = vmatprep.subr.mxu0 0.0
    %1510 = vmatpush1.msra.mxu0 0.0
    %1511 = vmatprep.subr.mxu0 0.0
    %1512 = vmatpush1.msra.mxu0 0.0
    %1513 = vmatprep.subr.mxu0 0.0
    %1514 = vmatpush1.msra.mxu0 0.0
    %1515 = vmatprep.subr.mxu0 0.0
    %1516 = vmatpush1.msra.mxu0 0.0
    %1517 = vmatprep.subr.mxu0 0.0
    %1518 = vmatpush1.msra.mxu0 0.0
    %1519 = vmatprep.subr.mxu0 0.0
    %1520 = vmatpush1.msra.mxu0 0.0
    %1521 = vmatprep.subr.mxu0 0.0
    %1522 = vmatpush1.msra.mxu0 0.0
    %1523 = vmatprep.subr.mxu0 0.0
    %1524 = vmatpush1.msra.mxu0 0.0
    %1525 = vmatprep.subr.mxu0 0.0
    %1526 = vmatpush1.msra.mxu0 0.0
    %1527 = vmatprep.subr.mxu0 0.0
    %1528 = vmatpush1.msra.mxu0 0.0
    %1529 = vmatprep.subr.mxu0 0.0
    %1530 = vmatpush1.msra.mxu0 0.0
    %1531 = vmatprep.subr.mxu0 0.0
    %1532 = vmatpush1.msra.mxu0 0.0
    %1533 = vmatprep.subr.mxu0 0.0
    %1534 = vmatpush1.msra.mxu0 0.0
    %1535 = vmatprep.mubr.f32.mxu0 0.0
    %1536 = vmatmul.mubr.f32.gmra.mrb[0].mxu0 %v1469
    %v1537 = vpop.f32.mrb[0].mxu0
    %v1538 = vadd.f32 0.0, %v1537
    %v1539 = vpop.f32.mrb[0].mxu0
    %v1540 = vadd.f32 0.0, %v1539
    %1541 = vdwg.mxu0
    %v1544 = vrot.slane %v1538, 6
    %v1545 = vrot.slane %v1540, 6
    %v1548 = vadd.f32 %v1466, %v1544
    %v1549 = vadd.f32 %v1467, %v1545
    %v1550 = vxor.u32 %v1548, 2147483648
    %v1551 = vxor.u32 %v1549, 2147483648
    %v1552 = vmul.f32 %v1550, 1.442695
    %v1553 = vpow.pop %v1552
    %v1554 = vmul.f32 %v1551, 1.442695
    %v1555 = vpow.pop %v1554
    %v1556 = vadd.f32 %v1553, 1.0
    %v1557 = vadd.f32 %v1555, 1.0
    %v1558 = vrcp.pop %v1556
    %v1559 = vmul.f32 1.0, %v1558
    %v1560 = vrcp.pop %v1557
    %v1561 = vmul.f32 1.0, %v1560
    %v1562 = vtanh.pop %v1549
    %v1564 = vrot.slane %v1455, 6
    %v1566 = vmul.f32 %v1559, %v1564
    %1568 = vrot.lane.b32.xlu0 %v1562, 64
    %v1569 = vpop.permute.xlu0 %1568
    %v1571 = vmul.f32 %v1559, %v1569
    %1573 = vrot.lane.b32.xlu0 %v1571, 64
    %v1574 = vpop.permute.xlu0 %1573
    %v1576 = vadd.f32 %v1566, %v1574
    %v1577 = vtanh.pop %v1576
    %1579 = vrot.lane.b32.xlu0 %v1577, 64
    %v1580 = vpop.permute.xlu0 %1579
    %v1582 = vmul.f32 %v1561, %v1580
    %vm1583 = vcmask 257026
    %1584 = vst.msk [vmem:[#allocation4] sm:$0xc] %vm1583, %v1582
    %vm1585 = vcmask 519426
    %1586 = vst.msk [vmem:[#allocation4 + $0xa] sm:$0xc] %vm1585, %v1582
    %v1587 = vld [vmem:[#allocation2] sm:$0x30]
    %v1588 = vld [vmem:[#allocation2 + $0x8] sm:$0x30]
    %v1590 = vrot.slane %v1582, 2
    %v1591 = vsel %vm174, %v1590, 0
    %1593 = vmatprep.subr.mxu0 %v1250
    %1594 = vmatpush1.msra.mxu0 %v1249
    %1595 = vmatprep.subr.mxu0 %v1252
    %1596 = vmatpush1.msra.mxu0 %v1251
    %1597 = vmatprep.subr.mxu0 %v1254
    %1598 = vmatpush1.msra.mxu0 %v1253
    %1599 = vmatprep.subr.mxu0 %v1256
    %1600 = vmatpush1.msra.mxu0 %v1255
    %1601 = vmatprep.subr.mxu0 %v1258
    %1602 = vmatpush1.msra.mxu0 %v1257
    %1603 = vmatprep.subr.mxu0 %v1260
    %1604 = vmatpush1.msra.mxu0 %v1259
    %1605 = vmatprep.subr.mxu0 %v1262
    %1606 = vmatpush1.msra.mxu0 %v1261
    %1607 = vmatprep.subr.mxu0 %v1264
    %1608 = vmatpush1.msra.mxu0 %v1263
    %1609 = vmatprep.subr.mxu0 0.0
    %1610 = vmatpush1.msra.mxu0 0.0
    %1611 = vmatprep.subr.mxu0 0.0
    %1612 = vmatpush1.msra.mxu0 0.0
    %1613 = vmatprep.subr.mxu0 0.0
    %1614 = vmatpush1.msra.mxu0 0.0
    %1615 = vmatprep.subr.mxu0 0.0
    %1616 = vmatpush1.msra.mxu0 0.0
    %1617 = vmatprep.subr.mxu0 0.0
    %1618 = vmatpush1.msra.mxu0 0.0
    %1619 = vmatprep.subr.mxu0 0.0
    %1620 = vmatpush1.msra.mxu0 0.0
    %1621 = vmatprep.subr.mxu0 0.0
    %1622 = vmatpush1.msra.mxu0 0.0
    %1623 = vmatprep.subr.mxu0 0.0
    %1624 = vmatpush1.msra.mxu0 0.0
    %1625 = vmatprep.subr.mxu0 0.0
    %1626 = vmatpush1.msra.mxu0 0.0
    %1627 = vmatprep.subr.mxu0 0.0
    %1628 = vmatpush1.msra.mxu0 0.0
    %1629 = vmatprep.subr.mxu0 0.0
    %1630 = vmatpush1.msra.mxu0 0.0
    %1631 = vmatprep.subr.mxu0 0.0
    %1632 = vmatpush1.msra.mxu0 0.0
    %1633 = vmatprep.subr.mxu0 0.0
    %1634 = vmatpush1.msra.mxu0 0.0
    %1635 = vmatprep.subr.mxu0 0.0
    %1636 = vmatpush1.msra.mxu0 0.0
    %1637 = vmatprep.subr.mxu0 0.0
    %1638 = vmatpush1.msra.mxu0 0.0
    %1639 = vmatprep.subr.mxu0 0.0
    %1640 = vmatpush1.msra.mxu0 0.0
    %1641 = vmatprep.subr.mxu0 0.0
    %1642 = vmatpush1.msra.mxu0 0.0
    %1643 = vmatprep.subr.mxu0 0.0
    %1644 = vmatpush1.msra.mxu0 0.0
    %1645 = vmatprep.subr.mxu0 0.0
    %1646 = vmatpush1.msra.mxu0 0.0
    %1647 = vmatprep.subr.mxu0 0.0
    %1648 = vmatpush1.msra.mxu0 0.0
    %1649 = vmatprep.subr.mxu0 0.0
    %1650 = vmatpush1.msra.mxu0 0.0
    %1651 = vmatprep.subr.mxu0 0.0
    %1652 = vmatpush1.msra.mxu0 0.0
    %1653 = vmatprep.subr.mxu0 0.0
    %1654 = vmatpush1.msra.mxu0 0.0
    %1655 = vmatprep.subr.mxu0 0.0
    %1656 = vmatpush1.msra.mxu0 0.0
    %1657 = vmatprep.mubr.f32.mxu0 0.0
    %1658 = vmatmul.mubr.f32.gmra.mrb[0].mxu0 %v1591
    %v1659 = vpop.f32.mrb[0].mxu0
    %v1660 = vadd.f32 0.0, %v1659
    %v1661 = vpop.f32.mrb[0].mxu0
    %v1662 = vadd.f32 0.0, %v1661
    %1663 = vdwg.mxu0
    %v1666 = vrot.slane %v1660, 4
    %v1667 = vrot.slane %v1662, 4
    %v1670 = vadd.f32 %v1587, %v1666
    %v1671 = vadd.f32 %v1588, %v1667
    %v1672 = vxor.u32 %v1670, 2147483648
    %v1673 = vxor.u32 %v1671, 2147483648
    %v1674 = vmul.f32 %v1672, 1.442695
    %v1675 = vpow.pop %v1674
    %v1676 = vmul.f32 %v1673, 1.442695
    %v1677 = vpow.pop %v1676
    %v1678 = vadd.f32 %v1675, 1.0
    %v1679 = vadd.f32 %v1677, 1.0
    %v1680 = vrcp.pop %v1678
    %v1681 = vmul.f32 1.0, %v1680
    %v1682 = vrcp.pop %v1679
    %v1683 = vmul.f32 1.0, %v1682
    %v1684 = vtanh.pop %v1671
    %v1686 = vrot.slane %v1576, 6
    %v1688 = vmul.f32 %v1681, %v1686
    %1690 = vrot.lane.b32.xlu0 %v1684, 64
    %v1691 = vpop.permute.xlu0 %1690
    %v1693 = vmul.f32 %v1681, %v1691
    %1695 = vrot.lane.b32.xlu0 %v1693, 64
    %v1696 = vpop.permute.xlu0 %1695
    %v1698 = vadd.f32 %v1688, %v1696
    %v1699 = vtanh.pop %v1698
    %1701 = vrot.lane.b32.xlu0 %v1699, 64
    %v1702 = vpop.permute.xlu0 %1701
    %v1704 = vmul.f32 %v1683, %v1702
    %vm1705 = vcmask 259076
    %1706 = vst.msk [vmem:[#allocation4] sm:$0x30] %vm1705, %v1704
    %vm1707 = vcmask 521476
    %1708 = vst.msk [vmem:[#allocation4 + $0x6] sm:$0x30] %vm1707, %v1704
    %v1709 = vld [vmem:[#allocation2] sm:$0xc0]
    %v1710 = vld [vmem:[#allocation2 + $0x8] sm:$0xc0]
    %v1712 = vrot.slane %v1704, 4
    %v1713 = vsel %vm174, %v1712, 0
    %1715 = vmatprep.subr.mxu0 %v1250
    %1716 = vmatpush1.msra.mxu0 %v1249
    %1717 = vmatprep.subr.mxu0 %v1252
    %1718 = vmatpush1.msra.mxu0 %v1251
    %1719 = vmatprep.subr.mxu0 %v1254
    %1720 = vmatpush1.msra.mxu0 %v1253
    %1721 = vmatprep.subr.mxu0 %v1256
    %1722 = vmatpush1.msra.mxu0 %v1255
    %1723 = vmatprep.subr.mxu0 %v1258
    %1724 = vmatpush1.msra.mxu0 %v1257
    %1725 = vmatprep.subr.mxu0 %v1260
    %1726 = vmatpush1.msra.mxu0 %v1259
    %1727 = vmatprep.subr.mxu0 %v1262
    %1728 = vmatpush1.msra.mxu0 %v1261
    %1729 = vmatprep.subr.mxu0 %v1264
    %1730 = vmatpush1.msra.mxu0 %v1263
    %1731 = vmatprep.subr.mxu0 0.0
    %1732 = vmatpush1.msra.mxu0 0.0
    %1733 = vmatprep.subr.mxu0 0.0
    %1734 = vmatpush1.msra.mxu0 0.0
    %1735 = vmatprep.subr.mxu0 0.0
    %1736 = vmatpush1.msra.mxu0 0.0
    %1737 = vmatprep.subr.mxu0 0.0
    %1738 = vmatpush1.msra.mxu0 0.0
    %1739 = vmatprep.subr.mxu0 0.0
    %1740 = vmatpush1.msra.mxu0 0.0
    %1741 = vmatprep.subr.mxu0 0.0
    %1742 = vmatpush1.msra.mxu0 0.0
    %1743 = vmatprep.subr.mxu0 0.0
    %1744 = vmatpush1.msra.mxu0 0.0
    %1745 = vmatprep.subr.mxu0 0.0
    %1746 = vmatpush1.msra.mxu0 0.0
    %1747 = vmatprep.subr.mxu0 0.0
    %1748 = vmatpush1.msra.mxu0 0.0
    %1749 = vmatprep.subr.mxu0 0.0
    %1750 = vmatpush1.msra.mxu0 0.0
    %1751 = vmatprep.subr.mxu0 0.0
    %1752 = vmatpush1.msra.mxu0 0.0
    %1753 = vmatprep.subr.mxu0 0.0
    %1754 = vmatpush1.msra.mxu0 0.0
    %1755 = vmatprep.subr.mxu0 0.0
    %1756 = vmatpush1.msra.mxu0 0.0
    %1757 = vmatprep.subr.mxu0 0.0
    %1758 = vmatpush1.msra.mxu0 0.0
    %1759 = vmatprep.subr.mxu0 0.0
    %1760 = vmatpush1.msra.mxu0 0.0
    %1761 = vmatprep.subr.mxu0 0.0
    %1762 = vmatpush1.msra.mxu0 0.0
    %1763 = vmatprep.subr.mxu0 0.0
    %1764 = vmatpush1.msra.mxu0 0.0
    %1765 = vmatprep.subr.mxu0 0.0
    %1766 = vmatpush1.msra.mxu0 0.0
    %1767 = vmatprep.subr.mxu0 0.0
    %1768 = vmatpush1.msra.mxu0 0.0
    %1769 = vmatprep.subr.mxu0 0.0
    %1770 = vmatpush1.msra.mxu0 0.0
    %1771 = vmatprep.subr.mxu0 0.0
    %1772 = vmatpush1.msra.mxu0 0.0
    %1773 = vmatprep.subr.mxu0 0.0
    %1774 = vmatpush1.msra.mxu0 0.0
    %1775 = vmatprep.subr.mxu0 0.0
    %1776 = vmatpush1.msra.mxu0 0.0
    %1777 = vmatprep.subr.mxu0 0.0
    %1778 = vmatpush1.msra.mxu0 0.0
    %1779 = vmatprep.mubr.f32.mxu0 0.0
    %1780 = vmatmul.mubr.f32.gmra.mrb[0].mxu0 %v1713
    %v1781 = vpop.f32.mrb[0].mxu0
    %v1782 = vadd.f32 0.0, %v1781
    %v1783 = vpop.f32.mrb[0].mxu0
    %v1784 = vadd.f32 0.0, %v1783
    %1785 = vdwg.mxu0
    %v1788 = vrot.slane %v1782, 2
    %v1789 = vrot.slane %v1784, 2
    %v1792 = vadd.f32 %v1709, %v1788
    %v1793 = vadd.f32 %v1710, %v1789
    %v1794 = vxor.u32 %v1792, 2147483648
    %v1795 = vxor.u32 %v1793, 2147483648
    %v1796 = vmul.f32 %v1794, 1.442695
    %v1797 = vpow.pop %v1796
    %v1798 = vmul.f32 %v1795, 1.442695
    %v1799 = vpow.pop %v1798
    %v1800 = vadd.f32 %v1797, 1.0
    %v1801 = vadd.f32 %v1799, 1.0
    %v1802 = vrcp.pop %v1800
    %v1803 = vmul.f32 1.0, %v1802
    %v1804 = vrcp.pop %v1801
    %v1805 = vmul.f32 1.0, %v1804
    %v1806 = vtanh.pop %v1793
    %v1808 = vrot.slane %v1698, 6
    %v1810 = vmul.f32 %v1803, %v1808
    %1812 = vrot.lane.b32.xlu0 %v1806, 64
    %v1813 = vpop.permute.xlu0 %1812
    %v1815 = vmul.f32 %v1803, %v1813
    %1817 = vrot.lane.b32.xlu0 %v1815, 64
    %v1818 = vpop.permute.xlu0 %1817
    %v1820 = vadd.f32 %v1810, %v1818
    %v1821 = vtanh.pop %v1820
    %1823 = vrot.lane.b32.xlu0 %v1821, 64
    %v1824 = vpop.permute.xlu0 %1823
    %v1826 = vmul.f32 %v1805, %v1824
    %vm1827 = vcmask 261126
    %1828 = vst.msk [vmem:[#allocation4] sm:$0xc0] %vm1827, %v1826
    %vm1829 = vcmask 523526
    %1830 = vst.msk [vmem:[#allocation4 + $0x2] sm:$0xc0] %vm1829, %v1826
    %v1831 = vld [vmem:[#allocation2 + $0x10] sm:$0x3]
    %v1832 = vld [vmem:[#allocation2 + $0x18] sm:$0x3]
    %v1834 = vrot.slane %v1826, 6
    %v1835 = vsel %vm174, %v1834, 0
    %1837 = vmatprep.subr.mxu0 %v1250
    %1838 = vmatpush1.msra.mxu0 %v1249
    %1839 = vmatprep.subr.mxu0 %v1252
    %1840 = vmatpush1.msra.mxu0 %v1251
    %1841 = vmatprep.subr.mxu0 %v1254
    %1842 = vmatpush1.msra.mxu0 %v1253
    %1843 = vmatprep.subr.mxu0 %v1256
    %1844 = vmatpush1.msra.mxu0 %v1255
    %1845 = vmatprep.subr.mxu0 %v1258
    %1846 = vmatpush1.msra.mxu0 %v1257
    %1847 = vmatprep.subr.mxu0 %v1260
    %1848 = vmatpush1.msra.mxu0 %v1259
    %1849 = vmatprep.subr.mxu0 %v1262
    %1850 = vmatpush1.msra.mxu0 %v1261
    %1851 = vmatprep.subr.mxu0 %v1264
    %1852 = vmatpush1.msra.mxu0 %v1263
    %1853 = vmatprep.subr.mxu0 0.0
    %1854 = vmatpush1.msra.mxu0 0.0
    %1855 = vmatprep.subr.mxu0 0.0
    %1856 = vmatpush1.msra.mxu0 0.0
    %1857 = vmatprep.subr.mxu0 0.0
    %1858 = vmatpush1.msra.mxu0 0.0
    %1859 = vmatprep.subr.mxu0 0.0
    %1860 = vmatpush1.msra.mxu0 0.0
    %1861 = vmatprep.subr.mxu0 0.0
    %1862 = vmatpush1.msra.mxu0 0.0
    %1863 = vmatprep.subr.mxu0 0.0
    %1864 = vmatpush1.msra.mxu0 0.0
    %1865 = vmatprep.subr.mxu0 0.0
    %1866 = vmatpush1.msra.mxu0 0.0
    %1867 = vmatprep.subr.mxu0 0.0
    %1868 = vmatpush1.msra.mxu0 0.0
    %1869 = vmatprep.subr.mxu0 0.0
    %1870 = vmatpush1.msra.mxu0 0.0
    %1871 = vmatprep.subr.mxu0 0.0
    %1872 = vmatpush1.msra.mxu0 0.0
    %1873 = vmatprep.subr.mxu0 0.0
    %1874 = vmatpush1.msra.mxu0 0.0
    %1875 = vmatprep.subr.mxu0 0.0
    %1876 = vmatpush1.msra.mxu0 0.0
    %1877 = vmatprep.subr.mxu0 0.0
    %1878 = vmatpush1.msra.mxu0 0.0
    %1879 = vmatprep.subr.mxu0 0.0
    %1880 = vmatpush1.msra.mxu0 0.0
    %1881 = vmatprep.subr.mxu0 0.0
    %1882 = vmatpush1.msra.mxu0 0.0
    %1883 = vmatprep.subr.mxu0 0.0
    %1884 = vmatpush1.msra.mxu0 0.0
    %1885 = vmatprep.subr.mxu0 0.0
    %1886 = vmatpush1.msra.mxu0 0.0
    %1887 = vmatprep.subr.mxu0 0.0
    %1888 = vmatpush1.msra.mxu0 0.0
    %1889 = vmatprep.subr.mxu0 0.0
    %1890 = vmatpush1.msra.mxu0 0.0
    %1891 = vmatprep.subr.mxu0 0.0
    %1892 = vmatpush1.msra.mxu0 0.0
    %1893 = vmatprep.subr.mxu0 0.0
    %1894 = vmatpush1.msra.mxu0 0.0
    %1895 = vmatprep.subr.mxu0 0.0
    %1896 = vmatpush1.msra.mxu0 0.0
    %1897 = vmatprep.subr.mxu0 0.0
    %1898 = vmatpush1.msra.mxu0 0.0
    %1899 = vmatprep.subr.mxu0 0.0
    %1900 = vmatpush1.msra.mxu0 0.0
    %1901 = vmatprep.mubr.f32.mxu0 0.0
    %1902 = vmatmul.mubr.f32.gmra.mrb[0].mxu0 %v1835
    %v1903 = vpop.f32.mrb[0].mxu0
    %v1904 = vadd.f32 0.0, %v1903
    %v1905 = vpop.f32.mrb[0].mxu0
    %v1906 = vadd.f32 0.0, %v1905
    %1907 = vdwg.mxu0
    %v1908 = vadd.f32 %v1831, %v1904
    %v1909 = vadd.f32 %v1832, %v1906
    %v1910 = vxor.u32 %v1908, 2147483648
    %v1911 = vxor.u32 %v1909, 2147483648
    %v1912 = vmul.f32 %v1910, 1.442695
    %v1913 = vpow.pop %v1912
    %v1914 = vmul.f32 %v1911, 1.442695
    %v1915 = vpow.pop %v1914
    %v1916 = vadd.f32 %v1913, 1.0
    %v1917 = vadd.f32 %v1915, 1.0
    %v1918 = vrcp.pop %v1916
    %v1919 = vmul.f32 1.0, %v1918
    %v1920 = vrcp.pop %v1917
    %v1921 = vmul.f32 1.0, %v1920
    %v1922 = vtanh.pop %v1909
    %v1924 = vrot.slane %v1820, 6
    %v1926 = vmul.f32 %v1919, %v1924
    %1928 = vrot.lane.b32.xlu0 %v1922, 64
    %v1929 = vpop.permute.xlu0 %1928
    %v1931 = vmul.f32 %v1919, %v1929
    %1933 = vrot.lane.b32.xlu0 %v1931, 64
    %v1934 = vpop.permute.xlu0 %1933
    %v1936 = vadd.f32 %v1926, %v1934
    %v1937 = vtanh.pop %v1936
    %1939 = vrot.lane.b32.xlu0 %v1937, 64
    %v1940 = vpop.permute.xlu0 %1939
    %v1942 = vmul.f32 %v1921, %v1940
    %1943 = vst.msk [vmem:[#allocation4 + $0x8] sm:$0x3] %vm1462, %v1942
    %1944 = vst.msk [vmem:[#allocation4 + $0x6] sm:$0x3] %vm1464, %v1942
    %v1945 = vld [vmem:[#allocation2 + $0x10] sm:$0xc]
    %v1946 = vld [vmem:[#allocation2 + $0x18] sm:$0xc]
    %v1948 = vsel %vm174, %v1942, 0
    %1950 = vmatprep.subr.mxu0 %v1250
    %1951 = vmatpush1.msra.mxu0 %v1249
    %1952 = vmatprep.subr.mxu0 %v1252
    %1953 = vmatpush1.msra.mxu0 %v1251
    %1954 = vmatprep.subr.mxu0 %v1254
    %1955 = vmatpush1.msra.mxu0 %v1253
    %1956 = vmatprep.subr.mxu0 %v1256
    %1957 = vmatpush1.msra.mxu0 %v1255
    %1958 = vmatprep.subr.mxu0 %v1258
    %1959 = vmatpush1.msra.mxu0 %v1257
    %1960 = vmatprep.subr.mxu0 %v1260
    %1961 = vmatpush1.msra.mxu0 %v1259
    %1962 = vmatprep.subr.mxu0 %v1262
    %1963 = vmatpush1.msra.mxu0 %v1261
    %1964 = vmatprep.subr.mxu0 %v1264
    %1965 = vmatpush1.msra.mxu0 %v1263
    %1966 = vmatprep.subr.mxu0 0.0
    %1967 = vmatpush1.msra.mxu0 0.0
    %1968 = vmatprep.subr.mxu0 0.0
    %1969 = vmatpush1.msra.mxu0 0.0
    %1970 = vmatprep.subr.mxu0 0.0
    %1971 = vmatpush1.msra.mxu0 0.0
    %1972 = vmatprep.subr.mxu0 0.0
    %1973 = vmatpush1.msra.mxu0 0.0
    %1974 = vmatprep.subr.mxu0 0.0
    %1975 = vmatpush1.msra.mxu0 0.0
    %1976 = vmatprep.subr.mxu0 0.0
    %1977 = vmatpush1.msra.mxu0 0.0
    %1978 = vmatprep.subr.mxu0 0.0
    %1979 = vmatpush1.msra.mxu0 0.0
    %1980 = vmatprep.subr.mxu0 0.0
    %1981 = vmatpush1.msra.mxu0 0.0
    %1982 = vmatprep.subr.mxu0 0.0
    %1983 = vmatpush1.msra.mxu0 0.0
    %1984 = vmatprep.subr.mxu0 0.0
    %1985 = vmatpush1.msra.mxu0 0.0
    %1986 = vmatprep.subr.mxu0 0.0
    %1987 = vmatpush1.msra.mxu0 0.0
    %1988 = vmatprep.subr.mxu0 0.0
    %1989 = vmatpush1.msra.mxu0 0.0
    %1990 = vmatprep.subr.mxu0 0.0
    %1991 = vmatpush1.msra.mxu0 0.0
    %1992 = vmatprep.subr.mxu0 0.0
    %1993 = vmatpush1.msra.mxu0 0.0
    %1994 = vmatprep.subr.mxu0 0.0
    %1995 = vmatpush1.msra.mxu0 0.0
    %1996 = vmatprep.subr.mxu0 0.0
    %1997 = vmatpush1.msra.mxu0 0.0
    %1998 = vmatprep.subr.mxu0 0.0
    %1999 = vmatpush1.msra.mxu0 0.0
    %2000 = vmatprep.subr.mxu0 0.0
    %2001 = vmatpush1.msra.mxu0 0.0
    %2002 = vmatprep.subr.mxu0 0.0
    %2003 = vmatpush1.msra.mxu0 0.0
    %2004 = vmatprep.subr.mxu0 0.0
    %2005 = vmatpush1.msra.mxu0 0.0
    %2006 = vmatprep.subr.mxu0 0.0
    %2007 = vmatpush1.msra.mxu0 0.0
    %2008 = vmatprep.subr.mxu0 0.0
    %2009 = vmatpush1.msra.mxu0 0.0
    %2010 = vmatprep.subr.mxu0 0.0
    %2011 = vmatpush1.msra.mxu0 0.0
    %2012 = vmatprep.subr.mxu0 0.0
    %2013 = vmatpush1.msra.mxu0 0.0
    %2014 = vmatprep.mubr.f32.mxu0 0.0
    %2015 = vmatmul.mubr.f32.gmra.mrb[0].mxu0 %v1948
    %v2016 = vpop.f32.mrb[0].mxu0
    %v2017 = vadd.f32 0.0, %v2016
    %v2018 = vpop.f32.mrb[0].mxu0
    %v2019 = vadd.f32 0.0, %v2018
    %2020 = vdwg.mxu0
    %v2023 = vrot.slane %v2017, 6
    %v2024 = vrot.slane %v2019, 6
    %v2027 = vadd.f32 %v1945, %v2023
    %v2028 = vadd.f32 %v1946, %v2024
    %v2029 = vxor.u32 %v2027, 2147483648
    %v2030 = vxor.u32 %v2028, 2147483648
    %v2031 = vmul.f32 %v2029, 1.442695
    %v2032 = vpow.pop %v2031
    %v2033 = vmul.f32 %v2030, 1.442695
    %v2034 = vpow.pop %v2033
    %v2035 = vadd.f32 %v2032, 1.0
    %v2036 = vadd.f32 %v2034, 1.0
    %v2037 = vrcp.pop %v2035
    %v2038 = vmul.f32 1.0, %v2037
    %v2039 = vrcp.pop %v2036
    %v2040 = vmul.f32 1.0, %v2039
    %v2041 = vtanh.pop %v2028
    %v2043 = vrot.slane %v1936, 6
    %v2045 = vmul.f32 %v2038, %v2043
    %2047 = vrot.lane.b32.xlu0 %v2041, 64
    %v2048 = vpop.permute.xlu0 %2047
    %v2050 = vmul.f32 %v2038, %v2048
    %2052 = vrot.lane.b32.xlu0 %v2050, 64
    %v2053 = vpop.permute.xlu0 %2052
    %v2055 = vadd.f32 %v2045, %v2053
    %v2056 = vtanh.pop %v2055
    %2058 = vrot.lane.b32.xlu0 %v2056, 64
    %v2059 = vpop.permute.xlu0 %2058
    %v2061 = vmul.f32 %v2040, %v2059
    %2062 = vst.msk [vmem:[#allocation4 + $0x8] sm:$0xc] %vm1583, %v2061
    %2063 = vst.msk [vmem:[#allocation4 + $0x2] sm:$0xc] %vm1585, %v2061
    %v2064 = vld [vmem:[#allocation2 + $0x10] sm:$0x30]
    %v2065 = vld [vmem:[#allocation2 + $0x18] sm:$0x30]
    %v2067 = vrot.slane %v2061, 2
    %v2068 = vsel %vm174, %v2067, 0
    %2070 = vmatprep.subr.mxu0 %v1250
    %2071 = vmatpush1.msra.mxu0 %v1249
    %2072 = vmatprep.subr.mxu0 %v1252
    %2073 = vmatpush1.msra.mxu0 %v1251
    %2074 = vmatprep.subr.mxu0 %v1254
    %2075 = vmatpush1.msra.mxu0 %v1253
    %2076 = vmatprep.subr.mxu0 %v1256
    %2077 = vmatpush1.msra.mxu0 %v1255
    %2078 = vmatprep.subr.mxu0 %v1258
    %2079 = vmatpush1.msra.mxu0 %v1257
    %2080 = vmatprep.subr.mxu0 %v1260
    %2081 = vmatpush1.msra.mxu0 %v1259
    %2082 = vmatprep.subr.mxu0 %v1262
    %2083 = vmatpush1.msra.mxu0 %v1261
    %2084 = vmatprep.subr.mxu0 %v1264
    %2085 = vmatpush1.msra.mxu0 %v1263
    %2086 = vmatprep.subr.mxu0 0.0
    %2087 = vmatpush1.msra.mxu0 0.0
    %2088 = vmatprep.subr.mxu0 0.0
    %2089 = vmatpush1.msra.mxu0 0.0
    %2090 = vmatprep.subr.mxu0 0.0
    %2091 = vmatpush1.msra.mxu0 0.0
    %2092 = vmatprep.subr.mxu0 0.0
    %2093 = vmatpush1.msra.mxu0 0.0
    %2094 = vmatprep.subr.mxu0 0.0
    %2095 = vmatpush1.msra.mxu0 0.0
    %2096 = vmatprep.subr.mxu0 0.0
    %2097 = vmatpush1.msra.mxu0 0.0
    %2098 = vmatprep.subr.mxu0 0.0
    %2099 = vmatpush1.msra.mxu0 0.0
    %2100 = vmatprep.subr.mxu0 0.0
    %2101 = vmatpush1.msra.mxu0 0.0
    %2102 = vmatprep.subr.mxu0 0.0
    %2103 = vmatpush1.msra.mxu0 0.0
    %2104 = vmatprep.subr.mxu0 0.0
    %2105 = vmatpush1.msra.mxu0 0.0
    %2106 = vmatprep.subr.mxu0 0.0
    %2107 = vmatpush1.msra.mxu0 0.0
    %2108 = vmatprep.subr.mxu0 0.0
    %2109 = vmatpush1.msra.mxu0 0.0
    %2110 = vmatprep.subr.mxu0 0.0
    %2111 = vmatpush1.msra.mxu0 0.0
    %2112 = vmatprep.subr.mxu0 0.0
    %2113 = vmatpush1.msra.mxu0 0.0
    %2114 = vmatprep.subr.mxu0 0.0
    %2115 = vmatpush1.msra.mxu0 0.0
    %2116 = vmatprep.subr.mxu0 0.0
    %2117 = vmatpush1.msra.mxu0 0.0
    %2118 = vmatprep.subr.mxu0 0.0
    %2119 = vmatpush1.msra.mxu0 0.0
    %2120 = vmatprep.subr.mxu0 0.0
    %2121 = vmatpush1.msra.mxu0 0.0
    %2122 = vmatprep.subr.mxu0 0.0
    %2123 = vmatpush1.msra.mxu0 0.0
    %2124 = vmatprep.subr.mxu0 0.0
    %2125 = vmatpush1.msra.mxu0 0.0
    %2126 = vmatprep.subr.mxu0 0.0
    %2127 = vmatpush1.msra.mxu0 0.0
    %2128 = vmatprep.subr.mxu0 0.0
    %2129 = vmatpush1.msra.mxu0 0.0
    %2130 = vmatprep.subr.mxu0 0.0
    %2131 = vmatpush1.msra.mxu0 0.0
    %2132 = vmatprep.subr.mxu0 0.0
    %2133 = vmatpush1.msra.mxu0 0.0
    %2134 = vmatprep.mubr.f32.mxu0 0.0
    %2135 = vmatmul.mubr.f32.gmra.mrb[0].mxu0 %v2068
    %v2136 = vpop.f32.mrb[0].mxu0
    %v2137 = vadd.f32 0.0, %v2136
    %v2138 = vpop.f32.mrb[0].mxu0
    %v2139 = vadd.f32 0.0, %v2138
    %2140 = vdwg.mxu0
    %v2143 = vrot.slane %v2137, 4
    %v2144 = vrot.slane %v2139, 4
    %v2147 = vadd.f32 %v2064, %v2143
    %v2148 = vadd.f32 %v2065, %v2144
    %v2149 = vxor.u32 %v2147, 2147483648
    %v2150 = vxor.u32 %v2148, 2147483648
    %v2151 = vmul.f32 %v2149, 1.442695
    %v2152 = vpow.pop %v2151
    %v2153 = vmul.f32 %v2150, 1.442695
    %v2154 = vpow.pop %v2153
    %v2155 = vadd.f32 %v2152, 1.0
    %v2156 = vadd.f32 %v2154, 1.0
    %v2157 = vrcp.pop %v2155
    %v2158 = vmul.f32 1.0, %v2157
    %v2159 = vrcp.pop %v2156
    %v2160 = vmul.f32 1.0, %v2159
    %v2161 = vtanh.pop %v2148
    %v2163 = vrot.slane %v2055, 6
    %v2165 = vmul.f32 %v2158, %v2163
    %2167 = vrot.lane.b32.xlu0 %v2161, 64
    %v2168 = vpop.permute.xlu0 %2167
    %v2170 = vmul.f32 %v2158, %v2168
    %2172 = vrot.lane.b32.xlu0 %v2170, 64
    %v2173 = vpop.permute.xlu0 %2172
    %v2175 = vadd.f32 %v2165, %v2173
    %v2176 = vtanh.pop %v2175
    %2178 = vrot.lane.b32.xlu0 %v2176, 64
    %v2179 = vpop.permute.xlu0 %2178
    %v2181 = vmul.f32 %v2160, %v2179
    %2182 = vst.msk [vmem:[#allocation4 + $0x8] sm:$0x30] %vm1705, %v2181
    %2183 = vst.msk [vmem:[#allocation4 - $0x2] sm:$0x30] %vm1707, %v2181
    %v2184 = vld [vmem:[#allocation2 + $0x10] sm:$0xc0]
    %v2185 = vld [vmem:[#allocation2 + $0x18] sm:$0xc0]
    %v2187 = vrot.slane %v2181, 4
    %v2188 = vsel %vm174, %v2187, 0
    %2190 = vmatprep.subr.mxu0 %v1250
    %2191 = vmatpush1.msra.mxu0 %v1249
    %2192 = vmatprep.subr.mxu0 %v1252
    %2193 = vmatpush1.msra.mxu0 %v1251
    %2194 = vmatprep.subr.mxu0 %v1254
    %2195 = vmatpush1.msra.mxu0 %v1253
    %2196 = vmatprep.subr.mxu0 %v1256
    %2197 = vmatpush1.msra.mxu0 %v1255
    %2198 = vmatprep.subr.mxu0 %v1258
    %2199 = vmatpush1.msra.mxu0 %v1257
    %2200 = vmatprep.subr.mxu0 %v1260
    %2201 = vmatpush1.msra.mxu0 %v1259
    %2202 = vmatprep.subr.mxu0 %v1262
    %2203 = vmatpush1.msra.mxu0 %v1261
    %2204 = vmatprep.subr.mxu0 %v1264
    %2205 = vmatpush1.msra.mxu0 %v1263
    %2206 = vmatprep.subr.mxu0 0.0
    %2207 = vmatpush1.msra.mxu0 0.0
    %2208 = vmatprep.subr.mxu0 0.0
    %2209 = vmatpush1.msra.mxu0 0.0
    %2210 = vmatprep.subr.mxu0 0.0
    %2211 = vmatpush1.msra.mxu0 0.0
    %2212 = vmatprep.subr.mxu0 0.0
    %2213 = vmatpush1.msra.mxu0 0.0
    %2214 = vmatprep.subr.mxu0 0.0
    %2215 = vmatpush1.msra.mxu0 0.0
    %2216 = vmatprep.subr.mxu0 0.0
    %2217 = vmatpush1.msra.mxu0 0.0
    %2218 = vmatprep.subr.mxu0 0.0
    %2219 = vmatpush1.msra.mxu0 0.0
    %2220 = vmatprep.subr.mxu0 0.0
    %2221 = vmatpush1.msra.mxu0 0.0
    %2222 = vmatprep.subr.mxu0 0.0
    %2223 = vmatpush1.msra.mxu0 0.0
    %2224 = vmatprep.subr.mxu0 0.0
    %2225 = vmatpush1.msra.mxu0 0.0
    %2226 = vmatprep.subr.mxu0 0.0
    %2227 = vmatpush1.msra.mxu0 0.0
    %2228 = vmatprep.subr.mxu0 0.0
    %2229 = vmatpush1.msra.mxu0 0.0
    %2230 = vmatprep.subr.mxu0 0.0
    %2231 = vmatpush1.msra.mxu0 0.0
    %2232 = vmatprep.subr.mxu0 0.0
    %2233 = vmatpush1.msra.mxu0 0.0
    %2234 = vmatprep.subr.mxu0 0.0
    %2235 = vmatpush1.msra.mxu0 0.0
    %2236 = vmatprep.subr.mxu0 0.0
    %2237 = vmatpush1.msra.mxu0 0.0
    %2238 = vmatprep.subr.mxu0 0.0
    %2239 = vmatpush1.msra.mxu0 0.0
    %2240 = vmatprep.subr.mxu0 0.0
    %2241 = vmatpush1.msra.mxu0 0.0
    %2242 = vmatprep.subr.mxu0 0.0
    %2243 = vmatpush1.msra.mxu0 0.0
    %2244 = vmatprep.subr.mxu0 0.0
    %2245 = vmatpush1.msra.mxu0 0.0
    %2246 = vmatprep.subr.mxu0 0.0
    %2247 = vmatpush1.msra.mxu0 0.0
    %2248 = vmatprep.subr.mxu0 0.0
    %2249 = vmatpush1.msra.mxu0 0.0
    %2250 = vmatprep.subr.mxu0 0.0
    %2251 = vmatpush1.msra.mxu0 0.0
    %2252 = vmatprep.subr.mxu0 0.0
    %2253 = vmatpush1.msra.mxu0 0.0
    %2254 = vmatprep.mubr.f32.mxu0 0.0
    %2255 = vmatmul.mubr.f32.gmra.mrb[0].mxu0 %v2188
    %v2256 = vpop.f32.mrb[0].mxu0
    %v2257 = vadd.f32 0.0, %v2256
    %v2258 = vpop.f32.mrb[0].mxu0
    %v2259 = vadd.f32 0.0, %v2258
    %2260 = vdwg.mxu0
    %v2263 = vrot.slane %v2257, 2
    %v2264 = vrot.slane %v2259, 2
    %v2267 = vadd.f32 %v2184, %v2263
    %v2268 = vadd.f32 %v2185, %v2264
    %v2269 = vxor.u32 %v2267, 2147483648
    %v2270 = vxor.u32 %v2268, 2147483648
    %v2271 = vmul.f32 %v2269, 1.442695
    %v2272 = vpow.pop %v2271
    %v2273 = vmul.f32 %v2270, 1.442695
    %v2274 = vpow.pop %v2273
    %v2275 = vadd.f32 %v2272, 1.0
    %v2276 = vadd.f32 %v2274, 1.0
    %v2277 = vrcp.pop %v2275
    %v2278 = vmul.f32 1.0, %v2277
    %v2279 = vrcp.pop %v2276
    %v2280 = vmul.f32 1.0, %v2279
    %v2281 = vtanh.pop %v2268
    %v2283 = vrot.slane %v2175, 6
    %v2285 = vmul.f32 %v2278, %v2283
    %2287 = vrot.lane.b32.xlu0 %v2281, 64
    %v2288 = vpop.permute.xlu0 %2287
    %v2290 = vmul.f32 %v2278, %v2288
    %2292 = vrot.lane.b32.xlu0 %v2290, 64
    %v2293 = vpop.permute.xlu0 %2292
    %v2295 = vadd.f32 %v2285, %v2293
    %v2296 = vtanh.pop %v2295
    %2298 = vrot.lane.b32.xlu0 %v2296, 64
    %v2299 = vpop.permute.xlu0 %2298
    %v2301 = vmul.f32 %v2280, %v2299
    %2302 = vst.msk [vmem:[#allocation4 + $0x8] sm:$0xc0] %vm1827, %v2301
    %2303 = vst.msk [vmem:[#allocation4 - $0x6] sm:$0xc0] %vm1829, %v2301
    %v2304 = vld [vmem:[#allocation4] sm:$0xff]
    %v2305 = vld [vmem:[#allocation4 + $0x8] sm:$0xff]
    %v2306 = vld [vmem:[%s2] sm:$0xff]
    %v2307 = vld [vmem:[%s2 + $0x8] sm:$0xff]
    %v2308 = vld [vmem:[%s2 + $0x10] sm:$0xff]
    %v2309 = vld [vmem:[%s2 + $0x18] sm:$0xff]
    %v2310 = vld [vmem:[%s2 + $0x20] sm:$0xff]
    %v2311 = vld [vmem:[%s2 + $0x28] sm:$0xff]
    %v2312 = vld [vmem:[%s2 + $0x30] sm:$0xff]
    %v2313 = vld [vmem:[%s2 + $0x38] sm:$0xff]
    %v2314 = vld [vmem:[%s2 + $0x40] sm:$0xff]
    %v2315 = vld [vmem:[%s2 + $0x48] sm:$0xff]
    %v2316 = vld [vmem:[%s2 + $0x50] sm:$0xff]
    %v2317 = vld [vmem:[%s2 + $0x58] sm:$0xff]
    %v2318 = vld [vmem:[%s2 + $0x60] sm:$0xff]
    %v2319 = vld [vmem:[%s2 + $0x68] sm:$0xff]
    %v2320 = vld [vmem:[%s2 + $0x70] sm:$0xff]
    %v2321 = vld [vmem:[%s2 + $0x78] sm:$0xff]
    %2338 = vrot.lane.b32.xlu0 %v2306, 64
    %v2339 = vpop.permute.xlu0 %2338
    %2340 = vrot.lane.b32.xlu0 %v2307, 64
    %v2341 = vpop.permute.xlu0 %2340
    %2342 = vrot.lane.b32.xlu0 %v2308, 64
    %v2343 = vpop.permute.xlu0 %2342
    %2344 = vrot.lane.b32.xlu0 %v2309, 64
    %v2345 = vpop.permute.xlu0 %2344
    %2346 = vrot.lane.b32.xlu0 %v2310, 64
    %v2347 = vpop.permute.xlu0 %2346
    %2348 = vrot.lane.b32.xlu0 %v2311, 64
    %v2349 = vpop.permute.xlu0 %2348
    %2350 = vrot.lane.b32.xlu0 %v2312, 64
    %v2351 = vpop.permute.xlu0 %2350
    %2352 = vrot.lane.b32.xlu0 %v2313, 64
    %v2353 = vpop.permute.xlu0 %2352
    %2354 = vrot.lane.b32.xlu0 %v2314, 64
    %v2355 = vpop.permute.xlu0 %2354
    %2356 = vrot.lane.b32.xlu0 %v2315, 64
    %v2357 = vpop.permute.xlu0 %2356
    %2358 = vrot.lane.b32.xlu0 %v2316, 64
    %v2359 = vpop.permute.xlu0 %2358
    %2360 = vrot.lane.b32.xlu0 %v2317, 64
    %v2361 = vpop.permute.xlu0 %2360
    %2362 = vrot.lane.b32.xlu0 %v2318, 64
    %v2363 = vpop.permute.xlu0 %2362
    %2364 = vrot.lane.b32.xlu0 %v2319, 64
    %v2365 = vpop.permute.xlu0 %2364
    %2366 = vrot.lane.b32.xlu0 %v2320, 64
    %v2367 = vpop.permute.xlu0 %2366
    %2368 = vrot.lane.b32.xlu0 %v2321, 64
    %v2369 = vpop.permute.xlu0 %2368
    %v2386 = vsel %vm174, %v2306, 0
    %v2388 = vsel %vm174, %v2307, 0
    %v2390 = vsel %vm174, %v2308, 0
    %v2392 = vsel %vm174, %v2309, 0
    %v2394 = vsel %vm174, %v2310, 0
    %v2396 = vsel %vm174, %v2311, 0
    %v2398 = vsel %vm174, %v2312, 0
    %v2400 = vsel %vm174, %v2313, 0
    %v2402 = vsel %vm174, %v2314, 0
    %v2404 = vsel %vm174, %v2315, 0
    %v2406 = vsel %vm174, %v2316, 0
    %v2408 = vsel %vm174, %v2317, 0
    %v2410 = vsel %vm174, %v2318, 0
    %v2412 = vsel %vm174, %v2319, 0
    %v2414 = vsel %vm174, %v2320, 0
    %v2416 = vsel %vm174, %v2321, 0
    %v2419 = vsel %vm174, %v2304, 0
    %v2422 = vsel %vm174, %v2305, 0
    %2424 = vmatprep.subr.mxu0 0.0
    %2425 = vmatpush1.xpose.msra.mxu0 %v2419
    %2426 = vmatprep.subr.mxu0 0.0
    %2427 = vmatpush1.xpose.msra.mxu0 %v2422
    %2428 = vmatprep.subr.mxu0 0.0
    %2429 = vmatpush1.xpose.msra.mxu0 0.0
    %2430 = vmatprep.subr.mxu0 0.0
    %2431 = vmatpush1.xpose.msra.mxu0 0.0
    %2432 = vmatprep.subr.mxu0 0.0
    %2433 = vmatpush1.xpose.msra.mxu0 0.0
    %2434 = vmatprep.subr.mxu0 0.0
    %2435 = vmatpush1.xpose.msra.mxu0 0.0
    %2436 = vmatprep.subr.mxu0 0.0
    %2437 = vmatpush1.xpose.msra.mxu0 0.0
    %2438 = vmatprep.subr.mxu0 0.0
    %2439 = vmatpush1.xpose.msra.mxu0 0.0
    %2440 = vmatprep.subr.mxu0 0.0
    %2441 = vmatpush1.xpose.msra.mxu0 0.0
    %2442 = vmatprep.subr.mxu0 0.0
    %2443 = vmatpush1.xpose.msra.mxu0 0.0
    %2444 = vmatprep.subr.mxu0 0.0
    %2445 = vmatpush1.xpose.msra.mxu0 0.0
    %2446 = vmatprep.subr.mxu0 0.0
    %2447 = vmatpush1.xpose.msra.mxu0 0.0
    %2448 = vmatprep.subr.mxu0 0.0
    %2449 = vmatpush1.xpose.msra.mxu0 0.0
    %2450 = vmatprep.subr.mxu0 0.0
    %2451 = vmatpush1.xpose.msra.mxu0 0.0
    %2452 = vmatprep.subr.mxu0 0.0
    %2453 = vmatpush1.xpose.msra.mxu0 0.0
    %2454 = vmatprep.subr.mxu0 0.0
    %2455 = vmatpush1.xpose.msra.mxu0 0.0
    %2456 = vmatprep.subr.mxu0 0.0
    %2457 = vmatpush1.xpose.msra.mxu0 0.0
    %2458 = vmatprep.subr.mxu0 0.0
    %2459 = vmatpush1.xpose.msra.mxu0 0.0
    %2460 = vmatprep.subr.mxu0 0.0
    %2461 = vmatpush1.xpose.msra.mxu0 0.0
    %2462 = vmatprep.subr.mxu0 0.0
    %2463 = vmatpush1.xpose.msra.mxu0 0.0
    %2464 = vmatprep.subr.mxu0 0.0
    %2465 = vmatpush1.xpose.msra.mxu0 0.0
    %2466 = vmatprep.subr.mxu0 0.0
    %2467 = vmatpush1.xpose.msra.mxu0 0.0
    %2468 = vmatprep.subr.mxu0 0.0
    %2469 = vmatpush1.xpose.msra.mxu0 0.0
    %2470 = vmatprep.subr.mxu0 0.0
    %2471 = vmatpush1.xpose.msra.mxu0 0.0
    %2472 = vmatprep.subr.mxu0 0.0
    %2473 = vmatpush1.xpose.msra.mxu0 0.0
    %2474 = vmatprep.subr.mxu0 0.0
    %2475 = vmatpush1.xpose.msra.mxu0 0.0
    %2476 = vmatprep.subr.mxu0 0.0
    %2477 = vmatpush1.xpose.msra.mxu0 0.0
    %2478 = vmatprep.subr.mxu0 0.0
    %2479 = vmatpush1.xpose.msra.mxu0 0.0
    %2480 = vmatprep.subr.mxu0 0.0
    %2481 = vmatpush1.xpose.msra.mxu0 0.0
    %2482 = vmatprep.subr.mxu0 0.0
    %2483 = vmatpush1.xpose.msra.mxu0 0.0
    %2484 = vmatprep.subr.mxu0 0.0
    %2485 = vmatpush1.xpose.msra.mxu0 0.0
    %2486 = vmatprep.subr.mxu0 0.0
    %2487 = vmatpush1.xpose.msra.mxu0 0.0
    %2488 = vmatprep.mubr.f32.mxu0 0.0
    %2489 = vmatmul.mubr.f32.gmra.mrb[0].mxu0 %v2386
    %v2490 = vpop.f32.mrb[0].mxu0
    %v2491 = vadd.f32 %v2339, %v2490
    %v2492 = vpop.f32.mrb[0].mxu0
    %2493 = vmatprep.mubr.f32.mxu0 0.0
    %2494 = vmatmul.mubr.f32.gmra.mrb[0].mxu0 %v2388
    %v2495 = vpop.f32.mrb[0].mxu0
    %v2496 = vadd.f32 %v2341, %v2495
    %v2497 = vpop.f32.mrb[0].mxu0
    %2498 = vmatprep.mubr.f32.mxu0 0.0
    %2499 = vmatmul.mubr.f32.gmra.mrb[0].mxu0 %v2390
    %v2500 = vpop.f32.mrb[0].mxu0
    %v2501 = vadd.f32 %v2343, %v2500
    %v2502 = vpop.f32.mrb[0].mxu0
    %2503 = vmatprep.mubr.f32.mxu0 0.0
    %2504 = vmatmul.mubr.f32.gmra.mrb[0].mxu0 %v2392
    %v2505 = vpop.f32.mrb[0].mxu0
    %v2506 = vadd.f32 %v2345, %v2505
    %v2507 = vpop.f32.mrb[0].mxu0
    %2508 = vmatprep.mubr.f32.mxu0 0.0
    %2509 = vmatmul.mubr.f32.gmra.mrb[0].mxu0 %v2394
    %v2510 = vpop.f32.mrb[0].mxu0
    %v2511 = vadd.f32 %v2347, %v2510
    %v2512 = vpop.f32.mrb[0].mxu0
    %2513 = vmatprep.mubr.f32.mxu0 0.0
    %2514 = vmatmul.mubr.f32.gmra.mrb[0].mxu0 %v2396
    %v2515 = vpop.f32.mrb[0].mxu0
    %v2516 = vadd.f32 %v2349, %v2515
    %v2517 = vpop.f32.mrb[0].mxu0
    %2518 = vmatprep.mubr.f32.mxu0 0.0
    %2519 = vmatmul.mubr.f32.gmra.mrb[0].mxu0 %v2398
    %v2520 = vpop.f32.mrb[0].mxu0
    %v2521 = vadd.f32 %v2351, %v2520
    %v2522 = vpop.f32.mrb[0].mxu0
    %2523 = vmatprep.mubr.f32.mxu0 0.0
    %2524 = vmatmul.mubr.f32.gmra.mrb[0].mxu0 %v2400
    %v2525 = vpop.f32.mrb[0].mxu0
    %v2526 = vadd.f32 %v2353, %v2525
    %v2527 = vpop.f32.mrb[0].mxu0
    %2528 = vmatprep.mubr.f32.mxu0 0.0
    %2529 = vmatmul.mubr.f32.gmra.mrb[0].mxu0 %v2402
    %v2530 = vpop.f32.mrb[0].mxu0
    %v2531 = vadd.f32 %v2355, %v2530
    %v2532 = vpop.f32.mrb[0].mxu0
    %2533 = vmatprep.mubr.f32.mxu0 0.0
    %2534 = vmatmul.mubr.f32.gmra.mrb[0].mxu0 %v2404
    %v2535 = vpop.f32.mrb[0].mxu0
    %v2536 = vadd.f32 %v2357, %v2535
    %v2537 = vpop.f32.mrb[0].mxu0
    %2538 = vmatprep.mubr.f32.mxu0 0.0
    %2539 = vmatmul.mubr.f32.gmra.mrb[0].mxu0 %v2406
    %v2540 = vpop.f32.mrb[0].mxu0
    %v2541 = vadd.f32 %v2359, %v2540
    %v2542 = vpop.f32.mrb[0].mxu0
    %2543 = vmatprep.mubr.f32.mxu0 0.0
    %2544 = vmatmul.mubr.f32.gmra.mrb[0].mxu0 %v2408
    %v2545 = vpop.f32.mrb[0].mxu0
    %v2546 = vadd.f32 %v2361, %v2545
    %v2547 = vpop.f32.mrb[0].mxu0
    %2548 = vmatprep.mubr.f32.mxu0 0.0
    %2549 = vmatmul.mubr.f32.gmra.mrb[0].mxu0 %v2410
    %v2550 = vpop.f32.mrb[0].mxu0
    %v2551 = vadd.f32 %v2363, %v2550
    %v2552 = vpop.f32.mrb[0].mxu0
    %2553 = vmatprep.mubr.f32.mxu0 0.0
    %2554 = vmatmul.mubr.f32.gmra.mrb[0].mxu0 %v2412
    %v2555 = vpop.f32.mrb[0].mxu0
    %v2556 = vadd.f32 %v2365, %v2555
    %v2557 = vpop.f32.mrb[0].mxu0
    %2558 = vmatprep.mubr.f32.mxu0 0.0
    %2559 = vmatmul.mubr.f32.gmra.mrb[0].mxu0 %v2414
    %v2560 = vpop.f32.mrb[0].mxu0
    %v2561 = vadd.f32 %v2367, %v2560
    %v2562 = vpop.f32.mrb[0].mxu0
    %2563 = vmatprep.mubr.f32.mxu0 0.0
    %2564 = vmatmul.mubr.f32.gmra.mrb[0].mxu0 %v2416
    %v2565 = vpop.f32.mrb[0].mxu0
    %v2566 = vadd.f32 %v2369, %v2565
    %v2567 = vpop.f32.mrb[0].mxu0
    %2568 = vdwg.mxu0
    %v2569 = vld [vmem:[%s2 + $0x80] sm:$0xff]
    %v2570 = vld [vmem:[%s2 + $0x88] sm:$0xff]
    %v2571 = vld [vmem:[%s2 + $0x90] sm:$0xff]
    %v2572 = vld [vmem:[%s2 + $0x98] sm:$0xff]
    %vm2573 = vcmask 130048
    %v2575 = vsel %vm2573, %v2531, 0
    %v2578 = vsel %vm2573, %v2536, 0
    %v2581 = vsel %vm2573, %v2541, 0
    %v2584 = vsel %vm2573, %v2546, 0
    %v2587 = vsel %vm2573, %v2551, 0
    %v2590 = vsel %vm2573, %v2556, 0
    %v2593 = vsel %vm2573, %v2561, 0
    %v2596 = vsel %vm2573, %v2566, 0
    %2598 = vmatprep.subr.mxu0 0.0
    %2599 = vmatpush1.msra.mxu0 %v2571
    %2600 = vmatprep.subr.mxu0 0.0
    %2601 = vmatpush1.msra.mxu0 %v2572
    %2602 = vmatprep.subr.mxu0 0.0
    %2603 = vmatpush1.msra.mxu0 0.0
    %2604 = vmatprep.subr.mxu0 0.0
    %2605 = vmatpush1.msra.mxu0 0.0
    %2606 = vmatprep.subr.mxu0 0.0
    %2607 = vmatpush1.msra.mxu0 0.0
    %2608 = vmatprep.subr.mxu0 0.0
    %2609 = vmatpush1.msra.mxu0 0.0
    %2610 = vmatprep.subr.mxu0 0.0
    %2611 = vmatpush1.msra.mxu0 0.0
    %2612 = vmatprep.subr.mxu0 0.0
    %2613 = vmatpush1.msra.mxu0 0.0
    %2614 = vmatprep.subr.mxu0 0.0
    %2615 = vmatpush1.msra.mxu0 0.0
    %2616 = vmatprep.subr.mxu0 0.0
    %2617 = vmatpush1.msra.mxu0 0.0
    %2618 = vmatprep.subr.mxu0 0.0
    %2619 = vmatpush1.msra.mxu0 0.0
    %2620 = vmatprep.subr.mxu0 0.0
    %2621 = vmatpush1.msra.mxu0 0.0
    %2622 = vmatprep.subr.mxu0 0.0
    %2623 = vmatpush1.msra.mxu0 0.0
    %2624 = vmatprep.subr.mxu0 0.0
    %2625 = vmatpush1.msra.mxu0 0.0
    %2626 = vmatprep.subr.mxu0 0.0
    %2627 = vmatpush1.msra.mxu0 0.0
    %2628 = vmatprep.subr.mxu0 0.0
    %2629 = vmatpush1.msra.mxu0 0.0
    %2630 = vmatprep.subr.mxu0 0.0
    %2631 = vmatpush1.msra.mxu0 0.0
    %2632 = vmatprep.subr.mxu0 0.0
    %2633 = vmatpush1.msra.mxu0 0.0
    %2634 = vmatprep.subr.mxu0 0.0
    %2635 = vmatpush1.msra.mxu0 0.0
    %2636 = vmatprep.subr.mxu0 0.0
    %2637 = vmatpush1.msra.mxu0 0.0
    %2638 = vmatprep.subr.mxu0 0.0
    %2639 = vmatpush1.msra.mxu0 0.0
    %2640 = vmatprep.subr.mxu0 0.0
    %2641 = vmatpush1.msra.mxu0 0.0
    %2642 = vmatprep.subr.mxu0 0.0
    %2643 = vmatpush1.msra.mxu0 0.0
    %2644 = vmatprep.subr.mxu0 0.0
    %2645 = vmatpush1.msra.mxu0 0.0
    %2646 = vmatprep.subr.mxu0 0.0
    %2647 = vmatpush1.msra.mxu0 0.0
    %2648 = vmatprep.subr.mxu0 0.0
    %2649 = vmatpush1.msra.mxu0 0.0
    %2650 = vmatprep.subr.mxu0 0.0
    %2651 = vmatpush1.msra.mxu0 0.0
    %2652 = vmatprep.subr.mxu0 0.0
    %2653 = vmatpush1.msra.mxu0 0.0
    %2654 = vmatprep.subr.mxu0 0.0
    %2655 = vmatpush1.msra.mxu0 0.0
    %2656 = vmatprep.subr.mxu0 0.0
    %2657 = vmatpush1.msra.mxu0 0.0
    %2658 = vmatprep.subr.mxu0 0.0
    %2659 = vmatpush1.msra.mxu0 0.0
    %2660 = vmatprep.subr.mxu0 0.0
    %2661 = vmatpush1.msra.mxu0 0.0
    %2662 = vmatprep.mubr.f32.mxu0 0.0
    %2663 = vmatmul.mubr.f32.gmra.mrb[0].mxu0 %v2575
    %v2664 = vpop.f32.mrb[0].mxu0
    %v2665 = vadd.f32 0.0, %v2664
    %v2666 = vpop.f32.mrb[0].mxu0
    %2667 = vmatprep.mubr.f32.mxu0 0.0
    %2668 = vmatmul.mubr.f32.gmra.mrb[0].mxu0 %v2578
    %v2669 = vpop.f32.mrb[0].mxu0
    %v2670 = vadd.f32 0.0, %v2669
    %v2671 = vpop.f32.mrb[0].mxu0
    %2672 = vmatprep.mubr.f32.mxu0 0.0
    %2673 = vmatmul.mubr.f32.gmra.mrb[0].mxu0 %v2581
    %v2674 = vpop.f32.mrb[0].mxu0
    %v2675 = vadd.f32 0.0, %v2674
    %v2676 = vpop.f32.mrb[0].mxu0
    %2677 = vmatprep.mubr.f32.mxu0 0.0
    %2678 = vmatmul.mubr.f32.gmra.mrb[0].mxu0 %v2584
    %v2679 = vpop.f32.mrb[0].mxu0
    %v2680 = vadd.f32 0.0, %v2679
    %v2681 = vpop.f32.mrb[0].mxu0
    %2682 = vmatprep.mubr.f32.mxu0 0.0
    %2683 = vmatmul.mubr.f32.gmra.mrb[0].mxu0 %v2587
    %v2684 = vpop.f32.mrb[0].mxu0
    %v2685 = vadd.f32 0.0, %v2684
    %v2686 = vpop.f32.mrb[0].mxu0
    %2687 = vmatprep.mubr.f32.mxu0 0.0
    %2688 = vmatmul.mubr.f32.gmra.mrb[0].mxu0 %v2590
    %v2689 = vpop.f32.mrb[0].mxu0
    %v2690 = vadd.f32 0.0, %v2689
    %v2691 = vpop.f32.mrb[0].mxu0
    %2692 = vmatprep.mubr.f32.mxu0 0.0
    %2693 = vmatmul.mubr.f32.gmra.mrb[0].mxu0 %v2593
    %v2694 = vpop.f32.mrb[0].mxu0
    %v2695 = vadd.f32 0.0, %v2694
    %v2696 = vpop.f32.mrb[0].mxu0
    %2697 = vmatprep.mubr.f32.mxu0 0.0
    %2698 = vmatmul.mubr.f32.gmra.mrb[0].mxu0 %v2596
    %v2699 = vpop.f32.mrb[0].mxu0
    %v2700 = vadd.f32 0.0, %v2699
    %v2701 = vpop.f32.mrb[0].mxu0
    %2702 = vdwg.mxu0
    %v2704 = vsel %vm2573, %v2491, 0
    %v2707 = vsel %vm2573, %v2496, 0
    %v2710 = vsel %vm2573, %v2501, 0
    %v2713 = vsel %vm2573, %v2506, 0
    %v2716 = vsel %vm2573, %v2511, 0
    %v2719 = vsel %vm2573, %v2516, 0
    %v2722 = vsel %vm2573, %v2521, 0
    %v2725 = vsel %vm2573, %v2526, 0
    %2727 = vmatprep.subr.mxu0 0.0
    %2728 = vmatpush1.msra.mxu0 %v2569
    %2729 = vmatprep.subr.mxu0 0.0
    %2730 = vmatpush1.msra.mxu0 %v2570
    %2731 = vmatprep.subr.mxu0 0.0
    %2732 = vmatpush1.msra.mxu0 0.0
    %2733 = vmatprep.subr.mxu0 0.0
    %2734 = vmatpush1.msra.mxu0 0.0
    %2735 = vmatprep.subr.mxu0 0.0
    %2736 = vmatpush1.msra.mxu0 0.0
    %2737 = vmatprep.subr.mxu0 0.0
    %2738 = vmatpush1.msra.mxu0 0.0
    %2739 = vmatprep.subr.mxu0 0.0
    %2740 = vmatpush1.msra.mxu0 0.0
    %2741 = vmatprep.subr.mxu0 0.0
    %2742 = vmatpush1.msra.mxu0 0.0
    %2743 = vmatprep.subr.mxu0 0.0
    %2744 = vmatpush1.msra.mxu0 0.0
    %2745 = vmatprep.subr.mxu0 0.0
    %2746 = vmatpush1.msra.mxu0 0.0
    %2747 = vmatprep.subr.mxu0 0.0
    %2748 = vmatpush1.msra.mxu0 0.0
    %2749 = vmatprep.subr.mxu0 0.0
    %2750 = vmatpush1.msra.mxu0 0.0
    %2751 = vmatprep.subr.mxu0 0.0
    %2752 = vmatpush1.msra.mxu0 0.0
    %2753 = vmatprep.subr.mxu0 0.0
    %2754 = vmatpush1.msra.mxu0 0.0
    %2755 = vmatprep.subr.mxu0 0.0
    %2756 = vmatpush1.msra.mxu0 0.0
    %2757 = vmatprep.subr.mxu0 0.0
    %2758 = vmatpush1.msra.mxu0 0.0
    %2759 = vmatprep.subr.mxu0 0.0
    %2760 = vmatpush1.msra.mxu0 0.0
    %2761 = vmatprep.subr.mxu0 0.0
    %2762 = vmatpush1.msra.mxu0 0.0
    %2763 = vmatprep.subr.mxu0 0.0
    %2764 = vmatpush1.msra.mxu0 0.0
    %2765 = vmatprep.subr.mxu0 0.0
    %2766 = vmatpush1.msra.mxu0 0.0
    %2767 = vmatprep.subr.mxu0 0.0
    %2768 = vmatpush1.msra.mxu0 0.0
    %2769 = vmatprep.subr.mxu0 0.0
    %2770 = vmatpush1.msra.mxu0 0.0
    %2771 = vmatprep.subr.mxu0 0.0
    %2772 = vmatpush1.msra.mxu0 0.0
    %2773 = vmatprep.subr.mxu0 0.0
    %2774 = vmatpush1.msra.mxu0 0.0
    %2775 = vmatprep.subr.mxu0 0.0
    %2776 = vmatpush1.msra.mxu0 0.0
    %2777 = vmatprep.subr.mxu0 0.0
    %2778 = vmatpush1.msra.mxu0 0.0
    %2779 = vmatprep.subr.mxu0 0.0
    %2780 = vmatpush1.msra.mxu0 0.0
    %2781 = vmatprep.subr.mxu0 0.0
    %2782 = vmatpush1.msra.mxu0 0.0
    %2783 = vmatprep.subr.mxu0 0.0
    %2784 = vmatpush1.msra.mxu0 0.0
    %2785 = vmatprep.subr.mxu0 0.0
    %2786 = vmatpush1.msra.mxu0 0.0
    %2787 = vmatprep.subr.mxu0 0.0
    %2788 = vmatpush1.msra.mxu0 0.0
    %2789 = vmatprep.subr.mxu0 0.0
    %2790 = vmatpush1.msra.mxu0 0.0
    %2791 = vmatprep.mubr.f32.mxu0 0.0
    %2792 = vmatmul.mubr.f32.gmra.mrb[0].mxu0 %v2704
    %v2793 = vpop.f32.mrb[0].mxu0
    %v2794 = vadd.f32 %v2665, %v2793
    %v2795 = vpop.f32.mrb[0].mxu0
    %2796 = vmatprep.mubr.f32.mxu0 0.0
    %2797 = vmatmul.mubr.f32.gmra.mrb[0].mxu0 %v2707
    %v2798 = vpop.f32.mrb[0].mxu0
    %v2799 = vadd.f32 %v2670, %v2798
    %v2800 = vpop.f32.mrb[0].mxu0
    %2801 = vmatprep.mubr.f32.mxu0 0.0
    %2802 = vmatmul.mubr.f32.gmra.mrb[0].mxu0 %v2710
    %v2803 = vpop.f32.mrb[0].mxu0
    %v2804 = vadd.f32 %v2675, %v2803
    %v2805 = vpop.f32.mrb[0].mxu0
    %2806 = vmatprep.mubr.f32.mxu0 0.0
    %2807 = vmatmul.mubr.f32.gmra.mrb[0].mxu0 %v2713
    %v2808 = vpop.f32.mrb[0].mxu0
    %v2809 = vadd.f32 %v2680, %v2808
    %v2810 = vpop.f32.mrb[0].mxu0
    %2811 = vmatprep.mubr.f32.mxu0 0.0
    %2812 = vmatmul.mubr.f32.gmra.mrb[0].mxu0 %v2716
    %v2813 = vpop.f32.mrb[0].mxu0
    %v2814 = vadd.f32 %v2685, %v2813
    %v2815 = vpop.f32.mrb[0].mxu0
    %2816 = vmatprep.mubr.f32.mxu0 0.0
    %2817 = vmatmul.mubr.f32.gmra.mrb[0].mxu0 %v2719
    %v2818 = vpop.f32.mrb[0].mxu0
    %v2819 = vadd.f32 %v2690, %v2818
    %v2820 = vpop.f32.mrb[0].mxu0
    %2821 = vmatprep.mubr.f32.mxu0 0.0
    %2822 = vmatmul.mubr.f32.gmra.mrb[0].mxu0 %v2722
    %v2823 = vpop.f32.mrb[0].mxu0
    %v2824 = vadd.f32 %v2695, %v2823
    %v2825 = vpop.f32.mrb[0].mxu0
    %2826 = vmatprep.mubr.f32.mxu0 0.0
    %2827 = vmatmul.mubr.f32.gmra.mrb[0].mxu0 %v2725
    %v2828 = vpop.f32.mrb[0].mxu0
    %v2829 = vadd.f32 %v2700, %v2828
    %v2830 = vpop.f32.mrb[0].mxu0
    %2831 = vdwg.mxu0
    %v2832 = vmax.f32 %v2794, 0.0
    %v2833 = vmax.f32 %v2799, 0.0
    %v2834 = vmax.f32 %v2804, 0.0
    %v2835 = vmax.f32 %v2809, 0.0
    %v2836 = vmax.f32 %v2814, 0.0
    %v2837 = vmax.f32 %v2819, 0.0
    %v2838 = vmax.f32 %v2824, 0.0
    %v2839 = vmax.f32 %v2829, 0.0
    %v2840 = vld [vmem:[%s2 + $0xa0] sm:$0x1f]
    %v2842 = vsel %vm174, %v2840, 0
    %2844 = vmatprep.subr.mxu0 0.0
    %2845 = vmatpush1.msra.mxu0 %v2832
    %2846 = vmatprep.subr.mxu0 0.0
    %2847 = vmatpush1.msra.mxu0 %v2833
    %2848 = vmatprep.subr.mxu0 0.0
    %2849 = vmatpush1.msra.mxu0 %v2834
    %2850 = vmatprep.subr.mxu0 0.0
    %2851 = vmatpush1.msra.mxu0 %v2835
    %2852 = vmatprep.subr.mxu0 0.0
    %2853 = vmatpush1.msra.mxu0 %v2836
    %2854 = vmatprep.subr.mxu0 0.0
    %2855 = vmatpush1.msra.mxu0 %v2837
    %2856 = vmatprep.subr.mxu0 0.0
    %2857 = vmatpush1.msra.mxu0 %v2838
    %2858 = vmatprep.subr.mxu0 0.0
    %2859 = vmatpush1.msra.mxu0 %v2839
    %2860 = vmatprep.subr.mxu0 0.0
    %2861 = vmatpush1.msra.mxu0 0.0
    %2862 = vmatprep.subr.mxu0 0.0
    %2863 = vmatpush1.msra.mxu0 0.0
    %2864 = vmatprep.subr.mxu0 0.0
    %2865 = vmatpush1.msra.mxu0 0.0
    %2866 = vmatprep.subr.mxu0 0.0
    %2867 = vmatpush1.msra.mxu0 0.0
    %2868 = vmatprep.subr.mxu0 0.0
    %2869 = vmatpush1.msra.mxu0 0.0
    %2870 = vmatprep.subr.mxu0 0.0
    %2871 = vmatpush1.msra.mxu0 0.0
    %2872 = vmatprep.subr.mxu0 0.0
    %2873 = vmatpush1.msra.mxu0 0.0
    %2874 = vmatprep.subr.mxu0 0.0
    %2875 = vmatpush1.msra.mxu0 0.0
    %2876 = vmatprep.subr.mxu0 0.0
    %2877 = vmatpush1.msra.mxu0 0.0
    %2878 = vmatprep.subr.mxu0 0.0
    %2879 = vmatpush1.msra.mxu0 0.0
    %2880 = vmatprep.subr.mxu0 0.0
    %2881 = vmatpush1.msra.mxu0 0.0
    %2882 = vmatprep.subr.mxu0 0.0
    %2883 = vmatpush1.msra.mxu0 0.0
    %2884 = vmatprep.subr.mxu0 0.0
    %2885 = vmatpush1.msra.mxu0 0.0
    %2886 = vmatprep.subr.mxu0 0.0
    %2887 = vmatpush1.msra.mxu0 0.0
    %2888 = vmatprep.subr.mxu0 0.0
    %2889 = vmatpush1.msra.mxu0 0.0
    %2890 = vmatprep.subr.mxu0 0.0
    %2891 = vmatpush1.msra.mxu0 0.0
    %2892 = vmatprep.subr.mxu0 0.0
    %2893 = vmatpush1.msra.mxu0 0.0
    %2894 = vmatprep.subr.mxu0 0.0
    %2895 = vmatpush1.msra.mxu0 0.0
    %2896 = vmatprep.subr.mxu0 0.0
    %2897 = vmatpush1.msra.mxu0 0.0
    %2898 = vmatprep.subr.mxu0 0.0
    %2899 = vmatpush1.msra.mxu0 0.0
    %2900 = vmatprep.subr.mxu0 0.0
    %2901 = vmatpush1.msra.mxu0 0.0
    %2902 = vmatprep.subr.mxu0 0.0
    %2903 = vmatpush1.msra.mxu0 0.0
    %2904 = vmatprep.subr.mxu0 0.0
    %2905 = vmatpush1.msra.mxu0 0.0
    %2906 = vmatprep.subr.mxu0 0.0
    %2907 = vmatpush1.msra.mxu0 0.0
    %2908 = vmatprep.mubr.f32.mxu0 0.0
    %2909 = vmatmul.mubr.f32.gmra.mrb[0].mxu0 %v2842
    %v2910 = vpop.f32.mrb[0].mxu0
    %v2911 = vadd.f32 0.0, %v2910
    %v2912 = vpop.f32.mrb[0].mxu0
    %2913 = vdwg.mxu0
    %2914 = vst [vmem:[%s3] sm:$0x1f] %v2911
    // Predicated region
    $region18: #{lstm_mhs_forward.1} parent=1 // pred_check
      _
    $region19: #{lstm_mhs_forward.1} parent=1 // pred_check_branch
      %2916 = sbr.rel (0) target = $region21
    $region20: #{lstm_mhs_forward.1} parent=1 // pred_region
      _
    $region21: #{lstm_mhs_forward.1} parent=1 // pred_fallthru
      _
    // Predicated region
    $region22: #{lstm_mhs_forward.1} parent=1 // pred_check
      _
    $region23: #{lstm_mhs_forward.1} parent=1 // pred_check_branch
      %2918 = sbr.rel (0) target = $region25
    $region24: #{lstm_mhs_forward.1} parent=1 // pred_region
      _
    $region25: #{lstm_mhs_forward.1} parent=1 // pred_fallthru
      _
    %2919 = vsyncpa [#allocation6], 1

</llo_original>
